<compile_context>
chip_gen: v6e
topology: v6e:2x2x1
jax: 0.10.0
libtpu: 0.0.40
codegen_flags: <defaults>
</compile_context>

<pallas_src>
import functools

import jax
import jax.numpy as jnp
from jax.experimental import pallas as pl
from jax.experimental.pallas import tpu as pltpu

NUM_CLASSES = 10
NZ = 100
IMG_SHAPE = (1, 28, 28)
IMG_FLAT = 1 * 28 * 28          # 784
IMG_FLAT_PAD = 896              # 7 * 128 lanes (lane-dense final matmul / stores)
LRELU_SLOPE = 0.2
BN_EPS = 1e-5

IN_FEATS = NZ + NUM_CLASSES     # 110 (real)
IN_FEATS_PAD = 128              # padded K for the first matmul

# padded layer widths: 128 -> 128 -> 256 -> 512 -> 1024 -> 896(pad of 784)
DIMS = (IN_FEATS_PAD, 128, 256, 512, 1024, IMG_FLAT_PAD)
VEC_SLAB_W = 1024               # width of the packed per-column-vector slab


def _leaky_relu(x):
    return jnp.where(x > 0, x, LRELU_SLOPE * x)


def generator_kernel(
    x_ref,                        # (B, 128) bf16  concat(label_emb, noise), zero-padded
    w1_ref,                       # (128, 128)  bf16
    w2_ref,                       # (128, 256)  bf16
    w3_ref,                       # (256, 512)  bf16
    vecs_ref,                     # (8, 1024)   f32: b1, g2, be2, g3, be3, g4, be4, b5
    w4_hbm,                       # (512, 1024) bf16, memory_space=pl.ANY
    w5_hbm,                       # (1024, 896) bf16, memory_space=pl.ANY
    out_ref,                      # (B, 896) f32
    w4_vmem, w5_vmem,             # VMEM scratch for the manually DMA'd weights
    dma_sems,                     # SemaphoreType.DMA((2,))
):
    # Kick off the big weight DMAs immediately so they overlap layers 1-3.
    w4_cp = pltpu.make_async_copy(w4_hbm, w4_vmem, dma_sems.at[0])
    w5_cp = pltpu.make_async_copy(w5_hbm, w5_vmem, dma_sems.at[1])
    w4_cp.start()
    w5_cp.start()

    # Layer 1: Linear + LeakyReLU (bf16 MXU operands, f32 accumulation)
    h = jnp.dot(x_ref[...], w1_ref[...],
                preferred_element_type=jnp.float32) + vecs_ref[0:1, 0:DIMS[1]]
    h = _leaky_relu(h)

    def lin_bn_lrelu(h, w, g, be):
        # Linear (bias omitted: exactly cancelled by BN mean subtraction)
        z = jnp.dot(h.astype(jnp.bfloat16), w,
                    preferred_element_type=jnp.float32)
        # BatchNorm1d (training mode: batch mean, biased variance), folded into
        # a single scale/shift pass over the (B, d) activation.  Clamp variance
        # to avoid rsqrt of a slightly-negative value from f32 cancellation.
        mu = jnp.mean(z, axis=0, keepdims=True)
        var = jnp.maximum(jnp.mean(z * z, axis=0, keepdims=True) - mu * mu, 0.0)
        inv = jax.lax.rsqrt(var + BN_EPS)
        scale = g * inv
        shift = be - mu * scale
        return _leaky_relu(z * scale + shift)

    h = lin_bn_lrelu(h, w2_ref[...], vecs_ref[1:2, 0:DIMS[2]], vecs_ref[2:3, 0:DIMS[2]])
    h = lin_bn_lrelu(h, w3_ref[...], vecs_ref[3:4, 0:DIMS[3]], vecs_ref[4:5, 0:DIMS[3]])

    w4_cp.wait()
    h = lin_bn_lrelu(h, w4_vmem[...], vecs_ref[5:6, 0:DIMS[4]], vecs_ref[6:7, 0:DIMS[4]])

    # Final Linear + Tanh (output padded to 896 lanes; wrapper slices to 784)
    w5_cp.wait()
    z = jnp.dot(h.astype(jnp.bfloat16), w5_vmem[...],
                preferred_element_type=jnp.float32) + vecs_ref[7:8, 0:IMG_FLAT_PAD]
    out_ref[...] = jnp.tanh(z)


def make_params(key):
    """Deterministic synthetic parameters matching the PyTorch module shapes."""
    keys = jax.random.split(key, 16)
    ki = iter(keys)

    params = {}
    # Embedding table (num_classes, num_classes)
    params["emb"] = jax.random.normal(next(ki), (NUM_CLASSES, NUM_CLASSES), jnp.float32)

    def linear(kw, kb, fan_in, fan_out):
        bound = 1.0 / jnp.sqrt(jnp.float32(fan_in))
        w = jax.random.uniform(kw, (fan_in, fan_out), jnp.float32, -bound, bound)
        b = jax.random.uniform(kb, (fan_out,), jnp.float32, -bound, bound)
        return w, b

    def pad_vec(v):
        return jnp.pad(v, (0, VEC_SLAB_W - v.shape[0]))

    vec_rows = []

    # Layer 1 (keeps its bias); K padded 110 -> 128 with zero rows.
    w1, b1 = linear(next(ki), next(ki), IN_FEATS, DIMS[1])
    params["w1"] = jnp.pad(w1, ((0, IN_FEATS_PAD - IN_FEATS), (0, 0))).astype(jnp.bfloat16)
    vec_rows.append(pad_vec(b1))

    # BN'd layers: biases dropped (exactly cancelled by BatchNorm mean subtraction)
    for i, (fi, fo) in zip((2, 3, 4), ((DIMS[1], DIMS[2]),
                                       (DIMS[2], DIMS[3]),
                                       (DIMS[3], DIMS[4]))):
        w, _ = linear(next(ki), next(ki), fi, fo)
        params[f"w{i}"] = w.astype(jnp.bfloat16)
        vec_rows.append(pad_vec(jnp.ones((fo,), jnp.float32)))    # BN gamma
        vec_rows.append(pad_vec(jnp.zeros((fo,), jnp.float32)))   # BN beta

    # Final layer: real width 784, zero-padded to 896 output features so the
    # last matmul N-tile / output stores are lane-dense. Padded columns are
    # sliced away in the wrapper, so numerics are unchanged.
    w5, b5 = linear(next(ki), next(ki), DIMS[4], IMG_FLAT)
    pad = IMG_FLAT_PAD - IMG_FLAT
    params["w5"] = jnp.pad(w5, ((0, 0), (0, pad))).astype(jnp.bfloat16)
    vec_rows.append(pad_vec(jnp.pad(b5, (0, pad))))

    # One (8, 1024) f32 slab: b1, g2, be2, g3, be3, g4, be4, b5  (one DMA, not 8).
    params["vecs"] = jnp.stack(vec_rows, axis=0)
    return params


def _cost_estimate(batch):
    mm_flops = 2 * batch * sum(a * b for a, b in zip(DIMS[:-1], DIMS[1:]))
    # tanh on the output + rsqrt for the three BN layers
    transcendentals = batch * IMG_FLAT_PAD + (DIMS[2] + DIMS[3] + DIMS[4])
    # Real HBM traffic only: bf16 input + bf16 weights + f32 vec slab + f32 output.
    weight_bytes = 2 * sum(a * b for a, b in zip(DIMS[:-1], DIMS[1:]))
    io_bytes = 2 * batch * DIMS[0] + 4 * 8 * VEC_SLAB_W + 4 * batch * IMG_FLAT_PAD
    return pl.CostEstimate(flops=mm_flops,
                           transcendentals=transcendentals,
                           bytes_accessed=weight_bytes + io_bytes)


@functools.partial(jax.jit, static_argnames=())
def generator_forward(noise, labels, params):
    # Glue: embedding lookup + concat (gather has no rectangular BlockSpec form),
    # then pad K 110 -> 128 and cast to bf16 so the first matmul is lane-dense.
    gen_input = jnp.concatenate([params["emb"][labels], noise], axis=-1)   # (B, 110)
    B = gen_input.shape[0]
    gen_input = jnp.pad(
        gen_input, ((0, 0), (0, IN_FEATS_PAD - IN_FEATS))).astype(jnp.bfloat16)

    vmem_spec = pl.BlockSpec(memory_space=pltpu.MemorySpace.VMEM)
    any_spec = pl.BlockSpec(memory_space=pl.ANY)

    kernel_args = (
        gen_input,
        params["w1"], params["w2"], params["w3"], params["vecs"],
        params["w4"], params["w5"],
    )

    flat = pl.pallas_call(
        generator_kernel,
        out_shape=jax.ShapeDtypeStruct((B, IMG_FLAT_PAD), jnp.float32),
        in_specs=[vmem_spec] * 5 + [any_spec, any_spec],
        out_specs=vmem_spec,
        scratch_shapes=[
            pltpu.VMEM((DIMS[3], DIMS[4]), jnp.bfloat16),      # w4 landing buffer
            pltpu.VMEM((DIMS[4], IMG_FLAT_PAD), jnp.bfloat16),  # w5 landing buffer
            pltpu.SemaphoreType.DMA((2,)),
        ],
        compiler_params=pltpu.CompilerParams(vmem_limit_bytes=16 << 20),
        cost_estimate=_cost_estimate(B),
    )(*kernel_args)

    # Drop the 112 padded output columns, then reshape to NCHW like PyTorch.
    return flat[:, :IMG_FLAT].reshape(B, *IMG_SHAPE)   # (B, 1, 28, 28)

# TODO(synk): for a GAN training/sampling loop, graduate to the full P10
# cross-pallas_call prefetch (persistent VMEM weight residency + semaphore
# futures) so the weight DMA is amortized across calls; and for large B, add a
# batch grid with constant-block weight index_maps + two-pass cross-tile BN
# stats, sized to v7x's 64 MiB VMEM with dimension_semantics=("parallel",).


if __name__ == "__main__":
    key = jax.random.PRNGKey(0)
    k_params, k_noise, k_labels = jax.random.split(key, 3)

    batch = 8
    params = make_params(k_params)
    noise = jax.random.normal(k_noise, (batch, NZ), jnp.float32)
    labels = jax.random.randint(k_labels, (batch,), 0, NUM_CLASSES, jnp.int32)

    imgs = generator_forward(noise, labels, params)
    jax.block_until_ready(imgs)

    assert imgs.shape == (batch, 1, 28, 28), imgs.shape
    assert bool(jnp.all(jnp.isfinite(imgs)))
    assert bool(jnp.all(jnp.abs(imgs) <= 1.0))  # tanh output range
    print("KERNEL_OK")
</pallas_src>

<mosaic_0001>
module attributes {stable_mosaic.version = 11 : i64} {
  func.func @generator_kernel(%arg0: memref<8x128xbf16, #tpu.memory_space<vmem>>, %arg1: memref<128x128xbf16, #tpu.memory_space<vmem>>, %arg2: memref<128x256xbf16, #tpu.memory_space<vmem>>, %arg3: memref<256x512xbf16, #tpu.memory_space<vmem>>, %arg4: memref<8x1024xf32, #tpu.memory_space<vmem>>, %arg5: memref<512x1024xbf16, #tpu.memory_space<any>>, %arg6: memref<1024x896xbf16, #tpu.memory_space<any>>, %arg7: memref<8x896xf32, #tpu.memory_space<vmem>>, %arg8: memref<512x1024xbf16, #tpu.memory_space<vmem>>, %arg9: memref<1024x896xbf16, #tpu.memory_space<vmem>>, %arg10: memref<2x!tpu.dma_semaphore, #tpu.memory_space<semaphore_mem>>) attributes {dimension_semantics = [], scalar_prefetch = 0 : i64, scratch_operands = 3 : i64, tpu.core_type = #tpu.core_type<tc>} {
    %c0_i32 = arith.constant 0 : i32
    %0 = tpu.memref_slice %arg10[%c0_i32] : memref<2x!tpu.dma_semaphore, #tpu.memory_space<semaphore_mem>> -> memref<1x!tpu.dma_semaphore, #tpu.memory_space<semaphore_mem>>
    %1 = tpu.memref_squeeze %0 : memref<1x!tpu.dma_semaphore, #tpu.memory_space<semaphore_mem>> -> memref<!tpu.dma_semaphore, #tpu.memory_space<semaphore_mem>>
    tpu.enqueue_dma source(%arg5 : memref<512x1024xbf16, #tpu.memory_space<any>>) target(%arg8 : memref<512x1024xbf16, #tpu.memory_space<vmem>>) target_semaphore(%1 : memref<!tpu.dma_semaphore, #tpu.memory_space<semaphore_mem>>)
    %c1_i32 = arith.constant 1 : i32
    %2 = tpu.memref_slice %arg10[%c1_i32] : memref<2x!tpu.dma_semaphore, #tpu.memory_space<semaphore_mem>> -> memref<1x!tpu.dma_semaphore, #tpu.memory_space<semaphore_mem>>
    %3 = tpu.memref_squeeze %2 : memref<1x!tpu.dma_semaphore, #tpu.memory_space<semaphore_mem>> -> memref<!tpu.dma_semaphore, #tpu.memory_space<semaphore_mem>>
    tpu.enqueue_dma source(%arg6 : memref<1024x896xbf16, #tpu.memory_space<any>>) target(%arg9 : memref<1024x896xbf16, #tpu.memory_space<vmem>>) target_semaphore(%3 : memref<!tpu.dma_semaphore, #tpu.memory_space<semaphore_mem>>)
    %c0 = arith.constant 0 : index
    %c0_0 = arith.constant 0 : index
    %4 = vector.load %arg0[%c0, %c0_0] : memref<8x128xbf16, #tpu.memory_space<vmem>>, vector<8x128xbf16>
    %c0_1 = arith.constant 0 : index
    %c0_2 = arith.constant 0 : index
    %5 = vector.load %arg1[%c0_1, %c0_2] : memref<128x128xbf16, #tpu.memory_space<vmem>>, vector<128x128xbf16>
    %cst = arith.constant dense<0.000000e+00> : vector<8x128xf32>
    %6 = tpu.matmul %4, %5, %cst {dimension_numbers = #tpu.dot_dimension_numbers<[1], [0], [0], [1], [0, 0, 1, 1], [], []>} : vector<8x128xbf16>, vector<128x128xbf16>, vector<8x128xf32> -> vector<8x128xf32>
    %c0_3 = arith.constant 0 : index
    %c0_4 = arith.constant 0 : index
    %7 = vector.load %arg4[%c0_3, %c0_4] : memref<8x1024xf32, #tpu.memory_space<vmem>>, vector<1x128xf32>
    %8 = vector.broadcast %7 : vector<1x128xf32> to vector<8x128xf32>
    %9 = arith.addf %6, %8 : vector<8x128xf32>
    %cst_5 = arith.constant 0.000000e+00 : f32
    %10 = vector.broadcast %cst_5 : f32 to vector<8x128xf32>
    %11 = arith.cmpf ogt, %9, %10 : vector<8x128xf32>
    %cst_6 = arith.constant 2.000000e-01 : f32
    %12 = vector.broadcast %cst_6 : f32 to vector<8x128xf32>
    %13 = arith.mulf %12, %9 : vector<8x128xf32>
    %14 = arith.select %11, %9, %13 : vector<8x128xi1>, vector<8x128xf32>
    %c0_7 = arith.constant 0 : index
    %c0_8 = arith.constant 0 : index
    %15 = vector.load %arg2[%c0_7, %c0_8] : memref<128x256xbf16, #tpu.memory_space<vmem>>, vector<128x256xbf16>
    %c1 = arith.constant 1 : index
    %c0_9 = arith.constant 0 : index
    %16 = vector.load %arg4[%c1, %c0_9] : memref<8x1024xf32, #tpu.memory_space<vmem>>, vector<1x256xf32>
    %c2 = arith.constant 2 : index
    %c0_10 = arith.constant 0 : index
    %17 = vector.load %arg4[%c2, %c0_10] : memref<8x1024xf32, #tpu.memory_space<vmem>>, vector<1x256xf32>
    %18 = arith.truncf %14 : vector<8x128xf32> to vector<8x128xbf16>
    %cst_11 = arith.constant dense<0.000000e+00> : vector<8x256xf32>
    %19 = tpu.matmul %18, %15, %cst_11 {dimension_numbers = #tpu.dot_dimension_numbers<[1], [0], [0], [1], [0, 0, 1, 1], [], []>} : vector<8x128xbf16>, vector<128x256xbf16>, vector<8x256xf32> -> vector<8x256xf32>
    %cst_12 = arith.constant dense<0.000000e+00> : vector<256xf32>
    %20 = vector.multi_reduction <add>, %19, %cst_12 [0] : vector<8x256xf32> to vector<256xf32>
    %21 = vector.shape_cast %20 : vector<256xf32> to vector<1x256xf32>
    %cst_13 = arith.constant 8.000000e+00 : f32
    %22 = vector.broadcast %cst_13 : f32 to vector<1x256xf32>
    %23 = arith.divf %21, %22 : vector<1x256xf32>
    %24 = arith.mulf %19, %19 : vector<8x256xf32>
    %cst_14 = arith.constant dense<0.000000e+00> : vector<256xf32>
    %25 = vector.multi_reduction <add>, %24, %cst_14 [0] : vector<8x256xf32> to vector<256xf32>
    %26 = vector.shape_cast %25 : vector<256xf32> to vector<1x256xf32>
    %cst_15 = arith.constant 8.000000e+00 : f32
    %27 = vector.broadcast %cst_15 : f32 to vector<1x256xf32>
    %28 = arith.divf %26, %27 : vector<1x256xf32>
    %29 = arith.mulf %23, %23 : vector<1x256xf32>
    %30 = arith.subf %28, %29 : vector<1x256xf32>
    %cst_16 = arith.constant 0.000000e+00 : f32
    %31 = vector.broadcast %cst_16 : f32 to vector<1x256xf32>
    %32 = arith.maximumf %30, %31 : vector<1x256xf32>
    %cst_17 = arith.constant 9.99999974E-6 : f32
    %33 = vector.broadcast %cst_17 : f32 to vector<1x256xf32>
    %34 = arith.addf %32, %33 : vector<1x256xf32>
    %35 = math.rsqrt %34 : vector<1x256xf32>
    %36 = arith.mulf %16, %35 : vector<1x256xf32>
    %37 = arith.mulf %23, %36 : vector<1x256xf32>
    %38 = arith.subf %17, %37 : vector<1x256xf32>
    %39 = vector.broadcast %36 : vector<1x256xf32> to vector<8x256xf32>
    %40 = arith.mulf %19, %39 : vector<8x256xf32>
    %41 = vector.broadcast %38 : vector<1x256xf32> to vector<8x256xf32>
    %42 = arith.addf %40, %41 : vector<8x256xf32>
    %cst_18 = arith.constant 0.000000e+00 : f32
    %43 = vector.broadcast %cst_18 : f32 to vector<8x256xf32>
    %44 = arith.cmpf ogt, %42, %43 : vector<8x256xf32>
    %cst_19 = arith.constant 2.000000e-01 : f32
    %45 = vector.broadcast %cst_19 : f32 to vector<8x256xf32>
    %46 = arith.mulf %45, %42 : vector<8x256xf32>
    %47 = arith.select %44, %42, %46 : vector<8x256xi1>, vector<8x256xf32>
    %c0_20 = arith.constant 0 : index
    %c0_21 = arith.constant 0 : index
    %48 = vector.load %arg3[%c0_20, %c0_21] : memref<256x512xbf16, #tpu.memory_space<vmem>>, vector<256x512xbf16>
    %c3 = arith.constant 3 : index
    %c0_22 = arith.constant 0 : index
    %49 = vector.load %arg4[%c3, %c0_22] : memref<8x1024xf32, #tpu.memory_space<vmem>>, vector<1x512xf32>
    %c4 = arith.constant 4 : index
    %c0_23 = arith.constant 0 : index
    %50 = vector.load %arg4[%c4, %c0_23] : memref<8x1024xf32, #tpu.memory_space<vmem>>, vector<1x512xf32>
    %51 = arith.truncf %47 : vector<8x256xf32> to vector<8x256xbf16>
    %cst_24 = arith.constant dense<0.000000e+00> : vector<8x512xf32>
    %52 = tpu.matmul %51, %48, %cst_24 {dimension_numbers = #tpu.dot_dimension_numbers<[1], [0], [0], [1], [0, 0, 1, 1], [], []>} : vector<8x256xbf16>, vector<256x512xbf16>, vector<8x512xf32> -> vector<8x512xf32>
    %cst_25 = arith.constant dense<0.000000e+00> : vector<512xf32>
    %53 = vector.multi_reduction <add>, %52, %cst_25 [0] : vector<8x512xf32> to vector<512xf32>
    %54 = vector.shape_cast %53 : vector<512xf32> to vector<1x512xf32>
    %cst_26 = arith.constant 8.000000e+00 : f32
    %55 = vector.broadcast %cst_26 : f32 to vector<1x512xf32>
    %56 = arith.divf %54, %55 : vector<1x512xf32>
    %57 = arith.mulf %52, %52 : vector<8x512xf32>
    %cst_27 = arith.constant dense<0.000000e+00> : vector<512xf32>
    %58 = vector.multi_reduction <add>, %57, %cst_27 [0] : vector<8x512xf32> to vector<512xf32>
    %59 = vector.shape_cast %58 : vector<512xf32> to vector<1x512xf32>
    %cst_28 = arith.constant 8.000000e+00 : f32
    %60 = vector.broadcast %cst_28 : f32 to vector<1x512xf32>
    %61 = arith.divf %59, %60 : vector<1x512xf32>
    %62 = arith.mulf %56, %56 : vector<1x512xf32>
    %63 = arith.subf %61, %62 : vector<1x512xf32>
    %cst_29 = arith.constant 0.000000e+00 : f32
    %64 = vector.broadcast %cst_29 : f32 to vector<1x512xf32>
    %65 = arith.maximumf %63, %64 : vector<1x512xf32>
    %cst_30 = arith.constant 9.99999974E-6 : f32
    %66 = vector.broadcast %cst_30 : f32 to vector<1x512xf32>
    %67 = arith.addf %65, %66 : vector<1x512xf32>
    %68 = math.rsqrt %67 : vector<1x512xf32>
    %69 = arith.mulf %49, %68 : vector<1x512xf32>
    %70 = arith.mulf %56, %69 : vector<1x512xf32>
    %71 = arith.subf %50, %70 : vector<1x512xf32>
    %72 = vector.broadcast %69 : vector<1x512xf32> to vector<8x512xf32>
    %73 = arith.mulf %52, %72 : vector<8x512xf32>
    %74 = vector.broadcast %71 : vector<1x512xf32> to vector<8x512xf32>
    %75 = arith.addf %73, %74 : vector<8x512xf32>
    %cst_31 = arith.constant 0.000000e+00 : f32
    %76 = vector.broadcast %cst_31 : f32 to vector<8x512xf32>
    %77 = arith.cmpf ogt, %75, %76 : vector<8x512xf32>
    %cst_32 = arith.constant 2.000000e-01 : f32
    %78 = vector.broadcast %cst_32 : f32 to vector<8x512xf32>
    %79 = arith.mulf %78, %75 : vector<8x512xf32>
    %80 = arith.select %77, %75, %79 : vector<8x512xi1>, vector<8x512xf32>
    %c0_i32_33 = arith.constant 0 : i32
    %81 = tpu.memref_slice %arg10[%c0_i32_33] : memref<2x!tpu.dma_semaphore, #tpu.memory_space<semaphore_mem>> -> memref<1x!tpu.dma_semaphore, #tpu.memory_space<semaphore_mem>>
    %82 = tpu.memref_squeeze %81 : memref<1x!tpu.dma_semaphore, #tpu.memory_space<semaphore_mem>> -> memref<!tpu.dma_semaphore, #tpu.memory_space<semaphore_mem>>
    tpu.wait_dma2 semaphore(%82 : memref<!tpu.dma_semaphore, #tpu.memory_space<semaphore_mem>>) src(%arg5 : memref<512x1024xbf16, #tpu.memory_space<any>>) dst(%arg8 : memref<512x1024xbf16, #tpu.memory_space<vmem>>)
    %c0_34 = arith.constant 0 : index
    %c0_35 = arith.constant 0 : index
    %83 = vector.load %arg8[%c0_34, %c0_35] : memref<512x1024xbf16, #tpu.memory_space<vmem>>, vector<512x1024xbf16>
    %c5 = arith.constant 5 : index
    %c0_36 = arith.constant 0 : index
    %84 = vector.load %arg4[%c5, %c0_36] : memref<8x1024xf32, #tpu.memory_space<vmem>>, vector<1x1024xf32>
    %c6 = arith.constant 6 : index
    %c0_37 = arith.constant 0 : index
    %85 = vector.load %arg4[%c6, %c0_37] : memref<8x1024xf32, #tpu.memory_space<vmem>>, vector<1x1024xf32>
    %86 = arith.truncf %80 : vector<8x512xf32> to vector<8x512xbf16>
    %cst_38 = arith.constant dense<0.000000e+00> : vector<8x1024xf32>
    %87 = tpu.matmul %86, %83, %cst_38 {dimension_numbers = #tpu.dot_dimension_numbers<[1], [0], [0], [1], [0, 0, 1, 1], [], []>} : vector<8x512xbf16>, vector<512x1024xbf16>, vector<8x1024xf32> -> vector<8x1024xf32>
    %cst_39 = arith.constant dense<0.000000e+00> : vector<1024xf32>
    %88 = vector.multi_reduction <add>, %87, %cst_39 [0] : vector<8x1024xf32> to vector<1024xf32>
    %89 = vector.shape_cast %88 : vector<1024xf32> to vector<1x1024xf32>
    %cst_40 = arith.constant 8.000000e+00 : f32
    %90 = vector.broadcast %cst_40 : f32 to vector<1x1024xf32>
    %91 = arith.divf %89, %90 : vector<1x1024xf32>
    %92 = arith.mulf %87, %87 : vector<8x1024xf32>
    %cst_41 = arith.constant dense<0.000000e+00> : vector<1024xf32>
    %93 = vector.multi_reduction <add>, %92, %cst_41 [0] : vector<8x1024xf32> to vector<1024xf32>
    %94 = vector.shape_cast %93 : vector<1024xf32> to vector<1x1024xf32>
    %cst_42 = arith.constant 8.000000e+00 : f32
    %95 = vector.broadcast %cst_42 : f32 to vector<1x1024xf32>
    %96 = arith.divf %94, %95 : vector<1x1024xf32>
    %97 = arith.mulf %91, %91 : vector<1x1024xf32>
    %98 = arith.subf %96, %97 : vector<1x1024xf32>
    %cst_43 = arith.constant 0.000000e+00 : f32
    %99 = vector.broadcast %cst_43 : f32 to vector<1x1024xf32>
    %100 = arith.maximumf %98, %99 : vector<1x1024xf32>
    %cst_44 = arith.constant 9.99999974E-6 : f32
    %101 = vector.broadcast %cst_44 : f32 to vector<1x1024xf32>
    %102 = arith.addf %100, %101 : vector<1x1024xf32>
    %103 = math.rsqrt %102 : vector<1x1024xf32>
    %104 = arith.mulf %84, %103 : vector<1x1024xf32>
    %105 = arith.mulf %91, %104 : vector<1x1024xf32>
    %106 = arith.subf %85, %105 : vector<1x1024xf32>
    %107 = vector.broadcast %104 : vector<1x1024xf32> to vector<8x1024xf32>
    %108 = arith.mulf %87, %107 : vector<8x1024xf32>
    %109 = vector.broadcast %106 : vector<1x1024xf32> to vector<8x1024xf32>
    %110 = arith.addf %108, %109 : vector<8x1024xf32>
    %cst_45 = arith.constant 0.000000e+00 : f32
    %111 = vector.broadcast %cst_45 : f32 to vector<8x1024xf32>
    %112 = arith.cmpf ogt, %110, %111 : vector<8x1024xf32>
    %cst_46 = arith.constant 2.000000e-01 : f32
    %113 = vector.broadcast %cst_46 : f32 to vector<8x1024xf32>
    %114 = arith.mulf %113, %110 : vector<8x1024xf32>
    %115 = arith.select %112, %110, %114 : vector<8x1024xi1>, vector<8x1024xf32>
    %c1_i32_47 = arith.constant 1 : i32
    %116 = tpu.memref_slice %arg10[%c1_i32_47] : memref<2x!tpu.dma_semaphore, #tpu.memory_space<semaphore_mem>> -> memref<1x!tpu.dma_semaphore, #tpu.memory_space<semaphore_mem>>
    %117 = tpu.memref_squeeze %116 : memref<1x!tpu.dma_semaphore, #tpu.memory_space<semaphore_mem>> -> memref<!tpu.dma_semaphore, #tpu.memory_space<semaphore_mem>>
    tpu.wait_dma2 semaphore(%117 : memref<!tpu.dma_semaphore, #tpu.memory_space<semaphore_mem>>) src(%arg6 : memref<1024x896xbf16, #tpu.memory_space<any>>) dst(%arg9 : memref<1024x896xbf16, #tpu.memory_space<vmem>>)
    %118 = arith.truncf %115 : vector<8x1024xf32> to vector<8x1024xbf16>
    %c0_48 = arith.constant 0 : index
    %c0_49 = arith.constant 0 : index
    %119 = vector.load %arg9[%c0_48, %c0_49] : memref<1024x896xbf16, #tpu.memory_space<vmem>>, vector<1024x896xbf16>
    %cst_50 = arith.constant dense<0.000000e+00> : vector<8x896xf32>
    %120 = tpu.matmul %118, %119, %cst_50 {dimension_numbers = #tpu.dot_dimension_numbers<[1], [0], [0], [1], [0, 0, 1, 1], [], []>} : vector<8x1024xbf16>, vector<1024x896xbf16>, vector<8x896xf32> -> vector<8x896xf32>
    %c7 = arith.constant 7 : index
    %c0_51 = arith.constant 0 : index
    %121 = vector.load %arg4[%c7, %c0_51] : memref<8x1024xf32, #tpu.memory_space<vmem>>, vector<1x896xf32>
    %122 = vector.broadcast %121 : vector<1x896xf32> to vector<8x896xf32>
    %123 = arith.addf %120, %122 : vector<8x896xf32>
    %124 = math.tanh %123 : vector<8x896xf32>
    %c0_52 = arith.constant 0 : index
    %c0_53 = arith.constant 0 : index
    %125 = vector.load %arg7[%c0_52, %c0_53] : memref<8x896xf32, #tpu.memory_space<vmem>>, vector<8x896xf32>
    tpu.vector_store %arg7[%c0_52, %c0_53], %124 {strides = array<i32>} : memref<8x896xf32, #tpu.memory_space<vmem>>, vector<8x896xf32>,
    return
  }
}

</mosaic_0001>

<llo_original>
// kernel: generator_forward.1
$region0: #{generator_forward.1}
  #allocation0 [shape = 'u32[]', space=smem, size = 0x4, offset = 0x4, fixed_abs, tag = 'smem constant byte address 0x4 - core index']
  #allocation1 [shape = 'u32[144,128]{1,0:T(1,128)}', space=vmem, size = 0x12000, scoped, tag = 'internal scratch']
  #allocation2 [shape = 'bf16[512,1024]{1,0:T(8,128)(2,1)}', space=vmem, size = 0x100000, scoped, tag = 'scratch operand']
  #allocation3 [shape = 'bf16[1024,896]{1,0:T(8,128)(2,1)}', space=vmem, size = 0x1c0000, scoped, tag = 'scratch operand']
  #allocation4 [shape = 's32[2]{0}', space=sflag, size = 0x8, scoped, tag = 'scratch operand']
  #allocation12 [shape = 's32[]', space=sflag, size = 0x4, offset = 0, fixed_abs, tag = 'sflag constant byte address 0x0 - dummy sync flag']
  #allocation13 [shape = 's32[]', space=sflag, size = 0x4, offset = 0, fixed_abs, tag = 'sflag constant byte address 0x0 - dummy sync flag']
  #allocation14 [shape = 'u32[]', space=smem, size = 0x4, offset = 0x44, fixed_abs, tag = 'smem constant byte address 0x44 - assertion arg 0']
  #allocation15 [shape = 'u32[]', space=smem, size = 0x4, offset = 0x48, fixed_abs, tag = 'smem constant byte address 0x48 - assertion arg 1']
  #allocation16 [shape = 's32[]', space=sflag, size = 0x4, offset = 0, fixed_abs, tag = 'sflag constant byte address 0x0 - dummy sync flag']
  #allocation17 [shape = 's32[]', space=sflag, size = 0x4, offset = 0, fixed_abs, tag = 'sflag constant byte address 0x0 - dummy sync flag']
  %s0 = inlined_call_operand.vmem [shape: bf16[8,128], index: 0, kind: input, shape index: {}]
  %s1 = inlined_call_operand.hbm [shape: bf16[128,128], index: 1, kind: input, shape index: {}]
  %s2 = inlined_call_operand.hbm [shape: bf16[128,256], index: 2, kind: input, shape index: {}]
  %s3 = inlined_call_operand.hbm [shape: bf16[256,512], index: 3, kind: input, shape index: {}]
  %s4 = inlined_call_operand.hbm [shape: f32[8,1024], index: 4, kind: input, shape index: {}]
  %s5 = inlined_call_operand.hbm [shape: bf16[512,1024], index: 5, kind: input, shape index: {}]
  %s6 = inlined_call_operand.hbm [shape: bf16[1024,896], index: 6, kind: input, shape index: {}]
  %s7 = inlined_call_operand.vmem [shape: f32[8,896], index: 7, kind: output, shape index: {}]
  %s8 = sld [smem:[#allocation0]]
  $region54: #{generator_forward.1} parent=0
    _
  %s10 = ssub.s32 1, %s8
  %s11 = scalar_select 0, %s10, %s8
  $region1: #{generator_forward.1} parent=0
    #allocation5 [shape = 'u8[32768]{0}', space=vmem, size = 0x8000, scoped, tag = 'input window, operand 1, single buffered']
    #allocation6 [shape = 's32[1]{0}', space=sflag, size = 0x4, scoped, tag = 'scoped memory for generator_forward.1']
    #allocation7 [shape = 'u8[65536]{0}', space=vmem, size = 0x10000, scoped, tag = 'input window, operand 2, single buffered']
    #allocation8 [shape = 's32[1]{0}', space=sflag, size = 0x4, scoped, tag = 'scoped memory for generator_forward.1']
    #allocation9 [shape = 'u8[262144]{0}', space=vmem, size = 0x40000, scoped, tag = 'input window, operand 3, single buffered']
    #allocation10 [shape = 'u8[32768]{0}', space=vmem, size = 0x8000, scoped, tag = 'input window, operand 4, single buffered']
    #allocation11 [shape = 's32[1]{0}', space=sflag, size = 0x4, scoped, tag = 'scoped memory for generator_forward.1']
    %12 = vsyncpa [#allocation6], 0
    %13 = vsyncpa [#allocation8], 0
    %14 = vsyncpa [#allocation11], 0
    // Predicated region
    $region2: #{generator_forward.1} parent=1 // pred_check
      _
    $region3: #{generator_forward.1} parent=1 // pred_check_branch
      %16 = sbr.rel (0) target = $region5
    $region4: #{generator_forward.1} parent=1 // pred_region
      _
    $region5: #{generator_forward.1} parent=1 // pred_fallthru
      _
    // Predicated region
    $region6: #{generator_forward.1} parent=1 // pred_check
      _
    $region7: #{generator_forward.1} parent=1 // pred_check_branch
      %18 = sbr.rel (0) target = $region9
    $region8: #{generator_forward.1} parent=1 // pred_region
      %s20 = ssub.s32 1024, 1024
      %21 = vsyncadd [#allocation6], %s20
      %s22 = sshll.u32 [#allocation5], 4
      %s23 = int_to_ptr.vmem [resolvable:$true] %s22
      %28 = dma.hbm_to_vmem [thread:$0]  %s1, 1024, %s23, [#allocation6], 64, 64, 4
    $region9: #{generator_forward.1} parent=1 // pred_fallthru
      _
    // Predicated region
    $region10: #{generator_forward.1} parent=1 // pred_check
      _
    $region11: #{generator_forward.1} parent=1 // pred_check_branch
      %30 = sbr.rel (0) target = $region13
    $region12: #{generator_forward.1} parent=1 // pred_region
      %s32 = ssub.s32 2048, 2048
      %33 = vsyncadd [#allocation8], %s32
      %s34 = sshll.u32 [#allocation7], 4
      %s35 = int_to_ptr.vmem [resolvable:$true] %s34
      %40 = dma.hbm_to_vmem [thread:$0]  %s2, 2048, %s35, [#allocation8], 128, 128, 8
    $region13: #{generator_forward.1} parent=1 // pred_fallthru
      _
    // Predicated region
    $region14: #{generator_forward.1} parent=1 // pred_check
      _
    $region15: #{generator_forward.1} parent=1 // pred_check_branch
      %42 = sbr.rel (0) target = $region17
    $region16: #{generator_forward.1} parent=1 // pred_region
      %s44 = ssub.s32 8192, 8192
      %45 = vsyncadd [#allocation8], %s44
      %s46 = sshll.u32 [#allocation9], 4
      %s47 = int_to_ptr.vmem [resolvable:$true] %s46
      %52 = dma.hbm_to_vmem [thread:$0]  %s3, 8192, %s47, [#allocation8], 256, 256, 16
    $region17: #{generator_forward.1} parent=1 // pred_fallthru
      _
    // Predicated region
    $region18: #{generator_forward.1} parent=1 // pred_check
      _
    $region19: #{generator_forward.1} parent=1 // pred_check_branch
      %54 = sbr.rel (0) target = $region21
    $region20: #{generator_forward.1} parent=1 // pred_region
      %s56 = ssub.s32 1024, 1024
      %57 = vsyncadd [#allocation11], %s56
      %s59 = sshll.u32 [#allocation10], 4
      %s60 = int_to_ptr.vmem [resolvable:$true] %s59
      %62 = dma.hbm_to_vmem [thread:$0]  %s4, 1024, %s60, [#allocation11]
    $region21: #{generator_forward.1} parent=1 // pred_fallthru
      _
    // Predicated region
    $region22: #{generator_forward.1} parent=1 // pred_check
      _
    $region23: #{generator_forward.1} parent=1 // pred_check_branch
      %64 = sbr.rel (0) target = $region25
    $region24: #{generator_forward.1} parent=1 // pred_region
      %65 = dma.done [#allocation6], 1024
    $region25: #{generator_forward.1} parent=1 // pred_fallthru
      _
    // Predicated region
    $region26: #{generator_forward.1} parent=1 // pred_check
      _
    $region27: #{generator_forward.1} parent=1 // pred_check_branch
      %67 = sbr.rel (0) target = $region29
    $region28: #{generator_forward.1} parent=1 // pred_region
      %68 = dma.done [#allocation8], 2048
    $region29: #{generator_forward.1} parent=1 // pred_fallthru
      _
    // Predicated region
    $region30: #{generator_forward.1} parent=1 // pred_check
      _
    $region31: #{generator_forward.1} parent=1 // pred_check_branch
      %70 = sbr.rel (0) target = $region33
    $region32: #{generator_forward.1} parent=1 // pred_region
      %71 = dma.done [#allocation8], 8192
    $region33: #{generator_forward.1} parent=1 // pred_fallthru
      _
    // Predicated region
    $region34: #{generator_forward.1} parent=1 // pred_check
      _
    $region35: #{generator_forward.1} parent=1 // pred_check_branch
      %73 = sbr.rel (0) target = $region37
    $region36: #{generator_forward.1} parent=1 // pred_region
      %74 = dma.done [#allocation11], 1024
    $region37: #{generator_forward.1} parent=1 // pred_fallthru
      _
    // Predicated region
    $region38: #{generator_forward.1} parent=1 // pred_check
      _
    $region39: #{generator_forward.1} parent=1 // pred_check_branch
      %77 = sbr.rel target = $region41
    $region40: #{generator_forward.1} parent=1 // pred_region
      %78 = sst [smem:[#allocation14]] [#allocation13]
      %79 = sst [smem:[#allocation15]] [#allocation12]
    $region41: #{generator_forward.1} parent=1 // pred_fallthru
      _
    %81 = shalt.err (0)
    %s83 = sshll.u32 [#allocation2], 4
    %s84 = int_to_ptr.vmem [resolvable:$true] %s83
    %86 = dma.hbm_to_vmem [thread:$0]  %s5, 32768, %s84, [#allocation4]
    %s87 = scalar_lea.sflag [#allocation4], 1
    // Predicated region
    $region42: #{generator_forward.1} parent=1 // pred_check
      _
    $region43: #{generator_forward.1} parent=1 // pred_check_branch
      %89 = sbr.rel target = $region45
    $region44: #{generator_forward.1} parent=1 // pred_region
      %90 = sst [smem:[#allocation14]] [#allocation17]
      %91 = sst [smem:[#allocation15]] [#allocation16]
    $region45: #{generator_forward.1} parent=1 // pred_fallthru
      _
    %93 = shalt.err (0)
    %s95 = sshll.u32 [#allocation3], 4
    %s96 = int_to_ptr.vmem [resolvable:$true] %s95
    %98 = dma.hbm_to_vmem [thread:$0]  %s6, 57344, %s96, %s87
    %v99 = vld [vmem:[%s0] sm:$0xf]
    %v100 = vld [vmem:[#allocation5] sm:$0xf]
    %v101 = vld [vmem:[#allocation5 + $0x4] sm:$0xf]
    %v102 = vld [vmem:[#allocation5 + $0x8] sm:$0xf]
    %v103 = vld [vmem:[#allocation5 + $0xc] sm:$0xf]
    %v104 = vld [vmem:[#allocation5 + $0x10] sm:$0xf]
    %v105 = vld [vmem:[#allocation5 + $0x14] sm:$0xf]
    %v106 = vld [vmem:[#allocation5 + $0x18] sm:$0xf]
    %v107 = vld [vmem:[#allocation5 + $0x1c] sm:$0xf]
    %v108 = vld [vmem:[#allocation5 + $0x20] sm:$0xf]
    %v109 = vld [vmem:[#allocation5 + $0x24] sm:$0xf]
    %v110 = vld [vmem:[#allocation5 + $0x28] sm:$0xf]
    %v111 = vld [vmem:[#allocation5 + $0x2c] sm:$0xf]
    %v112 = vld [vmem:[#allocation5 + $0x30] sm:$0xf]
    %v113 = vld [vmem:[#allocation5 + $0x34] sm:$0xf]
    %v114 = vld [vmem:[#allocation5 + $0x38] sm:$0xf]
    %v115 = vld [vmem:[#allocation5 + $0x3c] sm:$0xf]
    %v116 = vld [vmem:[#allocation10] ss:$0 sm:$0xff]
    %v133 = vunpack.c.l.b16 %v100
    %v134 = vunpack.c.l.b16 %v101
    %v135 = vunpack.c.l.b16 %v102
    %v136 = vunpack.c.l.b16 %v103
    %v137 = vunpack.c.l.b16 %v104
    %v138 = vunpack.c.l.b16 %v105
    %v139 = vunpack.c.l.b16 %v106
    %v140 = vunpack.c.l.b16 %v107
    %v141 = vunpack.c.l.b16 %v108
    %v142 = vunpack.c.l.b16 %v109
    %v143 = vunpack.c.l.b16 %v110
    %v144 = vunpack.c.l.b16 %v111
    %v145 = vunpack.c.l.b16 %v112
    %v146 = vunpack.c.l.b16 %v113
    %v147 = vunpack.c.l.b16 %v114
    %v148 = vunpack.c.l.b16 %v115
    %v149 = vpack.c.b16 %v134, %v133
    %v150 = vpack.c.b16 %v136, %v135
    %v151 = vpack.c.b16 %v138, %v137
    %v152 = vpack.c.b16 %v140, %v139
    %v153 = vpack.c.b16 %v142, %v141
    %v154 = vpack.c.b16 %v144, %v143
    %v155 = vpack.c.b16 %v146, %v145
    %v156 = vpack.c.b16 %v148, %v147
    %165 = vmatprep.subr.bf16.mxu0 0
    %166 = vmatpush1.bf16.msra.mxu0 %v156
    %167 = vmatprep.subr.bf16.mxu0 0
    %168 = vmatpush1.bf16.msra.mxu0 %v155
    %169 = vmatprep.subr.bf16.mxu0 0
    %170 = vmatpush1.bf16.msra.mxu0 %v154
    %171 = vmatprep.subr.bf16.mxu0 0
    %172 = vmatpush1.bf16.msra.mxu0 %v153
    %173 = vmatprep.subr.bf16.mxu0 0
    %174 = vmatpush1.bf16.msra.mxu0 %v152
    %175 = vmatprep.subr.bf16.mxu0 0
    %176 = vmatpush1.bf16.msra.mxu0 %v151
    %177 = vmatprep.subr.bf16.mxu0 0
    %178 = vmatpush1.bf16.msra.mxu0 %v150
    %179 = vmatprep.subr.bf16.mxu0 0
    %180 = vmatpush1.bf16.msra.mxu0 %v149
    %181 = vmatprep.subr.bf16.mxu0 0
    %182 = vmatpush2.bf16.msra.mxu0 0
    %183 = vmatprep.subr.bf16.mxu0 0
    %184 = vmatpush2.bf16.msra.mxu0 0
    %185 = vmatprep.subr.bf16.mxu0 0
    %186 = vmatpush2.bf16.msra.mxu0 0
    %187 = vmatprep.subr.bf16.mxu0 0
    %188 = vmatpush2.bf16.msra.mxu0 0
    %189 = vmatprep.subr.bf16.mxu0 0
    %190 = vmatpush2.bf16.msra.mxu0 0
    %191 = vmatprep.subr.bf16.mxu0 0
    %192 = vmatpush2.bf16.msra.mxu0 0
    %193 = vmatprep.subr.bf16.mxu0 0
    %194 = vmatpush2.bf16.msra.mxu0 0
    %195 = vmatprep.subr.bf16.mxu0 0
    %196 = vmatpush2.bf16.msra.mxu0 0
    %197 = vmatprep.mubr.bf16.mxu0 0
    %198 = vmatmul.mubr.bf16.gmra.mxu0 %v99
    %v199 = vpop.f32.mrf.mxu0
    %v200 = vadd.f32 %v116, %v199
    %v201 = vpop.f32.mrf.mxu0
    %v202 = vpop.f32.mrf.mxu0
    %v203 = vpop.f32.mrf.mxu0
    %204 = vdwg.mxu0
    %vm205 = vcmp.gt.f32.partialorder %v200, 0.0
    %v206 = vmul.f32 %v200, 0.2
    %v207 = vsel %vm205, %v200, %v206
    %v208 = vld [vmem:[#allocation7] sm:$0xff]
    %v209 = vld [vmem:[#allocation7 + $0x8] sm:$0xff]
    %v210 = vld [vmem:[#allocation7 + $0x10] sm:$0xff]
    %v211 = vld [vmem:[#allocation7 + $0x18] sm:$0xff]
    %v212 = vld [vmem:[#allocation7 + $0x20] sm:$0xff]
    %v213 = vld [vmem:[#allocation7 + $0x28] sm:$0xff]
    %v214 = vld [vmem:[#allocation7 + $0x30] sm:$0xff]
    %v215 = vld [vmem:[#allocation7 + $0x38] sm:$0xff]
    %v216 = vld [vmem:[#allocation7 + $0x40] sm:$0xff]
    %v217 = vld [vmem:[#allocation7 + $0x48] sm:$0xff]
    %v218 = vld [vmem:[#allocation7 + $0x50] sm:$0xff]
    %v219 = vld [vmem:[#allocation7 + $0x58] sm:$0xff]
    %v220 = vld [vmem:[#allocation7 + $0x60] sm:$0xff]
    %v221 = vld [vmem:[#allocation7 + $0x68] sm:$0xff]
    %v222 = vld [vmem:[#allocation7 + $0x70] sm:$0xff]
    %v223 = vld [vmem:[#allocation7 + $0x78] sm:$0xff]
    %s224 = scalar_lea.vmem [#allocation10], 1
    %v225 = vld [vmem:[%s224] ss:$8 sm:$0x3]
    %s226 = scalar_lea.vmem [#allocation10], 2
    %v227 = vld [vmem:[%s226] ss:$8 sm:$0x3]
    %v228 = vpack.c.bf16 %v207, %v207
    %v245 = vunpack.c.l.b16 %v208
    %v246 = vunpack.c.h.b16 %v208
    %v247 = vunpack.c.l.b16 %v209
    %v248 = vunpack.c.h.b16 %v209
    %v249 = vunpack.c.l.b16 %v210
    %v250 = vunpack.c.h.b16 %v210
    %v251 = vunpack.c.l.b16 %v211
    %v252 = vunpack.c.h.b16 %v211
    %v253 = vunpack.c.l.b16 %v212
    %v254 = vunpack.c.h.b16 %v212
    %v255 = vunpack.c.l.b16 %v213
    %v256 = vunpack.c.h.b16 %v213
    %v257 = vunpack.c.l.b16 %v214
    %v258 = vunpack.c.h.b16 %v214
    %v259 = vunpack.c.l.b16 %v215
    %v260 = vunpack.c.h.b16 %v215
    %v261 = vunpack.c.l.b16 %v216
    %v262 = vunpack.c.h.b16 %v216
    %v263 = vunpack.c.l.b16 %v217
    %v264 = vunpack.c.h.b16 %v217
    %v265 = vunpack.c.l.b16 %v218
    %v266 = vunpack.c.h.b16 %v218
    %v267 = vunpack.c.l.b16 %v219
    %v268 = vunpack.c.h.b16 %v219
    %v269 = vunpack.c.l.b16 %v220
    %v270 = vunpack.c.h.b16 %v220
    %v271 = vunpack.c.l.b16 %v221
    %v272 = vunpack.c.h.b16 %v221
    %v273 = vunpack.c.l.b16 %v222
    %v274 = vunpack.c.h.b16 %v222
    %v275 = vunpack.c.l.b16 %v223
    %v276 = vunpack.c.h.b16 %v223
    %v277 = vpack.c.b16 %v247, %v245
    %v278 = vpack.c.b16 %v248, %v246
    %v279 = vpack.c.b16 %v251, %v249
    %v280 = vpack.c.b16 %v252, %v250
    %v281 = vpack.c.b16 %v255, %v253
    %v282 = vpack.c.b16 %v256, %v254
    %v283 = vpack.c.b16 %v259, %v257
    %v284 = vpack.c.b16 %v260, %v258
    %v285 = vpack.c.b16 %v263, %v261
    %v286 = vpack.c.b16 %v264, %v262
    %v287 = vpack.c.b16 %v267, %v265
    %v288 = vpack.c.b16 %v268, %v266
    %v289 = vpack.c.b16 %v271, %v269
    %v290 = vpack.c.b16 %v272, %v270
    %v291 = vpack.c.b16 %v275, %v273
    %v292 = vpack.c.b16 %v276, %v274
    %309 = vmatprep.subr.bf16.mxu0 %v292
    %310 = vmatpush1.bf16.msra.mxu0 %v291
    %311 = vmatprep.subr.bf16.mxu0 %v290
    %312 = vmatpush1.bf16.msra.mxu0 %v289
    %313 = vmatprep.subr.bf16.mxu0 %v288
    %314 = vmatpush1.bf16.msra.mxu0 %v287
    %315 = vmatprep.subr.bf16.mxu0 %v286
    %316 = vmatpush1.bf16.msra.mxu0 %v285
    %317 = vmatprep.subr.bf16.mxu0 %v284
    %318 = vmatpush1.bf16.msra.mxu0 %v283
    %319 = vmatprep.subr.bf16.mxu0 %v282
    %320 = vmatpush1.bf16.msra.mxu0 %v281
    %321 = vmatprep.subr.bf16.mxu0 %v280
    %322 = vmatpush1.bf16.msra.mxu0 %v279
    %323 = vmatprep.subr.bf16.mxu0 %v278
    %324 = vmatpush1.bf16.msra.mxu0 %v277
    %325 = vmatprep.subr.bf16.mxu0 0
    %326 = vmatpush2.bf16.msra.mxu0 0
    %327 = vmatprep.subr.bf16.mxu0 0
    %328 = vmatpush2.bf16.msra.mxu0 0
    %329 = vmatprep.subr.bf16.mxu0 0
    %330 = vmatpush2.bf16.msra.mxu0 0
    %331 = vmatprep.subr.bf16.mxu0 0
    %332 = vmatpush2.bf16.msra.mxu0 0
    %333 = vmatprep.subr.bf16.mxu0 0
    %334 = vmatpush2.bf16.msra.mxu0 0
    %335 = vmatprep.subr.bf16.mxu0 0
    %336 = vmatpush2.bf16.msra.mxu0 0
    %337 = vmatprep.subr.bf16.mxu0 0
    %338 = vmatpush2.bf16.msra.mxu0 0
    %339 = vmatprep.subr.bf16.mxu0 0
    %340 = vmatpush2.bf16.msra.mxu0 0
    %341 = vmatprep.mubr.bf16.mxu0 0
    %342 = vmatmul.mubr.bf16.gmra.mxu0 %v228
    %v343 = vpop.f32.mrf.mxu0
    %v344 = vadd.f32 0.0, %v343
    %v345 = vpop.f32.mrf.mxu0
    %v346 = vadd.f32 0.0, %v345
    %v347 = vpop.f32.mrf.mxu0
    %v348 = vpop.f32.mrf.mxu0
    %349 = vdwg.mxu0
    %v350 = vrot.slane %v344, 4
    %v351 = vadd.f32 %v344, %v350
    %v352 = vrot.slane %v351, 2
    %v353 = vadd.f32 %v351, %v352
    %v354 = vrot.slane %v353, 1
    %v355 = vadd.f32 %v353, %v354
    %v356 = vrot.slane %v346, 4
    %v357 = vadd.f32 %v346, %v356
    %v358 = vrot.slane %v357, 2
    %v359 = vadd.f32 %v357, %v358
    %v360 = vrot.slane %v359, 1
    %v361 = vadd.f32 %v359, %v360
    %v362 = vrcp.pop 8.0
    %v363 = vmul.f32 %v355, %v362
    %v364 = vmul.f32 %v361, %v362
    %v365 = vmul.f32 %v344, %v344
    %v366 = vmul.f32 %v346, %v346
    %v367 = vrot.slane %v365, 4
    %v368 = vadd.f32 %v365, %v367
    %v369 = vrot.slane %v368, 2
    %v370 = vadd.f32 %v368, %v369
    %v371 = vrot.slane %v370, 1
    %v372 = vadd.f32 %v370, %v371
    %v373 = vrot.slane %v366, 4
    %v374 = vadd.f32 %v366, %v373
    %v375 = vrot.slane %v374, 2
    %v376 = vadd.f32 %v374, %v375
    %v377 = vrot.slane %v376, 1
    %v378 = vadd.f32 %v376, %v377
    %v379 = vmul.f32 %v372, %v362
    %v380 = vmul.f32 %v378, %v362
    %v381 = vmul.f32 %v363, %v363
    %v382 = vmul.f32 %v364, %v364
    %v383 = vsub.f32 %v379, %v381
    %v384 = vsub.f32 %v380, %v382
    %v385 = vmax.f32 %v383, 0.0
    %v386 = vmax.f32 %v384, 0.0
    %v387 = vadd.f32 %v385, 1e-05
    %v388 = vadd.f32 %v386, 1e-05
    %v389 = vrsqrt.pop %v387
    %v390 = vrsqrt.pop %v388
    %v393 = vcombine.low %v389, %v390
    %v395 = vunpack.c.l.s4 1966171168
    %v396 = vunpack.c.0.s8 %v395
    %v397 = vlaneseq
    %v398 = vshrl.u32 %v397, 7
    %v399 = vsub.s32 %v396, %v398
    %v400 = vrot.slane %v393, %v399
    %v402 = vunpack.c.l.s4 1966171168
    %v403 = vunpack.c.0.s8 %v402
    %v404 = vlaneseq
    %v405 = vshrl.u32 %v404, 7
    %v406 = vsub.s32 %v403, %v405
    %v407 = vrot.slane %v400, %v406
    %v409 = vmul.f32 %v225, %v407
    %v411 = vlaneseq
    %v412 = vshrl.u32 %v411, 7
    %v413 = vsub.s32 0, %v412
    %v414 = vrot.slane %v409, %v413
    %v415 = vlaneseq
    %v416 = vshrl.u32 %v415, 7
    %v417 = vsub.s32 1, %v416
    %v418 = vrot.slane %v409, %v417
    %v421 = vmul.f32 %v363, %v414
    %v422 = vmul.f32 %v364, %v418
    %v425 = vcombine.low %v421, %v422
    %v427 = vunpack.c.l.s4 1966171168
    %v428 = vunpack.c.0.s8 %v427
    %v429 = vlaneseq
    %v430 = vshrl.u32 %v429, 7
    %v431 = vsub.s32 %v428, %v430
    %v432 = vrot.slane %v425, %v431
    %v434 = vunpack.c.l.s4 1966171168
    %v435 = vunpack.c.0.s8 %v434
    %v436 = vlaneseq
    %v437 = vshrl.u32 %v436, 7
    %v438 = vsub.s32 %v435, %v437
    %v439 = vrot.slane %v432, %v438
    %v441 = vsub.f32 %v227, %v439
    %v442 = vmul.f32 %v344, %v414
    %v443 = vmul.f32 %v346, %v418
    %v445 = vlaneseq
    %v446 = vshrl.u32 %v445, 7
    %v447 = vsub.s32 0, %v446
    %v448 = vrot.slane %v441, %v447
    %v449 = vlaneseq
    %v450 = vshrl.u32 %v449, 7
    %v451 = vsub.s32 1, %v450
    %v452 = vrot.slane %v441, %v451
    %v455 = vadd.f32 %v442, %v448
    %v456 = vadd.f32 %v443, %v452
    %vm457 = vcmp.gt.f32.partialorder %v455, 0.0
    %vm458 = vcmp.gt.f32.partialorder %v456, 0.0
    %v459 = vmul.f32 %v455, 0.2
    %v460 = vmul.f32 %v456, 0.2
    %v461 = vsel %vm457, %v455, %v459
    %v462 = vsel %vm458, %v456, %v460
    %v463 = vld [vmem:[#allocation9] sm:$0xff]
    %v464 = vld [vmem:[#allocation9 + $0x8] sm:$0xff]
    %v465 = vld [vmem:[#allocation9 + $0x10] sm:$0xff]
    %v466 = vld [vmem:[#allocation9 + $0x18] sm:$0xff]
    %v467 = vld [vmem:[#allocation9 + $0x20] sm:$0xff]
    %v468 = vld [vmem:[#allocation9 + $0x28] sm:$0xff]
    %v469 = vld [vmem:[#allocation9 + $0x30] sm:$0xff]
    %v470 = vld [vmem:[#allocation9 + $0x38] sm:$0xff]
    %v471 = vld [vmem:[#allocation9 + $0x40] sm:$0xff]
    %v472 = vld [vmem:[#allocation9 + $0x48] sm:$0xff]
    %v473 = vld [vmem:[#allocation9 + $0x50] sm:$0xff]
    %v474 = vld [vmem:[#allocation9 + $0x58] sm:$0xff]
    %v475 = vld [vmem:[#allocation9 + $0x60] sm:$0xff]
    %v476 = vld [vmem:[#allocation9 + $0x68] sm:$0xff]
    %v477 = vld [vmem:[#allocation9 + $0x70] sm:$0xff]
    %v478 = vld [vmem:[#allocation9 + $0x78] sm:$0xff]
    %v479 = vld [vmem:[#allocation9 + $0x80] sm:$0xff]
    %v480 = vld [vmem:[#allocation9 + $0x88] sm:$0xff]
    %v481 = vld [vmem:[#allocation9 + $0x90] sm:$0xff]
    %v482 = vld [vmem:[#allocation9 + $0x98] sm:$0xff]
    %v483 = vld [vmem:[#allocation9 + $0xa0] sm:$0xff]
    %v484 = vld [vmem:[#allocation9 + $0xa8] sm:$0xff]
    %v485 = vld [vmem:[#allocation9 + $0xb0] sm:$0xff]
    %v486 = vld [vmem:[#allocation9 + $0xb8] sm:$0xff]
    %v487 = vld [vmem:[#allocation9 + $0xc0] sm:$0xff]
    %v488 = vld [vmem:[#allocation9 + $0xc8] sm:$0xff]
    %v489 = vld [vmem:[#allocation9 + $0xd0] sm:$0xff]
    %v490 = vld [vmem:[#allocation9 + $0xd8] sm:$0xff]
    %v491 = vld [vmem:[#allocation9 + $0xe0] sm:$0xff]
    %v492 = vld [vmem:[#allocation9 + $0xe8] sm:$0xff]
    %v493 = vld [vmem:[#allocation9 + $0xf0] sm:$0xff]
    %v494 = vld [vmem:[#allocation9 + $0xf8] sm:$0xff]
    %v495 = vld [vmem:[#allocation9 + $0x100] sm:$0xff]
    %v496 = vld [vmem:[#allocation9 + $0x108] sm:$0xff]
    %v497 = vld [vmem:[#allocation9 + $0x110] sm:$0xff]
    %v498 = vld [vmem:[#allocation9 + $0x118] sm:$0xff]
    %v499 = vld [vmem:[#allocation9 + $0x120] sm:$0xff]
    %v500 = vld [vmem:[#allocation9 + $0x128] sm:$0xff]
    %v501 = vld [vmem:[#allocation9 + $0x130] sm:$0xff]
    %v502 = vld [vmem:[#allocation9 + $0x138] sm:$0xff]
    %v503 = vld [vmem:[#allocation9 + $0x140] sm:$0xff]
    %v504 = vld [vmem:[#allocation9 + $0x148] sm:$0xff]
    %v505 = vld [vmem:[#allocation9 + $0x150] sm:$0xff]
    %v506 = vld [vmem:[#allocation9 + $0x158] sm:$0xff]
    %v507 = vld [vmem:[#allocation9 + $0x160] sm:$0xff]
    %v508 = vld [vmem:[#allocation9 + $0x168] sm:$0xff]
    %v509 = vld [vmem:[#allocation9 + $0x170] sm:$0xff]
    %v510 = vld [vmem:[#allocation9 + $0x178] sm:$0xff]
    %v511 = vld [vmem:[#allocation9 + $0x180] sm:$0xff]
    %v512 = vld [vmem:[#allocation9 + $0x188] sm:$0xff]
    %v513 = vld [vmem:[#allocation9 + $0x190] sm:$0xff]
    %v514 = vld [vmem:[#allocation9 + $0x198] sm:$0xff]
    %v515 = vld [vmem:[#allocation9 + $0x1a0] sm:$0xff]
    %v516 = vld [vmem:[#allocation9 + $0x1a8] sm:$0xff]
    %v517 = vld [vmem:[#allocation9 + $0x1b0] sm:$0xff]
    %v518 = vld [vmem:[#allocation9 + $0x1b8] sm:$0xff]
    %v519 = vld [vmem:[#allocation9 + $0x1c0] sm:$0xff]
    %v520 = vld [vmem:[#allocation9 + $0x1c8] sm:$0xff]
    %v521 = vld [vmem:[#allocation9 + $0x1d0] sm:$0xff]
    %v522 = vld [vmem:[#allocation9 + $0x1d8] sm:$0xff]
    %v523 = vld [vmem:[#allocation9 + $0x1e0] sm:$0xff]
    %v524 = vld [vmem:[#allocation9 + $0x1e8] sm:$0xff]
    %v525 = vld [vmem:[#allocation9 + $0x1f0] sm:$0xff]
    %v526 = vld [vmem:[#allocation9 + $0x1f8] sm:$0xff]
    %s527 = scalar_lea.vmem [#allocation10], 3
    %v528 = vld [vmem:[%s527] ss:$8 sm:$0xf]
    %s529 = scalar_lea.vmem [#allocation10], 4
    %v530 = vld [vmem:[%s529] ss:$8 sm:$0xf]
    %v531 = vpack.c.bf16 %v461, %v461
    %v532 = vpack.c.bf16 %v462, %v462
    %v597 = vunpack.c.l.b16 %v463
    %v598 = vunpack.c.h.b16 %v463
    %v599 = vunpack.c.l.b16 %v464
    %v600 = vunpack.c.h.b16 %v464
    %v601 = vunpack.c.l.b16 %v465
    %v602 = vunpack.c.h.b16 %v465
    %v603 = vunpack.c.l.b16 %v466
    %v604 = vunpack.c.h.b16 %v466
    %v605 = vunpack.c.l.b16 %v467
    %v606 = vunpack.c.h.b16 %v467
    %v607 = vunpack.c.l.b16 %v468
    %v608 = vunpack.c.h.b16 %v468
    %v609 = vunpack.c.l.b16 %v469
    %v610 = vunpack.c.h.b16 %v469
    %v611 = vunpack.c.l.b16 %v470
    %v612 = vunpack.c.h.b16 %v470
    %v613 = vunpack.c.l.b16 %v471
    %v614 = vunpack.c.h.b16 %v471
    %v615 = vunpack.c.l.b16 %v472
    %v616 = vunpack.c.h.b16 %v472
    %v617 = vunpack.c.l.b16 %v473
    %v618 = vunpack.c.h.b16 %v473
    %v619 = vunpack.c.l.b16 %v474
    %v620 = vunpack.c.h.b16 %v474
    %v621 = vunpack.c.l.b16 %v475
    %v622 = vunpack.c.h.b16 %v475
    %v623 = vunpack.c.l.b16 %v476
    %v624 = vunpack.c.h.b16 %v476
    %v625 = vunpack.c.l.b16 %v477
    %v626 = vunpack.c.h.b16 %v477
    %v627 = vunpack.c.l.b16 %v478
    %v628 = vunpack.c.h.b16 %v478
    %v629 = vunpack.c.l.b16 %v479
    %v630 = vunpack.c.h.b16 %v479
    %v631 = vunpack.c.l.b16 %v480
    %v632 = vunpack.c.h.b16 %v480
    %v633 = vunpack.c.l.b16 %v481
    %v634 = vunpack.c.h.b16 %v481
    %v635 = vunpack.c.l.b16 %v482
    %v636 = vunpack.c.h.b16 %v482
    %v637 = vunpack.c.l.b16 %v483
    %v638 = vunpack.c.h.b16 %v483
    %v639 = vunpack.c.l.b16 %v484
    %v640 = vunpack.c.h.b16 %v484
    %v641 = vunpack.c.l.b16 %v485
    %v642 = vunpack.c.h.b16 %v485
    %v643 = vunpack.c.l.b16 %v486
    %v644 = vunpack.c.h.b16 %v486
    %v645 = vunpack.c.l.b16 %v487
    %v646 = vunpack.c.h.b16 %v487
    %v647 = vunpack.c.l.b16 %v488
    %v648 = vunpack.c.h.b16 %v488
    %v649 = vunpack.c.l.b16 %v489
    %v650 = vunpack.c.h.b16 %v489
    %v651 = vunpack.c.l.b16 %v490
    %v652 = vunpack.c.h.b16 %v490
    %v653 = vunpack.c.l.b16 %v491
    %v654 = vunpack.c.h.b16 %v491
    %v655 = vunpack.c.l.b16 %v492
    %v656 = vunpack.c.h.b16 %v492
    %v657 = vunpack.c.l.b16 %v493
    %v658 = vunpack.c.h.b16 %v493
    %v659 = vunpack.c.l.b16 %v494
    %v660 = vunpack.c.h.b16 %v494
    %v661 = vunpack.c.l.b16 %v495
    %v662 = vunpack.c.h.b16 %v495
    %v663 = vunpack.c.l.b16 %v496
    %v664 = vunpack.c.h.b16 %v496
    %v665 = vunpack.c.l.b16 %v497
    %v666 = vunpack.c.h.b16 %v497
    %v667 = vunpack.c.l.b16 %v498
    %v668 = vunpack.c.h.b16 %v498
    %v669 = vunpack.c.l.b16 %v499
    %v670 = vunpack.c.h.b16 %v499
    %v671 = vunpack.c.l.b16 %v500
    %v672 = vunpack.c.h.b16 %v500
    %v673 = vunpack.c.l.b16 %v501
    %v674 = vunpack.c.h.b16 %v501
    %v675 = vunpack.c.l.b16 %v502
    %v676 = vunpack.c.h.b16 %v502
    %v677 = vunpack.c.l.b16 %v503
    %v678 = vunpack.c.h.b16 %v503
    %v679 = vunpack.c.l.b16 %v504
    %v680 = vunpack.c.h.b16 %v504
    %v681 = vunpack.c.l.b16 %v505
    %v682 = vunpack.c.h.b16 %v505
    %v683 = vunpack.c.l.b16 %v506
    %v684 = vunpack.c.h.b16 %v506
    %v685 = vunpack.c.l.b16 %v507
    %v686 = vunpack.c.h.b16 %v507
    %v687 = vunpack.c.l.b16 %v508
    %v688 = vunpack.c.h.b16 %v508
    %v689 = vunpack.c.l.b16 %v509
    %v690 = vunpack.c.h.b16 %v509
    %v691 = vunpack.c.l.b16 %v510
    %v692 = vunpack.c.h.b16 %v510
    %v693 = vunpack.c.l.b16 %v511
    %v694 = vunpack.c.h.b16 %v511
    %v695 = vunpack.c.l.b16 %v512
    %v696 = vunpack.c.h.b16 %v512
    %v697 = vunpack.c.l.b16 %v513
    %v698 = vunpack.c.h.b16 %v513
    %v699 = vunpack.c.l.b16 %v514
    %v700 = vunpack.c.h.b16 %v514
    %v701 = vunpack.c.l.b16 %v515
    %v702 = vunpack.c.h.b16 %v515
    %v703 = vunpack.c.l.b16 %v516
    %v704 = vunpack.c.h.b16 %v516
    %v705 = vunpack.c.l.b16 %v517
    %v706 = vunpack.c.h.b16 %v517
    %v707 = vunpack.c.l.b16 %v518
    %v708 = vunpack.c.h.b16 %v518
    %v709 = vunpack.c.l.b16 %v519
    %v710 = vunpack.c.h.b16 %v519
    %v711 = vunpack.c.l.b16 %v520
    %v712 = vunpack.c.h.b16 %v520
    %v713 = vunpack.c.l.b16 %v521
    %v714 = vunpack.c.h.b16 %v521
    %v715 = vunpack.c.l.b16 %v522
    %v716 = vunpack.c.h.b16 %v522
    %v717 = vunpack.c.l.b16 %v523
    %v718 = vunpack.c.h.b16 %v523
    %v719 = vunpack.c.l.b16 %v524
    %v720 = vunpack.c.h.b16 %v524
    %v721 = vunpack.c.l.b16 %v525
    %v722 = vunpack.c.h.b16 %v525
    %v723 = vunpack.c.l.b16 %v526
    %v724 = vunpack.c.h.b16 %v526
    %v725 = vpack.c.b16 %v601, %v597
    %v726 = vpack.c.b16 %v602, %v598
    %v727 = vpack.c.b16 %v603, %v599
    %v728 = vpack.c.b16 %v604, %v600
    %v729 = vpack.c.b16 %v609, %v605
    %v730 = vpack.c.b16 %v610, %v606
    %v731 = vpack.c.b16 %v611, %v607
    %v732 = vpack.c.b16 %v612, %v608
    %v733 = vpack.c.b16 %v617, %v613
    %v734 = vpack.c.b16 %v618, %v614
    %v735 = vpack.c.b16 %v619, %v615
    %v736 = vpack.c.b16 %v620, %v616
    %v737 = vpack.c.b16 %v625, %v621
    %v738 = vpack.c.b16 %v626, %v622
    %v739 = vpack.c.b16 %v627, %v623
    %v740 = vpack.c.b16 %v628, %v624
    %v741 = vpack.c.b16 %v633, %v629
    %v742 = vpack.c.b16 %v634, %v630
    %v743 = vpack.c.b16 %v635, %v631
    %v744 = vpack.c.b16 %v636, %v632
    %v745 = vpack.c.b16 %v641, %v637
    %v746 = vpack.c.b16 %v642, %v638
    %v747 = vpack.c.b16 %v643, %v639
    %v748 = vpack.c.b16 %v644, %v640
    %v749 = vpack.c.b16 %v649, %v645
    %v750 = vpack.c.b16 %v650, %v646
    %v751 = vpack.c.b16 %v651, %v647
    %v752 = vpack.c.b16 %v652, %v648
    %v753 = vpack.c.b16 %v657, %v653
    %v754 = vpack.c.b16 %v658, %v654
    %v755 = vpack.c.b16 %v659, %v655
    %v756 = vpack.c.b16 %v660, %v656
    %v757 = vpack.c.b16 %v665, %v661
    %v758 = vpack.c.b16 %v666, %v662
    %v759 = vpack.c.b16 %v667, %v663
    %v760 = vpack.c.b16 %v668, %v664
    %v761 = vpack.c.b16 %v673, %v669
    %v762 = vpack.c.b16 %v674, %v670
    %v763 = vpack.c.b16 %v675, %v671
    %v764 = vpack.c.b16 %v676, %v672
    %v765 = vpack.c.b16 %v681, %v677
    %v766 = vpack.c.b16 %v682, %v678
    %v767 = vpack.c.b16 %v683, %v679
    %v768 = vpack.c.b16 %v684, %v680
    %v769 = vpack.c.b16 %v689, %v685
    %v770 = vpack.c.b16 %v690, %v686
    %v771 = vpack.c.b16 %v691, %v687
    %v772 = vpack.c.b16 %v692, %v688
    %v773 = vpack.c.b16 %v697, %v693
    %v774 = vpack.c.b16 %v698, %v694
    %v775 = vpack.c.b16 %v699, %v695
    %v776 = vpack.c.b16 %v700, %v696
    %v777 = vpack.c.b16 %v705, %v701
    %v778 = vpack.c.b16 %v706, %v702
    %v779 = vpack.c.b16 %v707, %v703
    %v780 = vpack.c.b16 %v708, %v704
    %v781 = vpack.c.b16 %v713, %v709
    %v782 = vpack.c.b16 %v714, %v710
    %v783 = vpack.c.b16 %v715, %v711
    %v784 = vpack.c.b16 %v716, %v712
    %v785 = vpack.c.b16 %v721, %v717
    %v786 = vpack.c.b16 %v722, %v718
    %v787 = vpack.c.b16 %v723, %v719
    %v788 = vpack.c.b16 %v724, %v720
    %853 = vmatprep.subr.bf16.mxu0 %v754
    %854 = vmatpush1.bf16.msra.mxu0 %v753
    %855 = vmatprep.subr.bf16.mxu0 %v750
    %856 = vmatpush1.bf16.msra.mxu0 %v749
    %857 = vmatprep.subr.bf16.mxu0 %v746
    %858 = vmatpush1.bf16.msra.mxu0 %v745
    %859 = vmatprep.subr.bf16.mxu0 %v742
    %860 = vmatpush1.bf16.msra.mxu0 %v741
    %861 = vmatprep.subr.bf16.mxu0 %v738
    %862 = vmatpush1.bf16.msra.mxu0 %v737
    %863 = vmatprep.subr.bf16.mxu0 %v734
    %864 = vmatpush1.bf16.msra.mxu0 %v733
    %865 = vmatprep.subr.bf16.mxu0 %v730
    %866 = vmatpush1.bf16.msra.mxu0 %v729
    %867 = vmatprep.subr.bf16.mxu0 %v726
    %868 = vmatpush1.bf16.msra.mxu0 %v725
    %869 = vmatprep.subr.bf16.mxu0 %v786
    %870 = vmatpush2.bf16.msra.mxu0 %v785
    %871 = vmatprep.subr.bf16.mxu0 %v782
    %872 = vmatpush2.bf16.msra.mxu0 %v781
    %873 = vmatprep.subr.bf16.mxu0 %v778
    %874 = vmatpush2.bf16.msra.mxu0 %v777
    %875 = vmatprep.subr.bf16.mxu0 %v774
    %876 = vmatpush2.bf16.msra.mxu0 %v773
    %877 = vmatprep.subr.bf16.mxu0 %v770
    %878 = vmatpush2.bf16.msra.mxu0 %v769
    %879 = vmatprep.subr.bf16.mxu0 %v766
    %880 = vmatpush2.bf16.msra.mxu0 %v765
    %881 = vmatprep.subr.bf16.mxu0 %v762
    %882 = vmatpush2.bf16.msra.mxu0 %v761
    %883 = vmatprep.subr.bf16.mxu0 %v758
    %884 = vmatpush2.bf16.msra.mxu0 %v757
    %885 = vmatprep.mubr.bf16.mxu0 %v532
    %886 = vmatmul.mubr.bf16.gmra.mxu0 %v531
    %v887 = vpop.f32.mrf.mxu0
    %v888 = vadd.f32 0.0, %v887
    %v889 = vpop.f32.mrf.mxu0
    %v890 = vadd.f32 0.0, %v889
    %v891 = vpop.f32.mrf.mxu0
    %v892 = vpop.f32.mrf.mxu0
    %893 = vdwg.mxu0
    %894 = vmatprep.subr.bf16.mxu0 %v756
    %895 = vmatpush1.bf16.msra.mxu0 %v755
    %896 = vmatprep.subr.bf16.mxu0 %v752
    %897 = vmatpush1.bf16.msra.mxu0 %v751
    %898 = vmatprep.subr.bf16.mxu0 %v748
    %899 = vmatpush1.bf16.msra.mxu0 %v747
    %900 = vmatprep.subr.bf16.mxu0 %v744
    %901 = vmatpush1.bf16.msra.mxu0 %v743
    %902 = vmatprep.subr.bf16.mxu0 %v740
    %903 = vmatpush1.bf16.msra.mxu0 %v739
    %904 = vmatprep.subr.bf16.mxu0 %v736
    %905 = vmatpush1.bf16.msra.mxu0 %v735
    %906 = vmatprep.subr.bf16.mxu0 %v732
    %907 = vmatpush1.bf16.msra.mxu0 %v731
    %908 = vmatprep.subr.bf16.mxu0 %v728
    %909 = vmatpush1.bf16.msra.mxu0 %v727
    %910 = vmatprep.subr.bf16.mxu0 %v788
    %911 = vmatpush2.bf16.msra.mxu0 %v787
    %912 = vmatprep.subr.bf16.mxu0 %v784
    %913 = vmatpush2.bf16.msra.mxu0 %v783
    %914 = vmatprep.subr.bf16.mxu0 %v780
    %915 = vmatpush2.bf16.msra.mxu0 %v779
    %916 = vmatprep.subr.bf16.mxu0 %v776
    %917 = vmatpush2.bf16.msra.mxu0 %v775
    %918 = vmatprep.subr.bf16.mxu0 %v772
    %919 = vmatpush2.bf16.msra.mxu0 %v771
    %920 = vmatprep.subr.bf16.mxu0 %v768
    %921 = vmatpush2.bf16.msra.mxu0 %v767
    %922 = vmatprep.subr.bf16.mxu0 %v764
    %923 = vmatpush2.bf16.msra.mxu0 %v763
    %924 = vmatprep.subr.bf16.mxu0 %v760
    %925 = vmatpush2.bf16.msra.mxu0 %v759
    %926 = vmatprep.mubr.bf16.mxu0 %v532
    %927 = vmatmul.mubr.bf16.gmra.mxu0 %v531
    %v928 = vpop.f32.mrf.mxu0
    %v929 = vadd.f32 0.0, %v928
    %v930 = vpop.f32.mrf.mxu0
    %v931 = vadd.f32 0.0, %v930
    %v932 = vpop.f32.mrf.mxu0
    %v933 = vpop.f32.mrf.mxu0
    %934 = vdwg.mxu0
    %v935 = vrot.slane %v888, 4
    %v936 = vadd.f32 %v888, %v935
    %v937 = vrot.slane %v936, 2
    %v938 = vadd.f32 %v936, %v937
    %v939 = vrot.slane %v938, 1
    %v940 = vadd.f32 %v938, %v939
    %v941 = vrot.slane %v890, 4
    %v942 = vadd.f32 %v890, %v941
    %v943 = vrot.slane %v942, 2
    %v944 = vadd.f32 %v942, %v943
    %v945 = vrot.slane %v944, 1
    %v946 = vadd.f32 %v944, %v945
    %v947 = vrot.slane %v929, 4
    %v948 = vadd.f32 %v929, %v947
    %v949 = vrot.slane %v948, 2
    %v950 = vadd.f32 %v948, %v949
    %v951 = vrot.slane %v950, 1
    %v952 = vadd.f32 %v950, %v951
    %v953 = vrot.slane %v931, 4
    %v954 = vadd.f32 %v931, %v953
    %v955 = vrot.slane %v954, 2
    %v956 = vadd.f32 %v954, %v955
    %v957 = vrot.slane %v956, 1
    %v958 = vadd.f32 %v956, %v957
    %v959 = vmul.f32 %v940, %v362
    %v960 = vmul.f32 %v946, %v362
    %v961 = vmul.f32 %v952, %v362
    %v962 = vmul.f32 %v958, %v362
    %v963 = vmul.f32 %v888, %v888
    %v964 = vmul.f32 %v890, %v890
    %v965 = vmul.f32 %v929, %v929
    %v966 = vmul.f32 %v931, %v931
    %v967 = vrot.slane %v963, 4
    %v968 = vadd.f32 %v963, %v967
    %v969 = vrot.slane %v968, 2
    %v970 = vadd.f32 %v968, %v969
    %v971 = vrot.slane %v970, 1
    %v972 = vadd.f32 %v970, %v971
    %v973 = vrot.slane %v964, 4
    %v974 = vadd.f32 %v964, %v973
    %v975 = vrot.slane %v974, 2
    %v976 = vadd.f32 %v974, %v975
    %v977 = vrot.slane %v976, 1
    %v978 = vadd.f32 %v976, %v977
    %v979 = vrot.slane %v965, 4
    %v980 = vadd.f32 %v965, %v979
    %v981 = vrot.slane %v980, 2
    %v982 = vadd.f32 %v980, %v981
    %v983 = vrot.slane %v982, 1
    %v984 = vadd.f32 %v982, %v983
    %v985 = vrot.slane %v966, 4
    %v986 = vadd.f32 %v966, %v985
    %v987 = vrot.slane %v986, 2
    %v988 = vadd.f32 %v986, %v987
    %v989 = vrot.slane %v988, 1
    %v990 = vadd.f32 %v988, %v989
    %v991 = vmul.f32 %v972, %v362
    %v992 = vmul.f32 %v978, %v362
    %v993 = vmul.f32 %v984, %v362
    %v994 = vmul.f32 %v990, %v362
    %v995 = vmul.f32 %v959, %v959
    %v996 = vmul.f32 %v960, %v960
    %v997 = vmul.f32 %v961, %v961
    %v998 = vmul.f32 %v962, %v962
    %v999 = vsub.f32 %v991, %v995
    %v1000 = vsub.f32 %v992, %v996
    %v1001 = vsub.f32 %v993, %v997
    %v1002 = vsub.f32 %v994, %v998
    %v1003 = vmax.f32 %v999, 0.0
    %v1004 = vmax.f32 %v1000, 0.0
    %v1005 = vmax.f32 %v1001, 0.0
    %v1006 = vmax.f32 %v1002, 0.0
    %v1007 = vadd.f32 %v1003, 1e-05
    %v1008 = vadd.f32 %v1004, 1e-05
    %v1009 = vadd.f32 %v1005, 1e-05
    %v1010 = vadd.f32 %v1006, 1e-05
    %v1011 = vrsqrt.pop %v1007
    %v1012 = vrsqrt.pop %v1008
    %v1013 = vrsqrt.pop %v1009
    %v1014 = vrsqrt.pop %v1010
    %v1019 = vcombine.low %v1011, %v1012
    %v1020 = vcombine.low %v1013, %v1014
    %v1022 = vunpack.c.l.s4 1966171168
    %v1023 = vunpack.c.0.s8 %v1022
    %v1024 = vlaneseq
    %v1025 = vshrl.u32 %v1024, 7
    %v1026 = vsub.s32 %v1023, %v1025
    %v1027 = vrot.slane %v1019, %v1026
    %v1029 = vunpack.c.l.s4 1966171168
    %v1030 = vunpack.c.0.s8 %v1029
    %v1031 = vlaneseq
    %v1032 = vshrl.u32 %v1031, 7
    %v1033 = vsub.s32 %v1030, %v1032
    %v1034 = vrot.slane %v1020, %v1033
    %v1035 = vcombine.low %v1027, %v1034
    %v1037 = vunpack.c.l.s4 1966171168
    %v1038 = vunpack.c.0.s8 %v1037
    %v1039 = vlaneseq
    %v1040 = vshrl.u32 %v1039, 7
    %v1041 = vsub.s32 %v1038, %v1040
    %v1042 = vrot.slane %v1035, %v1041
    %v1044 = vmul.f32 %v528, %v1042
    %v1046 = vlaneseq
    %v1047 = vshrl.u32 %v1046, 7
    %v1048 = vsub.s32 0, %v1047
    %v1049 = vrot.slane %v1044, %v1048
    %v1050 = vlaneseq
    %v1051 = vshrl.u32 %v1050, 7
    %v1052 = vsub.s32 1, %v1051
    %v1053 = vrot.slane %v1044, %v1052
    %v1054 = vlaneseq
    %v1055 = vshrl.u32 %v1054, 7
    %v1056 = vsub.s32 2, %v1055
    %v1057 = vrot.slane %v1044, %v1056
    %v1058 = vlaneseq
    %v1059 = vshrl.u32 %v1058, 7
    %v1060 = vsub.s32 3, %v1059
    %v1061 = vrot.slane %v1044, %v1060
    %v1066 = vmul.f32 %v959, %v1049
    %v1067 = vmul.f32 %v960, %v1053
    %v1068 = vmul.f32 %v961, %v1057
    %v1069 = vmul.f32 %v962, %v1061
    %v1074 = vcombine.low %v1066, %v1067
    %v1075 = vcombine.low %v1068, %v1069
    %v1077 = vunpack.c.l.s4 1966171168
    %v1078 = vunpack.c.0.s8 %v1077
    %v1079 = vlaneseq
    %v1080 = vshrl.u32 %v1079, 7
    %v1081 = vsub.s32 %v1078, %v1080
    %v1082 = vrot.slane %v1074, %v1081
    %v1084 = vunpack.c.l.s4 1966171168
    %v1085 = vunpack.c.0.s8 %v1084
    %v1086 = vlaneseq
    %v1087 = vshrl.u32 %v1086, 7
    %v1088 = vsub.s32 %v1085, %v1087
    %v1089 = vrot.slane %v1075, %v1088
    %v1090 = vcombine.low %v1082, %v1089
    %v1092 = vunpack.c.l.s4 1966171168
    %v1093 = vunpack.c.0.s8 %v1092
    %v1094 = vlaneseq
    %v1095 = vshrl.u32 %v1094, 7
    %v1096 = vsub.s32 %v1093, %v1095
    %v1097 = vrot.slane %v1090, %v1096
    %v1099 = vsub.f32 %v530, %v1097
    %v1100 = vmul.f32 %v888, %v1049
    %v1101 = vmul.f32 %v890, %v1053
    %v1102 = vmul.f32 %v929, %v1057
    %v1103 = vmul.f32 %v931, %v1061
    %v1105 = vlaneseq
    %v1106 = vshrl.u32 %v1105, 7
    %v1107 = vsub.s32 0, %v1106
    %v1108 = vrot.slane %v1099, %v1107
    %v1109 = vlaneseq
    %v1110 = vshrl.u32 %v1109, 7
    %v1111 = vsub.s32 1, %v1110
    %v1112 = vrot.slane %v1099, %v1111
    %v1113 = vlaneseq
    %v1114 = vshrl.u32 %v1113, 7
    %v1115 = vsub.s32 2, %v1114
    %v1116 = vrot.slane %v1099, %v1115
    %v1117 = vlaneseq
    %v1118 = vshrl.u32 %v1117, 7
    %v1119 = vsub.s32 3, %v1118
    %v1120 = vrot.slane %v1099, %v1119
    %v1125 = vadd.f32 %v1100, %v1108
    %v1126 = vadd.f32 %v1101, %v1112
    %v1127 = vadd.f32 %v1102, %v1116
    %v1128 = vadd.f32 %v1103, %v1120
    %vm1129 = vcmp.gt.f32.partialorder %v1125, 0.0
    %vm1130 = vcmp.gt.f32.partialorder %v1126, 0.0
    %vm1131 = vcmp.gt.f32.partialorder %v1127, 0.0
    %vm1132 = vcmp.gt.f32.partialorder %v1128, 0.0
    %v1133 = vmul.f32 %v1125, 0.2
    %v1134 = vmul.f32 %v1126, 0.2
    %v1135 = vmul.f32 %v1127, 0.2
    %v1136 = vmul.f32 %v1128, 0.2
    %v1137 = vsel %vm1129, %v1125, %v1133
    %v1138 = vsel %vm1130, %v1126, %v1134
    %v1139 = vsel %vm1131, %v1127, %v1135
    %v1140 = vsel %vm1132, %v1128, %v1136
    %s1141 = smul.u32 4, 64
    %s1142 = smul.u32 %s1141, 8
    %s1143 = sshll.u32 %s1142, 4
    %1144 = dma.done [#allocation4], %s1143
    %v1145 = vld [vmem:[#allocation2] sm:$0xff]
    %v1146 = vld [vmem:[#allocation2 + $0x8] sm:$0xff]
    %v1147 = vld [vmem:[#allocation2 + $0x10] sm:$0xff]
    %v1148 = vld [vmem:[#allocation2 + $0x18] sm:$0xff]
    %v1149 = vld [vmem:[#allocation2 + $0x20] sm:$0xff]
    %v1150 = vld [vmem:[#allocation2 + $0x28] sm:$0xff]
    %v1151 = vld [vmem:[#allocation2 + $0x30] sm:$0xff]
    %v1152 = vld [vmem:[#allocation2 + $0x38] sm:$0xff]
    %v1153 = vld [vmem:[#allocation2 + $0x40] sm:$0xff]
    %v1154 = vld [vmem:[#allocation2 + $0x48] sm:$0xff]
    %v1155 = vld [vmem:[#allocation2 + $0x50] sm:$0xff]
    %v1156 = vld [vmem:[#allocation2 + $0x58] sm:$0xff]
    %v1157 = vld [vmem:[#allocation2 + $0x60] sm:$0xff]
    %v1158 = vld [vmem:[#allocation2 + $0x68] sm:$0xff]
    %v1159 = vld [vmem:[#allocation2 + $0x70] sm:$0xff]
    %v1160 = vld [vmem:[#allocation2 + $0x78] sm:$0xff]
    %v1161 = vld [vmem:[#allocation2 + $0x80] sm:$0xff]
    %v1162 = vld [vmem:[#allocation2 + $0x88] sm:$0xff]
    %v1163 = vld [vmem:[#allocation2 + $0x90] sm:$0xff]
    %v1164 = vld [vmem:[#allocation2 + $0x98] sm:$0xff]
    %v1165 = vld [vmem:[#allocation2 + $0xa0] sm:$0xff]
    %v1166 = vld [vmem:[#allocation2 + $0xa8] sm:$0xff]
    %v1167 = vld [vmem:[#allocation2 + $0xb0] sm:$0xff]
    %v1168 = vld [vmem:[#allocation2 + $0xb8] sm:$0xff]
    %v1169 = vld [vmem:[#allocation2 + $0xc0] sm:$0xff]
    %v1170 = vld [vmem:[#allocation2 + $0xc8] sm:$0xff]
    %v1171 = vld [vmem:[#allocation2 + $0xd0] sm:$0xff]
    %v1172 = vld [vmem:[#allocation2 + $0xd8] sm:$0xff]
    %v1173 = vld [vmem:[#allocation2 + $0xe0] sm:$0xff]
    %v1174 = vld [vmem:[#allocation2 + $0xe8] sm:$0xff]
    %v1175 = vld [vmem:[#allocation2 + $0xf0] sm:$0xff]
    %v1176 = vld [vmem:[#allocation2 + $0xf8] sm:$0xff]
    %v1177 = vld [vmem:[#allocation2 + $0x100] sm:$0xff]
    %v1178 = vld [vmem:[#allocation2 + $0x108] sm:$0xff]
    %v1179 = vld [vmem:[#allocation2 + $0x110] sm:$0xff]
    %v1180 = vld [vmem:[#allocation2 + $0x118] sm:$0xff]
    %v1181 = vld [vmem:[#allocation2 + $0x120] sm:$0xff]
    %v1182 = vld [vmem:[#allocation2 + $0x128] sm:$0xff]
    %v1183 = vld [vmem:[#allocation2 + $0x130] sm:$0xff]
    %v1184 = vld [vmem:[#allocation2 + $0x138] sm:$0xff]
    %v1185 = vld [vmem:[#allocation2 + $0x140] sm:$0xff]
    %v1186 = vld [vmem:[#allocation2 + $0x148] sm:$0xff]
    %v1187 = vld [vmem:[#allocation2 + $0x150] sm:$0xff]
    %v1188 = vld [vmem:[#allocation2 + $0x158] sm:$0xff]
    %v1189 = vld [vmem:[#allocation2 + $0x160] sm:$0xff]
    %v1190 = vld [vmem:[#allocation2 + $0x168] sm:$0xff]
    %v1191 = vld [vmem:[#allocation2 + $0x170] sm:$0xff]
    %v1192 = vld [vmem:[#allocation2 + $0x178] sm:$0xff]
    %v1193 = vld [vmem:[#allocation2 + $0x180] sm:$0xff]
    %v1194 = vld [vmem:[#allocation2 + $0x188] sm:$0xff]
    %v1195 = vld [vmem:[#allocation2 + $0x190] sm:$0xff]
    %v1196 = vld [vmem:[#allocation2 + $0x198] sm:$0xff]
    %v1197 = vld [vmem:[#allocation2 + $0x1a0] sm:$0xff]
    %v1198 = vld [vmem:[#allocation2 + $0x1a8] sm:$0xff]
    %v1199 = vld [vmem:[#allocation2 + $0x1b0] sm:$0xff]
    %v1200 = vld [vmem:[#allocation2 + $0x1b8] sm:$0xff]
    %v1201 = vld [vmem:[#allocation2 + $0x1c0] sm:$0xff]
    %v1202 = vld [vmem:[#allocation2 + $0x1c8] sm:$0xff]
    %v1203 = vld [vmem:[#allocation2 + $0x1d0] sm:$0xff]
    %v1204 = vld [vmem:[#allocation2 + $0x1d8] sm:$0xff]
    %v1205 = vld [vmem:[#allocation2 + $0x1e0] sm:$0xff]
    %v1206 = vld [vmem:[#allocation2 + $0x1e8] sm:$0xff]
    %v1207 = vld [vmem:[#allocation2 + $0x1f0] sm:$0xff]
    %v1208 = vld [vmem:[#allocation2 + $0x1f8] sm:$0xff]
    %v1209 = vld [vmem:[#allocation2 + $0x200] sm:$0xff]
    %v1210 = vld [vmem:[#allocation2 + $0x208] sm:$0xff]
    %v1211 = vld [vmem:[#allocation2 + $0x210] sm:$0xff]
    %v1212 = vld [vmem:[#allocation2 + $0x218] sm:$0xff]
    %v1213 = vld [vmem:[#allocation2 + $0x220] sm:$0xff]
    %v1214 = vld [vmem:[#allocation2 + $0x228] sm:$0xff]
    %v1215 = vld [vmem:[#allocation2 + $0x230] sm:$0xff]
    %v1216 = vld [vmem:[#allocation2 + $0x238] sm:$0xff]
    %v1217 = vld [vmem:[#allocation2 + $0x240] sm:$0xff]
    %v1218 = vld [vmem:[#allocation2 + $0x248] sm:$0xff]
    %v1219 = vld [vmem:[#allocation2 + $0x250] sm:$0xff]
    %v1220 = vld [vmem:[#allocation2 + $0x258] sm:$0xff]
    %v1221 = vld [vmem:[#allocation2 + $0x260] sm:$0xff]
    %v1222 = vld [vmem:[#allocation2 + $0x268] sm:$0xff]
    %v1223 = vld [vmem:[#allocation2 + $0x270] sm:$0xff]
    %v1224 = vld [vmem:[#allocation2 + $0x278] sm:$0xff]
    %v1225 = vld [vmem:[#allocation2 + $0x280] sm:$0xff]
    %v1226 = vld [vmem:[#allocation2 + $0x288] sm:$0xff]
    %v1227 = vld [vmem:[#allocation2 + $0x290] sm:$0xff]
    %v1228 = vld [vmem:[#allocation2 + $0x298] sm:$0xff]
    %v1229 = vld [vmem:[#allocation2 + $0x2a0] sm:$0xff]
    %v1230 = vld [vmem:[#allocation2 + $0x2a8] sm:$0xff]
    %v1231 = vld [vmem:[#allocation2 + $0x2b0] sm:$0xff]
    %v1232 = vld [vmem:[#allocation2 + $0x2b8] sm:$0xff]
    %v1233 = vld [vmem:[#allocation2 + $0x2c0] sm:$0xff]
    %v1234 = vld [vmem:[#allocation2 + $0x2c8] sm:$0xff]
    %v1235 = vld [vmem:[#allocation2 + $0x2d0] sm:$0xff]
    %v1236 = vld [vmem:[#allocation2 + $0x2d8] sm:$0xff]
    %v1237 = vld [vmem:[#allocation2 + $0x2e0] sm:$0xff]
    %v1238 = vld [vmem:[#allocation2 + $0x2e8] sm:$0xff]
    %v1239 = vld [vmem:[#allocation2 + $0x2f0] sm:$0xff]
    %v1240 = vld [vmem:[#allocation2 + $0x2f8] sm:$0xff]
    %v1241 = vld [vmem:[#allocation2 + $0x300] sm:$0xff]
    %v1242 = vld [vmem:[#allocation2 + $0x308] sm:$0xff]
    %v1243 = vld [vmem:[#allocation2 + $0x310] sm:$0xff]
    %v1244 = vld [vmem:[#allocation2 + $0x318] sm:$0xff]
    %v1245 = vld [vmem:[#allocation2 + $0x320] sm:$0xff]
    %v1246 = vld [vmem:[#allocation2 + $0x328] sm:$0xff]
    %v1247 = vld [vmem:[#allocation2 + $0x330] sm:$0xff]
    %v1248 = vld [vmem:[#allocation2 + $0x338] sm:$0xff]
    %v1249 = vld [vmem:[#allocation2 + $0x340] sm:$0xff]
    %v1250 = vld [vmem:[#allocation2 + $0x348] sm:$0xff]
    %v1251 = vld [vmem:[#allocation2 + $0x350] sm:$0xff]
    %v1252 = vld [vmem:[#allocation2 + $0x358] sm:$0xff]
    %v1253 = vld [vmem:[#allocation2 + $0x360] sm:$0xff]
    %v1254 = vld [vmem:[#allocation2 + $0x368] sm:$0xff]
    %v1255 = vld [vmem:[#allocation2 + $0x370] sm:$0xff]
    %v1256 = vld [vmem:[#allocation2 + $0x378] sm:$0xff]
    %v1257 = vld [vmem:[#allocation2 + $0x380] sm:$0xff]
    %v1258 = vld [vmem:[#allocation2 + $0x388] sm:$0xff]
    %v1259 = vld [vmem:[#allocation2 + $0x390] sm:$0xff]
    %v1260 = vld [vmem:[#allocation2 + $0x398] sm:$0xff]
    %v1261 = vld [vmem:[#allocation2 + $0x3a0] sm:$0xff]
    %v1262 = vld [vmem:[#allocation2 + $0x3a8] sm:$0xff]
    %v1263 = vld [vmem:[#allocation2 + $0x3b0] sm:$0xff]
    %v1264 = vld [vmem:[#allocation2 + $0x3b8] sm:$0xff]
    %v1265 = vld [vmem:[#allocation2 + $0x3c0] sm:$0xff]
    %v1266 = vld [vmem:[#allocation2 + $0x3c8] sm:$0xff]
    %v1267 = vld [vmem:[#allocation2 + $0x3d0] sm:$0xff]
    %v1268 = vld [vmem:[#allocation2 + $0x3d8] sm:$0xff]
    %v1269 = vld [vmem:[#allocation2 + $0x3e0] sm:$0xff]
    %v1270 = vld [vmem:[#allocation2 + $0x3e8] sm:$0xff]
    %v1271 = vld [vmem:[#allocation2 + $0x3f0] sm:$0xff]
    %v1272 = vld [vmem:[#allocation2 + $0x3f8] sm:$0xff]
    %v1273 = vld [vmem:[#allocation2 + $0x400] sm:$0xff]
    %v1274 = vld [vmem:[#allocation2 + $0x408] sm:$0xff]
    %v1275 = vld [vmem:[#allocation2 + $0x410] sm:$0xff]
    %v1276 = vld [vmem:[#allocation2 + $0x418] sm:$0xff]
    %v1277 = vld [vmem:[#allocation2 + $0x420] sm:$0xff]
    %v1278 = vld [vmem:[#allocation2 + $0x428] sm:$0xff]
    %v1279 = vld [vmem:[#allocation2 + $0x430] sm:$0xff]
    %v1280 = vld [vmem:[#allocation2 + $0x438] sm:$0xff]
    %v1281 = vld [vmem:[#allocation2 + $0x440] sm:$0xff]
    %v1282 = vld [vmem:[#allocation2 + $0x448] sm:$0xff]
    %v1283 = vld [vmem:[#allocation2 + $0x450] sm:$0xff]
    %v1284 = vld [vmem:[#allocation2 + $0x458] sm:$0xff]
    %v1285 = vld [vmem:[#allocation2 + $0x460] sm:$0xff]
    %v1286 = vld [vmem:[#allocation2 + $0x468] sm:$0xff]
    %v1287 = vld [vmem:[#allocation2 + $0x470] sm:$0xff]
    %v1288 = vld [vmem:[#allocation2 + $0x478] sm:$0xff]
    %v1289 = vld [vmem:[#allocation2 + $0x480] sm:$0xff]
    %v1290 = vld [vmem:[#allocation2 + $0x488] sm:$0xff]
    %v1291 = vld [vmem:[#allocation2 + $0x490] sm:$0xff]
    %v1292 = vld [vmem:[#allocation2 + $0x498] sm:$0xff]
    %v1293 = vld [vmem:[#allocation2 + $0x4a0] sm:$0xff]
    %v1294 = vld [vmem:[#allocation2 + $0x4a8] sm:$0xff]
    %v1295 = vld [vmem:[#allocation2 + $0x4b0] sm:$0xff]
    %v1296 = vld [vmem:[#allocation2 + $0x4b8] sm:$0xff]
    %v1297 = vld [vmem:[#allocation2 + $0x4c0] sm:$0xff]
    %v1298 = vld [vmem:[#allocation2 + $0x4c8] sm:$0xff]
    %v1299 = vld [vmem:[#allocation2 + $0x4d0] sm:$0xff]
    %v1300 = vld [vmem:[#allocation2 + $0x4d8] sm:$0xff]
    %v1301 = vld [vmem:[#allocation2 + $0x4e0] sm:$0xff]
    %v1302 = vld [vmem:[#allocation2 + $0x4e8] sm:$0xff]
    %v1303 = vld [vmem:[#allocation2 + $0x4f0] sm:$0xff]
    %v1304 = vld [vmem:[#allocation2 + $0x4f8] sm:$0xff]
    %v1305 = vld [vmem:[#allocation2 + $0x500] sm:$0xff]
    %v1306 = vld [vmem:[#allocation2 + $0x508] sm:$0xff]
    %v1307 = vld [vmem:[#allocation2 + $0x510] sm:$0xff]
    %v1308 = vld [vmem:[#allocation2 + $0x518] sm:$0xff]
    %v1309 = vld [vmem:[#allocation2 + $0x520] sm:$0xff]
    %v1310 = vld [vmem:[#allocation2 + $0x528] sm:$0xff]
    %v1311 = vld [vmem:[#allocation2 + $0x530] sm:$0xff]
    %v1312 = vld [vmem:[#allocation2 + $0x538] sm:$0xff]
    %v1313 = vld [vmem:[#allocation2 + $0x540] sm:$0xff]
    %v1314 = vld [vmem:[#allocation2 + $0x548] sm:$0xff]
    %v1315 = vld [vmem:[#allocation2 + $0x550] sm:$0xff]
    %v1316 = vld [vmem:[#allocation2 + $0x558] sm:$0xff]
    %v1317 = vld [vmem:[#allocation2 + $0x560] sm:$0xff]
    %v1318 = vld [vmem:[#allocation2 + $0x568] sm:$0xff]
    %v1319 = vld [vmem:[#allocation2 + $0x570] sm:$0xff]
    %v1320 = vld [vmem:[#allocation2 + $0x578] sm:$0xff]
    %v1321 = vld [vmem:[#allocation2 + $0x580] sm:$0xff]
    %v1322 = vld [vmem:[#allocation2 + $0x588] sm:$0xff]
    %v1323 = vld [vmem:[#allocation2 + $0x590] sm:$0xff]
    %v1324 = vld [vmem:[#allocation2 + $0x598] sm:$0xff]
    %v1325 = vld [vmem:[#allocation2 + $0x5a0] sm:$0xff]
    %v1326 = vld [vmem:[#allocation2 + $0x5a8] sm:$0xff]
    %v1327 = vld [vmem:[#allocation2 + $0x5b0] sm:$0xff]
    %v1328 = vld [vmem:[#allocation2 + $0x5b8] sm:$0xff]
    %v1329 = vld [vmem:[#allocation2 + $0x5c0] sm:$0xff]
    %v1330 = vld [vmem:[#allocation2 + $0x5c8] sm:$0xff]
    %v1331 = vld [vmem:[#allocation2 + $0x5d0] sm:$0xff]
    %v1332 = vld [vmem:[#allocation2 + $0x5d8] sm:$0xff]
    %v1333 = vld [vmem:[#allocation2 + $0x5e0] sm:$0xff]
    %v1334 = vld [vmem:[#allocation2 + $0x5e8] sm:$0xff]
    %v1335 = vld [vmem:[#allocation2 + $0x5f0] sm:$0xff]
    %v1336 = vld [vmem:[#allocation2 + $0x5f8] sm:$0xff]
    %v1337 = vld [vmem:[#allocation2 + $0x600] sm:$0xff]
    %v1338 = vld [vmem:[#allocation2 + $0x608] sm:$0xff]
    %v1339 = vld [vmem:[#allocation2 + $0x610] sm:$0xff]
    %v1340 = vld [vmem:[#allocation2 + $0x618] sm:$0xff]
    %v1341 = vld [vmem:[#allocation2 + $0x620] sm:$0xff]
    %v1342 = vld [vmem:[#allocation2 + $0x628] sm:$0xff]
    %v1343 = vld [vmem:[#allocation2 + $0x630] sm:$0xff]
    %v1344 = vld [vmem:[#allocation2 + $0x638] sm:$0xff]
    %v1345 = vld [vmem:[#allocation2 + $0x640] sm:$0xff]
    %v1346 = vld [vmem:[#allocation2 + $0x648] sm:$0xff]
    %v1347 = vld [vmem:[#allocation2 + $0x650] sm:$0xff]
    %v1348 = vld [vmem:[#allocation2 + $0x658] sm:$0xff]
    %v1349 = vld [vmem:[#allocation2 + $0x660] sm:$0xff]
    %v1350 = vld [vmem:[#allocation2 + $0x668] sm:$0xff]
    %v1351 = vld [vmem:[#allocation2 + $0x670] sm:$0xff]
    %v1352 = vld [vmem:[#allocation2 + $0x678] sm:$0xff]
    %v1353 = vld [vmem:[#allocation2 + $0x680] sm:$0xff]
    %v1354 = vld [vmem:[#allocation2 + $0x688] sm:$0xff]
    %v1355 = vld [vmem:[#allocation2 + $0x690] sm:$0xff]
    %v1356 = vld [vmem:[#allocation2 + $0x698] sm:$0xff]
    %v1357 = vld [vmem:[#allocation2 + $0x6a0] sm:$0xff]
    %v1358 = vld [vmem:[#allocation2 + $0x6a8] sm:$0xff]
    %v1359 = vld [vmem:[#allocation2 + $0x6b0] sm:$0xff]
    %v1360 = vld [vmem:[#allocation2 + $0x6b8] sm:$0xff]
    %v1361 = vld [vmem:[#allocation2 + $0x6c0] sm:$0xff]
    %v1362 = vld [vmem:[#allocation2 + $0x6c8] sm:$0xff]
    %v1363 = vld [vmem:[#allocation2 + $0x6d0] sm:$0xff]
    %v1364 = vld [vmem:[#allocation2 + $0x6d8] sm:$0xff]
    %v1365 = vld [vmem:[#allocation2 + $0x6e0] sm:$0xff]
    %v1366 = vld [vmem:[#allocation2 + $0x6e8] sm:$0xff]
    %v1367 = vld [vmem:[#allocation2 + $0x6f0] sm:$0xff]
    %v1368 = vld [vmem:[#allocation2 + $0x6f8] sm:$0xff]
    %v1369 = vld [vmem:[#allocation2 + $0x700] sm:$0xff]
    %v1370 = vld [vmem:[#allocation2 + $0x708] sm:$0xff]
    %v1371 = vld [vmem:[#allocation2 + $0x710] sm:$0xff]
    %v1372 = vld [vmem:[#allocation2 + $0x718] sm:$0xff]
    %v1373 = vld [vmem:[#allocation2 + $0x720] sm:$0xff]
    %v1374 = vld [vmem:[#allocation2 + $0x728] sm:$0xff]
    %v1375 = vld [vmem:[#allocation2 + $0x730] sm:$0xff]
    %v1376 = vld [vmem:[#allocation2 + $0x738] sm:$0xff]
    %v1377 = vld [vmem:[#allocation2 + $0x740] sm:$0xff]
    %v1378 = vld [vmem:[#allocation2 + $0x748] sm:$0xff]
    %v1379 = vld [vmem:[#allocation2 + $0x750] sm:$0xff]
    %v1380 = vld [vmem:[#allocation2 + $0x758] sm:$0xff]
    %v1381 = vld [vmem:[#allocation2 + $0x760] sm:$0xff]
    %v1382 = vld [vmem:[#allocation2 + $0x768] sm:$0xff]
    %v1383 = vld [vmem:[#allocation2 + $0x770] sm:$0xff]
    %v1384 = vld [vmem:[#allocation2 + $0x778] sm:$0xff]
    %v1385 = vld [vmem:[#allocation2 + $0x780] sm:$0xff]
    %v1386 = vld [vmem:[#allocation2 + $0x788] sm:$0xff]
    %v1387 = vld [vmem:[#allocation2 + $0x790] sm:$0xff]
    %v1388 = vld [vmem:[#allocation2 + $0x798] sm:$0xff]
    %v1389 = vld [vmem:[#allocation2 + $0x7a0] sm:$0xff]
    %v1390 = vld [vmem:[#allocation2 + $0x7a8] sm:$0xff]
    %v1391 = vld [vmem:[#allocation2 + $0x7b0] sm:$0xff]
    %v1392 = vld [vmem:[#allocation2 + $0x7b8] sm:$0xff]
    %v1393 = vld [vmem:[#allocation2 + $0x7c0] sm:$0xff]
    %v1394 = vld [vmem:[#allocation2 + $0x7c8] sm:$0xff]
    %v1395 = vld [vmem:[#allocation2 + $0x7d0] sm:$0xff]
    %v1396 = vld [vmem:[#allocation2 + $0x7d8] sm:$0xff]
    %v1397 = vld [vmem:[#allocation2 + $0x7e0] sm:$0xff]
    %v1398 = vld [vmem:[#allocation2 + $0x7e8] sm:$0xff]
    %v1399 = vld [vmem:[#allocation2 + $0x7f0] sm:$0xff]
    %v1400 = vld [vmem:[#allocation2 + $0x7f8] sm:$0xff]
    %s1401 = scalar_lea.vmem [#allocation10], 5
    %v1402 = vld [vmem:[%s1401] ss:$8 sm:$0xf]
    %v1403 = vld [vmem:[%s1401] ss:$8 sm:$0xf0]
    %v1404 = vor.u32 %v1402, %v1403
    %s1405 = scalar_lea.vmem [#allocation10], 6
    %v1406 = vld [vmem:[%s1405] ss:$8 sm:$0xf]
    %v1407 = vld [vmem:[%s1405] ss:$8 sm:$0xf0]
    %v1408 = vor.u32 %v1406, %v1407
    %v1409 = vpack.c.bf16 %v1137, %v1137
    %v1410 = vpack.c.bf16 %v1138, %v1138
    %v1411 = vpack.c.bf16 %v1139, %v1139
    %v1412 = vpack.c.bf16 %v1140, %v1140
    %v1669 = vunpack.c.l.b16 %v1145
    %v1670 = vunpack.c.h.b16 %v1145
    %v1671 = vunpack.c.l.b16 %v1146
    %v1672 = vunpack.c.h.b16 %v1146
    %v1673 = vunpack.c.l.b16 %v1147
    %v1674 = vunpack.c.h.b16 %v1147
    %v1675 = vunpack.c.l.b16 %v1148
    %v1676 = vunpack.c.h.b16 %v1148
    %v1677 = vunpack.c.l.b16 %v1149
    %v1678 = vunpack.c.h.b16 %v1149
    %v1679 = vunpack.c.l.b16 %v1150
    %v1680 = vunpack.c.h.b16 %v1150
    %v1681 = vunpack.c.l.b16 %v1151
    %v1682 = vunpack.c.h.b16 %v1151
    %v1683 = vunpack.c.l.b16 %v1152
    %v1684 = vunpack.c.h.b16 %v1152
    %v1685 = vunpack.c.l.b16 %v1153
    %v1686 = vunpack.c.h.b16 %v1153
    %v1687 = vunpack.c.l.b16 %v1154
    %v1688 = vunpack.c.h.b16 %v1154
    %v1689 = vunpack.c.l.b16 %v1155
    %v1690 = vunpack.c.h.b16 %v1155
    %v1691 = vunpack.c.l.b16 %v1156
    %v1692 = vunpack.c.h.b16 %v1156
    %v1693 = vunpack.c.l.b16 %v1157
    %v1694 = vunpack.c.h.b16 %v1157
    %v1695 = vunpack.c.l.b16 %v1158
    %v1696 = vunpack.c.h.b16 %v1158
    %v1697 = vunpack.c.l.b16 %v1159
    %v1698 = vunpack.c.h.b16 %v1159
    %v1699 = vunpack.c.l.b16 %v1160
    %v1700 = vunpack.c.h.b16 %v1160
    %v1701 = vunpack.c.l.b16 %v1161
    %v1702 = vunpack.c.h.b16 %v1161
    %v1703 = vunpack.c.l.b16 %v1162
    %v1704 = vunpack.c.h.b16 %v1162
    %v1705 = vunpack.c.l.b16 %v1163
    %v1706 = vunpack.c.h.b16 %v1163
    %v1707 = vunpack.c.l.b16 %v1164
    %v1708 = vunpack.c.h.b16 %v1164
    %v1709 = vunpack.c.l.b16 %v1165
    %v1710 = vunpack.c.h.b16 %v1165
    %v1711 = vunpack.c.l.b16 %v1166
    %v1712 = vunpack.c.h.b16 %v1166
    %v1713 = vunpack.c.l.b16 %v1167
    %v1714 = vunpack.c.h.b16 %v1167
    %v1715 = vunpack.c.l.b16 %v1168
    %v1716 = vunpack.c.h.b16 %v1168
    %v1717 = vunpack.c.l.b16 %v1169
    %v1718 = vunpack.c.h.b16 %v1169
    %v1719 = vunpack.c.l.b16 %v1170
    %v1720 = vunpack.c.h.b16 %v1170
    %v1721 = vunpack.c.l.b16 %v1171
    %v1722 = vunpack.c.h.b16 %v1171
    %v1723 = vunpack.c.l.b16 %v1172
    %v1724 = vunpack.c.h.b16 %v1172
    %v1725 = vunpack.c.l.b16 %v1173
    %v1726 = vunpack.c.h.b16 %v1173
    %v1727 = vunpack.c.l.b16 %v1174
    %v1728 = vunpack.c.h.b16 %v1174
    %v1729 = vunpack.c.l.b16 %v1175
    %v1730 = vunpack.c.h.b16 %v1175
    %v1731 = vunpack.c.l.b16 %v1176
    %v1732 = vunpack.c.h.b16 %v1176
    %v1733 = vunpack.c.l.b16 %v1177
    %v1734 = vunpack.c.h.b16 %v1177
    %v1735 = vunpack.c.l.b16 %v1178
    %v1736 = vunpack.c.h.b16 %v1178
    %v1737 = vunpack.c.l.b16 %v1179
    %v1738 = vunpack.c.h.b16 %v1179
    %v1739 = vunpack.c.l.b16 %v1180
    %v1740 = vunpack.c.h.b16 %v1180
    %v1741 = vunpack.c.l.b16 %v1181
    %v1742 = vunpack.c.h.b16 %v1181
    %v1743 = vunpack.c.l.b16 %v1182
    %v1744 = vunpack.c.h.b16 %v1182
    %v1745 = vunpack.c.l.b16 %v1183
    %v1746 = vunpack.c.h.b16 %v1183
    %v1747 = vunpack.c.l.b16 %v1184
    %v1748 = vunpack.c.h.b16 %v1184
    %v1749 = vunpack.c.l.b16 %v1185
    %v1750 = vunpack.c.h.b16 %v1185
    %v1751 = vunpack.c.l.b16 %v1186
    %v1752 = vunpack.c.h.b16 %v1186
    %v1753 = vunpack.c.l.b16 %v1187
    %v1754 = vunpack.c.h.b16 %v1187
    %v1755 = vunpack.c.l.b16 %v1188
    %v1756 = vunpack.c.h.b16 %v1188
    %v1757 = vunpack.c.l.b16 %v1189
    %v1758 = vunpack.c.h.b16 %v1189
    %v1759 = vunpack.c.l.b16 %v1190
    %v1760 = vunpack.c.h.b16 %v1190
    %v1761 = vunpack.c.l.b16 %v1191
    %v1762 = vunpack.c.h.b16 %v1191
    %v1763 = vunpack.c.l.b16 %v1192
    %v1764 = vunpack.c.h.b16 %v1192
    %v1765 = vunpack.c.l.b16 %v1193
    %v1766 = vunpack.c.h.b16 %v1193
    %v1767 = vunpack.c.l.b16 %v1194
    %v1768 = vunpack.c.h.b16 %v1194
    %v1769 = vunpack.c.l.b16 %v1195
    %v1770 = vunpack.c.h.b16 %v1195
    %v1771 = vunpack.c.l.b16 %v1196
    %v1772 = vunpack.c.h.b16 %v1196
    %v1773 = vunpack.c.l.b16 %v1197
    %v1774 = vunpack.c.h.b16 %v1197
    %v1775 = vunpack.c.l.b16 %v1198
    %v1776 = vunpack.c.h.b16 %v1198
    %v1777 = vunpack.c.l.b16 %v1199
    %v1778 = vunpack.c.h.b16 %v1199
    %v1779 = vunpack.c.l.b16 %v1200
    %v1780 = vunpack.c.h.b16 %v1200
    %v1781 = vunpack.c.l.b16 %v1201
    %v1782 = vunpack.c.h.b16 %v1201
    %v1783 = vunpack.c.l.b16 %v1202
    %v1784 = vunpack.c.h.b16 %v1202
    %v1785 = vunpack.c.l.b16 %v1203
    %v1786 = vunpack.c.h.b16 %v1203
    %v1787 = vunpack.c.l.b16 %v1204
    %v1788 = vunpack.c.h.b16 %v1204
    %v1789 = vunpack.c.l.b16 %v1205
    %v1790 = vunpack.c.h.b16 %v1205
    %v1791 = vunpack.c.l.b16 %v1206
    %v1792 = vunpack.c.h.b16 %v1206
    %v1793 = vunpack.c.l.b16 %v1207
    %v1794 = vunpack.c.h.b16 %v1207
    %v1795 = vunpack.c.l.b16 %v1208
    %v1796 = vunpack.c.h.b16 %v1208
    %v1797 = vunpack.c.l.b16 %v1209
    %v1798 = vunpack.c.h.b16 %v1209
    %v1799 = vunpack.c.l.b16 %v1210
    %v1800 = vunpack.c.h.b16 %v1210
    %v1801 = vunpack.c.l.b16 %v1211
    %v1802 = vunpack.c.h.b16 %v1211
    %v1803 = vunpack.c.l.b16 %v1212
    %v1804 = vunpack.c.h.b16 %v1212
    %v1805 = vunpack.c.l.b16 %v1213
    %v1806 = vunpack.c.h.b16 %v1213
    %v1807 = vunpack.c.l.b16 %v1214
    %v1808 = vunpack.c.h.b16 %v1214
    %v1809 = vunpack.c.l.b16 %v1215
    %v1810 = vunpack.c.h.b16 %v1215
    %v1811 = vunpack.c.l.b16 %v1216
    %v1812 = vunpack.c.h.b16 %v1216
    %v1813 = vunpack.c.l.b16 %v1217
    %v1814 = vunpack.c.h.b16 %v1217
    %v1815 = vunpack.c.l.b16 %v1218
    %v1816 = vunpack.c.h.b16 %v1218
    %v1817 = vunpack.c.l.b16 %v1219
    %v1818 = vunpack.c.h.b16 %v1219
    %v1819 = vunpack.c.l.b16 %v1220
    %v1820 = vunpack.c.h.b16 %v1220
    %v1821 = vunpack.c.l.b16 %v1221
    %v1822 = vunpack.c.h.b16 %v1221
    %v1823 = vunpack.c.l.b16 %v1222
    %v1824 = vunpack.c.h.b16 %v1222
    %v1825 = vunpack.c.l.b16 %v1223
    %v1826 = vunpack.c.h.b16 %v1223
    %v1827 = vunpack.c.l.b16 %v1224
    %v1828 = vunpack.c.h.b16 %v1224
    %v1829 = vunpack.c.l.b16 %v1225
    %v1830 = vunpack.c.h.b16 %v1225
    %v1831 = vunpack.c.l.b16 %v1226
    %v1832 = vunpack.c.h.b16 %v1226
    %v1833 = vunpack.c.l.b16 %v1227
    %v1834 = vunpack.c.h.b16 %v1227
    %v1835 = vunpack.c.l.b16 %v1228
    %v1836 = vunpack.c.h.b16 %v1228
    %v1837 = vunpack.c.l.b16 %v1229
    %v1838 = vunpack.c.h.b16 %v1229
    %v1839 = vunpack.c.l.b16 %v1230
    %v1840 = vunpack.c.h.b16 %v1230
    %v1841 = vunpack.c.l.b16 %v1231
    %v1842 = vunpack.c.h.b16 %v1231
    %v1843 = vunpack.c.l.b16 %v1232
    %v1844 = vunpack.c.h.b16 %v1232
    %v1845 = vunpack.c.l.b16 %v1233
    %v1846 = vunpack.c.h.b16 %v1233
    %v1847 = vunpack.c.l.b16 %v1234
    %v1848 = vunpack.c.h.b16 %v1234
    %v1849 = vunpack.c.l.b16 %v1235
    %v1850 = vunpack.c.h.b16 %v1235
    %v1851 = vunpack.c.l.b16 %v1236
    %v1852 = vunpack.c.h.b16 %v1236
    %v1853 = vunpack.c.l.b16 %v1237
    %v1854 = vunpack.c.h.b16 %v1237
    %v1855 = vunpack.c.l.b16 %v1238
    %v1856 = vunpack.c.h.b16 %v1238
    %v1857 = vunpack.c.l.b16 %v1239
    %v1858 = vunpack.c.h.b16 %v1239
    %v1859 = vunpack.c.l.b16 %v1240
    %v1860 = vunpack.c.h.b16 %v1240
    %v1861 = vunpack.c.l.b16 %v1241
    %v1862 = vunpack.c.h.b16 %v1241
    %v1863 = vunpack.c.l.b16 %v1242
    %v1864 = vunpack.c.h.b16 %v1242
    %v1865 = vunpack.c.l.b16 %v1243
    %v1866 = vunpack.c.h.b16 %v1243
    %v1867 = vunpack.c.l.b16 %v1244
    %v1868 = vunpack.c.h.b16 %v1244
    %v1869 = vunpack.c.l.b16 %v1245
    %v1870 = vunpack.c.h.b16 %v1245
    %v1871 = vunpack.c.l.b16 %v1246
    %v1872 = vunpack.c.h.b16 %v1246
    %v1873 = vunpack.c.l.b16 %v1247
    %v1874 = vunpack.c.h.b16 %v1247
    %v1875 = vunpack.c.l.b16 %v1248
    %v1876 = vunpack.c.h.b16 %v1248
    %v1877 = vunpack.c.l.b16 %v1249
    %v1878 = vunpack.c.h.b16 %v1249
    %v1879 = vunpack.c.l.b16 %v1250
    %v1880 = vunpack.c.h.b16 %v1250
    %v1881 = vunpack.c.l.b16 %v1251
    %v1882 = vunpack.c.h.b16 %v1251
    %v1883 = vunpack.c.l.b16 %v1252
    %v1884 = vunpack.c.h.b16 %v1252
    %v1885 = vunpack.c.l.b16 %v1253
    %v1886 = vunpack.c.h.b16 %v1253
    %v1887 = vunpack.c.l.b16 %v1254
    %v1888 = vunpack.c.h.b16 %v1254
    %v1889 = vunpack.c.l.b16 %v1255
    %v1890 = vunpack.c.h.b16 %v1255
    %v1891 = vunpack.c.l.b16 %v1256
    %v1892 = vunpack.c.h.b16 %v1256
    %v1893 = vunpack.c.l.b16 %v1257
    %v1894 = vunpack.c.h.b16 %v1257
    %v1895 = vunpack.c.l.b16 %v1258
    %v1896 = vunpack.c.h.b16 %v1258
    %v1897 = vunpack.c.l.b16 %v1259
    %v1898 = vunpack.c.h.b16 %v1259
    %v1899 = vunpack.c.l.b16 %v1260
    %v1900 = vunpack.c.h.b16 %v1260
    %v1901 = vunpack.c.l.b16 %v1261
    %v1902 = vunpack.c.h.b16 %v1261
    %v1903 = vunpack.c.l.b16 %v1262
    %v1904 = vunpack.c.h.b16 %v1262
    %v1905 = vunpack.c.l.b16 %v1263
    %v1906 = vunpack.c.h.b16 %v1263
    %v1907 = vunpack.c.l.b16 %v1264
    %v1908 = vunpack.c.h.b16 %v1264
    %v1909 = vunpack.c.l.b16 %v1265
    %v1910 = vunpack.c.h.b16 %v1265
    %v1911 = vunpack.c.l.b16 %v1266
    %v1912 = vunpack.c.h.b16 %v1266
    %v1913 = vunpack.c.l.b16 %v1267
    %v1914 = vunpack.c.h.b16 %v1267
    %v1915 = vunpack.c.l.b16 %v1268
    %v1916 = vunpack.c.h.b16 %v1268
    %v1917 = vunpack.c.l.b16 %v1269
    %v1918 = vunpack.c.h.b16 %v1269
    %v1919 = vunpack.c.l.b16 %v1270
    %v1920 = vunpack.c.h.b16 %v1270
    %v1921 = vunpack.c.l.b16 %v1271
    %v1922 = vunpack.c.h.b16 %v1271
    %v1923 = vunpack.c.l.b16 %v1272
    %v1924 = vunpack.c.h.b16 %v1272
    %v1925 = vunpack.c.l.b16 %v1273
    %v1926 = vunpack.c.h.b16 %v1273
    %v1927 = vunpack.c.l.b16 %v1274
    %v1928 = vunpack.c.h.b16 %v1274
    %v1929 = vunpack.c.l.b16 %v1275
    %v1930 = vunpack.c.h.b16 %v1275
    %v1931 = vunpack.c.l.b16 %v1276
    %v1932 = vunpack.c.h.b16 %v1276
    %v1933 = vunpack.c.l.b16 %v1277
    %v1934 = vunpack.c.h.b16 %v1277
    %v1935 = vunpack.c.l.b16 %v1278
    %v1936 = vunpack.c.h.b16 %v1278
    %v1937 = vunpack.c.l.b16 %v1279
    %v1938 = vunpack.c.h.b16 %v1279
    %v1939 = vunpack.c.l.b16 %v1280
    %v1940 = vunpack.c.h.b16 %v1280
    %v1941 = vunpack.c.l.b16 %v1281
    %v1942 = vunpack.c.h.b16 %v1281
    %v1943 = vunpack.c.l.b16 %v1282
    %v1944 = vunpack.c.h.b16 %v1282
    %v1945 = vunpack.c.l.b16 %v1283
    %v1946 = vunpack.c.h.b16 %v1283
    %v1947 = vunpack.c.l.b16 %v1284
    %v1948 = vunpack.c.h.b16 %v1284
    %v1949 = vunpack.c.l.b16 %v1285
    %v1950 = vunpack.c.h.b16 %v1285
    %v1951 = vunpack.c.l.b16 %v1286
    %v1952 = vunpack.c.h.b16 %v1286
    %v1953 = vunpack.c.l.b16 %v1287
    %v1954 = vunpack.c.h.b16 %v1287
    %v1955 = vunpack.c.l.b16 %v1288
    %v1956 = vunpack.c.h.b16 %v1288
    %v1957 = vunpack.c.l.b16 %v1289
    %v1958 = vunpack.c.h.b16 %v1289
    %v1959 = vunpack.c.l.b16 %v1290
    %v1960 = vunpack.c.h.b16 %v1290
    %v1961 = vunpack.c.l.b16 %v1291
    %v1962 = vunpack.c.h.b16 %v1291
    %v1963 = vunpack.c.l.b16 %v1292
    %v1964 = vunpack.c.h.b16 %v1292
    %v1965 = vunpack.c.l.b16 %v1293
    %v1966 = vunpack.c.h.b16 %v1293
    %v1967 = vunpack.c.l.b16 %v1294
    %v1968 = vunpack.c.h.b16 %v1294
    %v1969 = vunpack.c.l.b16 %v1295
    %v1970 = vunpack.c.h.b16 %v1295
    %v1971 = vunpack.c.l.b16 %v1296
    %v1972 = vunpack.c.h.b16 %v1296
    %v1973 = vunpack.c.l.b16 %v1297
    %v1974 = vunpack.c.h.b16 %v1297
    %v1975 = vunpack.c.l.b16 %v1298
    %v1976 = vunpack.c.h.b16 %v1298
    %v1977 = vunpack.c.l.b16 %v1299
    %v1978 = vunpack.c.h.b16 %v1299
    %v1979 = vunpack.c.l.b16 %v1300
    %v1980 = vunpack.c.h.b16 %v1300
    %v1981 = vunpack.c.l.b16 %v1301
    %v1982 = vunpack.c.h.b16 %v1301
    %v1983 = vunpack.c.l.b16 %v1302
    %v1984 = vunpack.c.h.b16 %v1302
    %v1985 = vunpack.c.l.b16 %v1303
    %v1986 = vunpack.c.h.b16 %v1303
    %v1987 = vunpack.c.l.b16 %v1304
    %v1988 = vunpack.c.h.b16 %v1304
    %v1989 = vunpack.c.l.b16 %v1305
    %v1990 = vunpack.c.h.b16 %v1305
    %v1991 = vunpack.c.l.b16 %v1306
    %v1992 = vunpack.c.h.b16 %v1306
    %v1993 = vunpack.c.l.b16 %v1307
    %v1994 = vunpack.c.h.b16 %v1307
    %v1995 = vunpack.c.l.b16 %v1308
    %v1996 = vunpack.c.h.b16 %v1308
    %v1997 = vunpack.c.l.b16 %v1309
    %v1998 = vunpack.c.h.b16 %v1309
    %v1999 = vunpack.c.l.b16 %v1310
    %v2000 = vunpack.c.h.b16 %v1310
    %v2001 = vunpack.c.l.b16 %v1311
    %v2002 = vunpack.c.h.b16 %v1311
    %v2003 = vunpack.c.l.b16 %v1312
    %v2004 = vunpack.c.h.b16 %v1312
    %v2005 = vunpack.c.l.b16 %v1313
    %v2006 = vunpack.c.h.b16 %v1313
    %v2007 = vunpack.c.l.b16 %v1314
    %v2008 = vunpack.c.h.b16 %v1314
    %v2009 = vunpack.c.l.b16 %v1315
    %v2010 = vunpack.c.h.b16 %v1315
    %v2011 = vunpack.c.l.b16 %v1316
    %v2012 = vunpack.c.h.b16 %v1316
    %v2013 = vunpack.c.l.b16 %v1317
    %v2014 = vunpack.c.h.b16 %v1317
    %v2015 = vunpack.c.l.b16 %v1318
    %v2016 = vunpack.c.h.b16 %v1318
    %v2017 = vunpack.c.l.b16 %v1319
    %v2018 = vunpack.c.h.b16 %v1319
    %v2019 = vunpack.c.l.b16 %v1320
    %v2020 = vunpack.c.h.b16 %v1320
    %v2021 = vunpack.c.l.b16 %v1321
    %v2022 = vunpack.c.h.b16 %v1321
    %v2023 = vunpack.c.l.b16 %v1322
    %v2024 = vunpack.c.h.b16 %v1322
    %v2025 = vunpack.c.l.b16 %v1323
    %v2026 = vunpack.c.h.b16 %v1323
    %v2027 = vunpack.c.l.b16 %v1324
    %v2028 = vunpack.c.h.b16 %v1324
    %v2029 = vunpack.c.l.b16 %v1325
    %v2030 = vunpack.c.h.b16 %v1325
    %v2031 = vunpack.c.l.b16 %v1326
    %v2032 = vunpack.c.h.b16 %v1326
    %v2033 = vunpack.c.l.b16 %v1327
    %v2034 = vunpack.c.h.b16 %v1327
    %v2035 = vunpack.c.l.b16 %v1328
    %v2036 = vunpack.c.h.b16 %v1328
    %v2037 = vunpack.c.l.b16 %v1329
    %v2038 = vunpack.c.h.b16 %v1329
    %v2039 = vunpack.c.l.b16 %v1330
    %v2040 = vunpack.c.h.b16 %v1330
    %v2041 = vunpack.c.l.b16 %v1331
    %v2042 = vunpack.c.h.b16 %v1331
    %v2043 = vunpack.c.l.b16 %v1332
    %v2044 = vunpack.c.h.b16 %v1332
    %v2045 = vunpack.c.l.b16 %v1333
    %v2046 = vunpack.c.h.b16 %v1333
    %v2047 = vunpack.c.l.b16 %v1334
    %v2048 = vunpack.c.h.b16 %v1334
    %v2049 = vunpack.c.l.b16 %v1335
    %v2050 = vunpack.c.h.b16 %v1335
    %v2051 = vunpack.c.l.b16 %v1336
    %v2052 = vunpack.c.h.b16 %v1336
    %v2053 = vunpack.c.l.b16 %v1337
    %v2054 = vunpack.c.h.b16 %v1337
    %v2055 = vunpack.c.l.b16 %v1338
    %v2056 = vunpack.c.h.b16 %v1338
    %v2057 = vunpack.c.l.b16 %v1339
    %v2058 = vunpack.c.h.b16 %v1339
    %v2059 = vunpack.c.l.b16 %v1340
    %v2060 = vunpack.c.h.b16 %v1340
    %v2061 = vunpack.c.l.b16 %v1341
    %v2062 = vunpack.c.h.b16 %v1341
    %v2063 = vunpack.c.l.b16 %v1342
    %v2064 = vunpack.c.h.b16 %v1342
    %v2065 = vunpack.c.l.b16 %v1343
    %v2066 = vunpack.c.h.b16 %v1343
    %v2067 = vunpack.c.l.b16 %v1344
    %v2068 = vunpack.c.h.b16 %v1344
    %v2069 = vunpack.c.l.b16 %v1345
    %v2070 = vunpack.c.h.b16 %v1345
    %v2071 = vunpack.c.l.b16 %v1346
    %v2072 = vunpack.c.h.b16 %v1346
    %v2073 = vunpack.c.l.b16 %v1347
    %v2074 = vunpack.c.h.b16 %v1347
    %v2075 = vunpack.c.l.b16 %v1348
    %v2076 = vunpack.c.h.b16 %v1348
    %v2077 = vunpack.c.l.b16 %v1349
    %v2078 = vunpack.c.h.b16 %v1349
    %v2079 = vunpack.c.l.b16 %v1350
    %v2080 = vunpack.c.h.b16 %v1350
    %v2081 = vunpack.c.l.b16 %v1351
    %v2082 = vunpack.c.h.b16 %v1351
    %v2083 = vunpack.c.l.b16 %v1352
    %v2084 = vunpack.c.h.b16 %v1352
    %v2085 = vunpack.c.l.b16 %v1353
    %v2086 = vunpack.c.h.b16 %v1353
    %v2087 = vunpack.c.l.b16 %v1354
    %v2088 = vunpack.c.h.b16 %v1354
    %v2089 = vunpack.c.l.b16 %v1355
    %v2090 = vunpack.c.h.b16 %v1355
    %v2091 = vunpack.c.l.b16 %v1356
    %v2092 = vunpack.c.h.b16 %v1356
    %v2093 = vunpack.c.l.b16 %v1357
    %v2094 = vunpack.c.h.b16 %v1357
    %v2095 = vunpack.c.l.b16 %v1358
    %v2096 = vunpack.c.h.b16 %v1358
    %v2097 = vunpack.c.l.b16 %v1359
    %v2098 = vunpack.c.h.b16 %v1359
    %v2099 = vunpack.c.l.b16 %v1360
    %v2100 = vunpack.c.h.b16 %v1360
    %v2101 = vunpack.c.l.b16 %v1361
    %v2102 = vunpack.c.h.b16 %v1361
    %v2103 = vunpack.c.l.b16 %v1362
    %v2104 = vunpack.c.h.b16 %v1362
    %v2105 = vunpack.c.l.b16 %v1363
    %v2106 = vunpack.c.h.b16 %v1363
    %v2107 = vunpack.c.l.b16 %v1364
    %v2108 = vunpack.c.h.b16 %v1364
    %v2109 = vunpack.c.l.b16 %v1365
    %v2110 = vunpack.c.h.b16 %v1365
    %v2111 = vunpack.c.l.b16 %v1366
    %v2112 = vunpack.c.h.b16 %v1366
    %v2113 = vunpack.c.l.b16 %v1367
    %v2114 = vunpack.c.h.b16 %v1367
    %v2115 = vunpack.c.l.b16 %v1368
    %v2116 = vunpack.c.h.b16 %v1368
    %v2117 = vunpack.c.l.b16 %v1369
    %v2118 = vunpack.c.h.b16 %v1369
    %v2119 = vunpack.c.l.b16 %v1370
    %v2120 = vunpack.c.h.b16 %v1370
    %v2121 = vunpack.c.l.b16 %v1371
    %v2122 = vunpack.c.h.b16 %v1371
    %v2123 = vunpack.c.l.b16 %v1372
    %v2124 = vunpack.c.h.b16 %v1372
    %v2125 = vunpack.c.l.b16 %v1373
    %v2126 = vunpack.c.h.b16 %v1373
    %v2127 = vunpack.c.l.b16 %v1374
    %v2128 = vunpack.c.h.b16 %v1374
    %v2129 = vunpack.c.l.b16 %v1375
    %v2130 = vunpack.c.h.b16 %v1375
    %v2131 = vunpack.c.l.b16 %v1376
    %v2132 = vunpack.c.h.b16 %v1376
    %v2133 = vunpack.c.l.b16 %v1377
    %v2134 = vunpack.c.h.b16 %v1377
    %v2135 = vunpack.c.l.b16 %v1378
    %v2136 = vunpack.c.h.b16 %v1378
    %v2137 = vunpack.c.l.b16 %v1379
    %v2138 = vunpack.c.h.b16 %v1379
    %v2139 = vunpack.c.l.b16 %v1380
    %v2140 = vunpack.c.h.b16 %v1380
    %v2141 = vunpack.c.l.b16 %v1381
    %v2142 = vunpack.c.h.b16 %v1381
    %v2143 = vunpack.c.l.b16 %v1382
    %v2144 = vunpack.c.h.b16 %v1382
    %v2145 = vunpack.c.l.b16 %v1383
    %v2146 = vunpack.c.h.b16 %v1383
    %v2147 = vunpack.c.l.b16 %v1384
    %v2148 = vunpack.c.h.b16 %v1384
    %v2149 = vunpack.c.l.b16 %v1385
    %v2150 = vunpack.c.h.b16 %v1385
    %v2151 = vunpack.c.l.b16 %v1386
    %v2152 = vunpack.c.h.b16 %v1386
    %v2153 = vunpack.c.l.b16 %v1387
    %v2154 = vunpack.c.h.b16 %v1387
    %v2155 = vunpack.c.l.b16 %v1388
    %v2156 = vunpack.c.h.b16 %v1388
    %v2157 = vunpack.c.l.b16 %v1389
    %v2158 = vunpack.c.h.b16 %v1389
    %v2159 = vunpack.c.l.b16 %v1390
    %v2160 = vunpack.c.h.b16 %v1390
    %v2161 = vunpack.c.l.b16 %v1391
    %v2162 = vunpack.c.h.b16 %v1391
    %v2163 = vunpack.c.l.b16 %v1392
    %v2164 = vunpack.c.h.b16 %v1392
    %v2165 = vunpack.c.l.b16 %v1393
    %v2166 = vunpack.c.h.b16 %v1393
    %v2167 = vunpack.c.l.b16 %v1394
    %v2168 = vunpack.c.h.b16 %v1394
    %v2169 = vunpack.c.l.b16 %v1395
    %v2170 = vunpack.c.h.b16 %v1395
    %v2171 = vunpack.c.l.b16 %v1396
    %v2172 = vunpack.c.h.b16 %v1396
    %v2173 = vunpack.c.l.b16 %v1397
    %v2174 = vunpack.c.h.b16 %v1397
    %v2175 = vunpack.c.l.b16 %v1398
    %v2176 = vunpack.c.h.b16 %v1398
    %v2177 = vunpack.c.l.b16 %v1399
    %v2178 = vunpack.c.h.b16 %v1399
    %v2179 = vunpack.c.l.b16 %v1400
    %v2180 = vunpack.c.h.b16 %v1400
    %v2181 = vpack.c.b16 %v1677, %v1669
    %v2182 = vpack.c.b16 %v1678, %v1670
    %v2183 = vpack.c.b16 %v1679, %v1671
    %v2184 = vpack.c.b16 %v1680, %v1672
    %v2185 = vpack.c.b16 %v1681, %v1673
    %v2186 = vpack.c.b16 %v1682, %v1674
    %v2187 = vpack.c.b16 %v1683, %v1675
    %v2188 = vpack.c.b16 %v1684, %v1676
    %v2189 = vpack.c.b16 %v1693, %v1685
    %v2190 = vpack.c.b16 %v1694, %v1686
    %v2191 = vpack.c.b16 %v1695, %v1687
    %v2192 = vpack.c.b16 %v1696, %v1688
    %v2193 = vpack.c.b16 %v1697, %v1689
    %v2194 = vpack.c.b16 %v1698, %v1690
    %v2195 = vpack.c.b16 %v1699, %v1691
    %v2196 = vpack.c.b16 %v1700, %v1692
    %v2197 = vpack.c.b16 %v1709, %v1701
    %v2198 = vpack.c.b16 %v1710, %v1702
    %v2199 = vpack.c.b16 %v1711, %v1703
    %v2200 = vpack.c.b16 %v1712, %v1704
    %v2201 = vpack.c.b16 %v1713, %v1705
    %v2202 = vpack.c.b16 %v1714, %v1706
    %v2203 = vpack.c.b16 %v1715, %v1707
    %v2204 = vpack.c.b16 %v1716, %v1708
    %v2205 = vpack.c.b16 %v1725, %v1717
    %v2206 = vpack.c.b16 %v1726, %v1718
    %v2207 = vpack.c.b16 %v1727, %v1719
    %v2208 = vpack.c.b16 %v1728, %v1720
    %v2209 = vpack.c.b16 %v1729, %v1721
    %v2210 = vpack.c.b16 %v1730, %v1722
    %v2211 = vpack.c.b16 %v1731, %v1723
    %v2212 = vpack.c.b16 %v1732, %v1724
    %v2213 = vpack.c.b16 %v1741, %v1733
    %v2214 = vpack.c.b16 %v1742, %v1734
    %v2215 = vpack.c.b16 %v1743, %v1735
    %v2216 = vpack.c.b16 %v1744, %v1736
    %v2217 = vpack.c.b16 %v1745, %v1737
    %v2218 = vpack.c.b16 %v1746, %v1738
    %v2219 = vpack.c.b16 %v1747, %v1739
    %v2220 = vpack.c.b16 %v1748, %v1740
    %v2221 = vpack.c.b16 %v1757, %v1749
    %v2222 = vpack.c.b16 %v1758, %v1750
    %v2223 = vpack.c.b16 %v1759, %v1751
    %v2224 = vpack.c.b16 %v1760, %v1752
    %v2225 = vpack.c.b16 %v1761, %v1753
    %v2226 = vpack.c.b16 %v1762, %v1754
    %v2227 = vpack.c.b16 %v1763, %v1755
    %v2228 = vpack.c.b16 %v1764, %v1756
    %v2229 = vpack.c.b16 %v1773, %v1765
    %v2230 = vpack.c.b16 %v1774, %v1766
    %v2231 = vpack.c.b16 %v1775, %v1767
    %v2232 = vpack.c.b16 %v1776, %v1768
    %v2233 = vpack.c.b16 %v1777, %v1769
    %v2234 = vpack.c.b16 %v1778, %v1770
    %v2235 = vpack.c.b16 %v1779, %v1771
    %v2236 = vpack.c.b16 %v1780, %v1772
    %v2237 = vpack.c.b16 %v1789, %v1781
    %v2238 = vpack.c.b16 %v1790, %v1782
    %v2239 = vpack.c.b16 %v1791, %v1783
    %v2240 = vpack.c.b16 %v1792, %v1784
    %v2241 = vpack.c.b16 %v1793, %v1785
    %v2242 = vpack.c.b16 %v1794, %v1786
    %v2243 = vpack.c.b16 %v1795, %v1787
    %v2244 = vpack.c.b16 %v1796, %v1788
    %v2245 = vpack.c.b16 %v1805, %v1797
    %v2246 = vpack.c.b16 %v1806, %v1798
    %v2247 = vpack.c.b16 %v1807, %v1799
    %v2248 = vpack.c.b16 %v1808, %v1800
    %v2249 = vpack.c.b16 %v1809, %v1801
    %v2250 = vpack.c.b16 %v1810, %v1802
    %v2251 = vpack.c.b16 %v1811, %v1803
    %v2252 = vpack.c.b16 %v1812, %v1804
    %v2253 = vpack.c.b16 %v1821, %v1813
    %v2254 = vpack.c.b16 %v1822, %v1814
    %v2255 = vpack.c.b16 %v1823, %v1815
    %v2256 = vpack.c.b16 %v1824, %v1816
    %v2257 = vpack.c.b16 %v1825, %v1817
    %v2258 = vpack.c.b16 %v1826, %v1818
    %v2259 = vpack.c.b16 %v1827, %v1819
    %v2260 = vpack.c.b16 %v1828, %v1820
    %v2261 = vpack.c.b16 %v1837, %v1829
    %v2262 = vpack.c.b16 %v1838, %v1830
    %v2263 = vpack.c.b16 %v1839, %v1831
    %v2264 = vpack.c.b16 %v1840, %v1832
    %v2265 = vpack.c.b16 %v1841, %v1833
    %v2266 = vpack.c.b16 %v1842, %v1834
    %v2267 = vpack.c.b16 %v1843, %v1835
    %v2268 = vpack.c.b16 %v1844, %v1836
    %v2269 = vpack.c.b16 %v1853, %v1845
    %v2270 = vpack.c.b16 %v1854, %v1846
    %v2271 = vpack.c.b16 %v1855, %v1847
    %v2272 = vpack.c.b16 %v1856, %v1848
    %v2273 = vpack.c.b16 %v1857, %v1849
    %v2274 = vpack.c.b16 %v1858, %v1850
    %v2275 = vpack.c.b16 %v1859, %v1851
    %v2276 = vpack.c.b16 %v1860, %v1852
    %v2277 = vpack.c.b16 %v1869, %v1861
    %v2278 = vpack.c.b16 %v1870, %v1862
    %v2279 = vpack.c.b16 %v1871, %v1863
    %v2280 = vpack.c.b16 %v1872, %v1864
    %v2281 = vpack.c.b16 %v1873, %v1865
    %v2282 = vpack.c.b16 %v1874, %v1866
    %v2283 = vpack.c.b16 %v1875, %v1867
    %v2284 = vpack.c.b16 %v1876, %v1868
    %v2285 = vpack.c.b16 %v1885, %v1877
    %v2286 = vpack.c.b16 %v1886, %v1878
    %v2287 = vpack.c.b16 %v1887, %v1879
    %v2288 = vpack.c.b16 %v1888, %v1880
    %v2289 = vpack.c.b16 %v1889, %v1881
    %v2290 = vpack.c.b16 %v1890, %v1882
    %v2291 = vpack.c.b16 %v1891, %v1883
    %v2292 = vpack.c.b16 %v1892, %v1884
    %v2293 = vpack.c.b16 %v1901, %v1893
    %v2294 = vpack.c.b16 %v1902, %v1894
    %v2295 = vpack.c.b16 %v1903, %v1895
    %v2296 = vpack.c.b16 %v1904, %v1896
    %v2297 = vpack.c.b16 %v1905, %v1897
    %v2298 = vpack.c.b16 %v1906, %v1898
    %v2299 = vpack.c.b16 %v1907, %v1899
    %v2300 = vpack.c.b16 %v1908, %v1900
    %v2301 = vpack.c.b16 %v1917, %v1909
    %v2302 = vpack.c.b16 %v1918, %v1910
    %v2303 = vpack.c.b16 %v1919, %v1911
    %v2304 = vpack.c.b16 %v1920, %v1912
    %v2305 = vpack.c.b16 %v1921, %v1913
    %v2306 = vpack.c.b16 %v1922, %v1914
    %v2307 = vpack.c.b16 %v1923, %v1915
    %v2308 = vpack.c.b16 %v1924, %v1916
    %v2309 = vpack.c.b16 %v1933, %v1925
    %v2310 = vpack.c.b16 %v1934, %v1926
    %v2311 = vpack.c.b16 %v1935, %v1927
    %v2312 = vpack.c.b16 %v1936, %v1928
    %v2313 = vpack.c.b16 %v1937, %v1929
    %v2314 = vpack.c.b16 %v1938, %v1930
    %v2315 = vpack.c.b16 %v1939, %v1931
    %v2316 = vpack.c.b16 %v1940, %v1932
    %v2317 = vpack.c.b16 %v1949, %v1941
    %v2318 = vpack.c.b16 %v1950, %v1942
    %v2319 = vpack.c.b16 %v1951, %v1943
    %v2320 = vpack.c.b16 %v1952, %v1944
    %v2321 = vpack.c.b16 %v1953, %v1945
    %v2322 = vpack.c.b16 %v1954, %v1946
    %v2323 = vpack.c.b16 %v1955, %v1947
    %v2324 = vpack.c.b16 %v1956, %v1948
    %v2325 = vpack.c.b16 %v1965, %v1957
    %v2326 = vpack.c.b16 %v1966, %v1958
    %v2327 = vpack.c.b16 %v1967, %v1959
    %v2328 = vpack.c.b16 %v1968, %v1960
    %v2329 = vpack.c.b16 %v1969, %v1961
    %v2330 = vpack.c.b16 %v1970, %v1962
    %v2331 = vpack.c.b16 %v1971, %v1963
    %v2332 = vpack.c.b16 %v1972, %v1964
    %v2333 = vpack.c.b16 %v1981, %v1973
    %v2334 = vpack.c.b16 %v1982, %v1974
    %v2335 = vpack.c.b16 %v1983, %v1975
    %v2336 = vpack.c.b16 %v1984, %v1976
    %v2337 = vpack.c.b16 %v1985, %v1977
    %v2338 = vpack.c.b16 %v1986, %v1978
    %v2339 = vpack.c.b16 %v1987, %v1979
    %v2340 = vpack.c.b16 %v1988, %v1980
    %v2341 = vpack.c.b16 %v1997, %v1989
    %v2342 = vpack.c.b16 %v1998, %v1990
    %v2343 = vpack.c.b16 %v1999, %v1991
    %v2344 = vpack.c.b16 %v2000, %v1992
    %v2345 = vpack.c.b16 %v2001, %v1993
    %v2346 = vpack.c.b16 %v2002, %v1994
    %v2347 = vpack.c.b16 %v2003, %v1995
    %v2348 = vpack.c.b16 %v2004, %v1996
    %v2349 = vpack.c.b16 %v2013, %v2005
    %v2350 = vpack.c.b16 %v2014, %v2006
    %v2351 = vpack.c.b16 %v2015, %v2007
    %v2352 = vpack.c.b16 %v2016, %v2008
    %v2353 = vpack.c.b16 %v2017, %v2009
    %v2354 = vpack.c.b16 %v2018, %v2010
    %v2355 = vpack.c.b16 %v2019, %v2011
    %v2356 = vpack.c.b16 %v2020, %v2012
    %v2357 = vpack.c.b16 %v2029, %v2021
    %v2358 = vpack.c.b16 %v2030, %v2022
    %v2359 = vpack.c.b16 %v2031, %v2023
    %v2360 = vpack.c.b16 %v2032, %v2024
    %v2361 = vpack.c.b16 %v2033, %v2025
    %v2362 = vpack.c.b16 %v2034, %v2026
    %v2363 = vpack.c.b16 %v2035, %v2027
    %v2364 = vpack.c.b16 %v2036, %v2028
    %v2365 = vpack.c.b16 %v2045, %v2037
    %v2366 = vpack.c.b16 %v2046, %v2038
    %v2367 = vpack.c.b16 %v2047, %v2039
    %v2368 = vpack.c.b16 %v2048, %v2040
    %v2369 = vpack.c.b16 %v2049, %v2041
    %v2370 = vpack.c.b16 %v2050, %v2042
    %v2371 = vpack.c.b16 %v2051, %v2043
    %v2372 = vpack.c.b16 %v2052, %v2044
    %v2373 = vpack.c.b16 %v2061, %v2053
    %v2374 = vpack.c.b16 %v2062, %v2054
    %v2375 = vpack.c.b16 %v2063, %v2055
    %v2376 = vpack.c.b16 %v2064, %v2056
    %v2377 = vpack.c.b16 %v2065, %v2057
    %v2378 = vpack.c.b16 %v2066, %v2058
    %v2379 = vpack.c.b16 %v2067, %v2059
    %v2380 = vpack.c.b16 %v2068, %v2060
    %v2381 = vpack.c.b16 %v2077, %v2069
    %v2382 = vpack.c.b16 %v2078, %v2070
    %v2383 = vpack.c.b16 %v2079, %v2071
    %v2384 = vpack.c.b16 %v2080, %v2072
    %v2385 = vpack.c.b16 %v2081, %v2073
    %v2386 = vpack.c.b16 %v2082, %v2074
    %v2387 = vpack.c.b16 %v2083, %v2075
    %v2388 = vpack.c.b16 %v2084, %v2076
    %v2389 = vpack.c.b16 %v2093, %v2085
    %v2390 = vpack.c.b16 %v2094, %v2086
    %v2391 = vpack.c.b16 %v2095, %v2087
    %v2392 = vpack.c.b16 %v2096, %v2088
    %v2393 = vpack.c.b16 %v2097, %v2089
    %v2394 = vpack.c.b16 %v2098, %v2090
    %v2395 = vpack.c.b16 %v2099, %v2091
    %v2396 = vpack.c.b16 %v2100, %v2092
    %v2397 = vpack.c.b16 %v2109, %v2101
    %v2398 = vpack.c.b16 %v2110, %v2102
    %v2399 = vpack.c.b16 %v2111, %v2103
    %v2400 = vpack.c.b16 %v2112, %v2104
    %v2401 = vpack.c.b16 %v2113, %v2105
    %v2402 = vpack.c.b16 %v2114, %v2106
    %v2403 = vpack.c.b16 %v2115, %v2107
    %v2404 = vpack.c.b16 %v2116, %v2108
    %v2405 = vpack.c.b16 %v2125, %v2117
    %v2406 = vpack.c.b16 %v2126, %v2118
    %v2407 = vpack.c.b16 %v2127, %v2119
    %v2408 = vpack.c.b16 %v2128, %v2120
    %v2409 = vpack.c.b16 %v2129, %v2121
    %v2410 = vpack.c.b16 %v2130, %v2122
    %v2411 = vpack.c.b16 %v2131, %v2123
    %v2412 = vpack.c.b16 %v2132, %v2124
    %v2413 = vpack.c.b16 %v2141, %v2133
    %v2414 = vpack.c.b16 %v2142, %v2134
    %v2415 = vpack.c.b16 %v2143, %v2135
    %v2416 = vpack.c.b16 %v2144, %v2136
    %v2417 = vpack.c.b16 %v2145, %v2137
    %v2418 = vpack.c.b16 %v2146, %v2138
    %v2419 = vpack.c.b16 %v2147, %v2139
    %v2420 = vpack.c.b16 %v2148, %v2140
    %v2421 = vpack.c.b16 %v2157, %v2149
    %v2422 = vpack.c.b16 %v2158, %v2150
    %v2423 = vpack.c.b16 %v2159, %v2151
    %v2424 = vpack.c.b16 %v2160, %v2152
    %v2425 = vpack.c.b16 %v2161, %v2153
    %v2426 = vpack.c.b16 %v2162, %v2154
    %v2427 = vpack.c.b16 %v2163, %v2155
    %v2428 = vpack.c.b16 %v2164, %v2156
    %v2429 = vpack.c.b16 %v2173, %v2165
    %v2430 = vpack.c.b16 %v2174, %v2166
    %v2431 = vpack.c.b16 %v2175, %v2167
    %v2432 = vpack.c.b16 %v2176, %v2168
    %v2433 = vpack.c.b16 %v2177, %v2169
    %v2434 = vpack.c.b16 %v2178, %v2170
    %v2435 = vpack.c.b16 %v2179, %v2171
    %v2436 = vpack.c.b16 %v2180, %v2172
    %2693 = vmatprep.subr.bf16.mxu0 %v2238
    %2694 = vmatpush1.bf16.msra.mxu0 %v2237
    %2695 = vmatprep.subr.bf16.mxu0 %v2230
    %2696 = vmatpush1.bf16.msra.mxu0 %v2229
    %2697 = vmatprep.subr.bf16.mxu0 %v2222
    %2698 = vmatpush1.bf16.msra.mxu0 %v2221
    %2699 = vmatprep.subr.bf16.mxu0 %v2214
    %2700 = vmatpush1.bf16.msra.mxu0 %v2213
    %2701 = vmatprep.subr.bf16.mxu0 %v2206
    %2702 = vmatpush1.bf16.msra.mxu0 %v2205
    %2703 = vmatprep.subr.bf16.mxu0 %v2198
    %2704 = vmatpush1.bf16.msra.mxu0 %v2197
    %2705 = vmatprep.subr.bf16.mxu0 %v2190
    %2706 = vmatpush1.bf16.msra.mxu0 %v2189
    %2707 = vmatprep.subr.bf16.mxu0 %v2182
    %2708 = vmatpush1.bf16.msra.mxu0 %v2181
    %2709 = vmatprep.subr.bf16.mxu0 %v2302
    %2710 = vmatpush2.bf16.msra.mxu0 %v2301
    %2711 = vmatprep.subr.bf16.mxu0 %v2294
    %2712 = vmatpush2.bf16.msra.mxu0 %v2293
    %2713 = vmatprep.subr.bf16.mxu0 %v2286
    %2714 = vmatpush2.bf16.msra.mxu0 %v2285
    %2715 = vmatprep.subr.bf16.mxu0 %v2278
    %2716 = vmatpush2.bf16.msra.mxu0 %v2277
    %2717 = vmatprep.subr.bf16.mxu0 %v2270
    %2718 = vmatpush2.bf16.msra.mxu0 %v2269
    %2719 = vmatprep.subr.bf16.mxu0 %v2262
    %2720 = vmatpush2.bf16.msra.mxu0 %v2261
    %2721 = vmatprep.subr.bf16.mxu0 %v2254
    %2722 = vmatpush2.bf16.msra.mxu0 %v2253
    %2723 = vmatprep.subr.bf16.mxu0 %v2246
    %2724 = vmatpush2.bf16.msra.mxu0 %v2245
    %2725 = vmatprep.mubr.bf16.mxu0 %v1410
    %2726 = vmatmul.mubr.bf16.gmra.mxu0 %v1409
    %v2727 = vpop.f32.mrf.mxu0
    %v2728 = vadd.f32 0.0, %v2727
    %v2729 = vpop.f32.mrf.mxu0
    %v2730 = vadd.f32 0.0, %v2729
    %v2731 = vpop.f32.mrf.mxu0
    %v2732 = vpop.f32.mrf.mxu0
    %2733 = vdwg.mxu0
    %2734 = vmatprep.subr.bf16.mxu0 %v2366
    %2735 = vmatpush1.bf16.msra.mxu0 %v2365
    %2736 = vmatprep.subr.bf16.mxu0 %v2358
    %2737 = vmatpush1.bf16.msra.mxu0 %v2357
    %2738 = vmatprep.subr.bf16.mxu0 %v2350
    %2739 = vmatpush1.bf16.msra.mxu0 %v2349
    %2740 = vmatprep.subr.bf16.mxu0 %v2342
    %2741 = vmatpush1.bf16.msra.mxu0 %v2341
    %2742 = vmatprep.subr.bf16.mxu0 %v2334
    %2743 = vmatpush1.bf16.msra.mxu0 %v2333
    %2744 = vmatprep.subr.bf16.mxu0 %v2326
    %2745 = vmatpush1.bf16.msra.mxu0 %v2325
    %2746 = vmatprep.subr.bf16.mxu0 %v2318
    %2747 = vmatpush1.bf16.msra.mxu0 %v2317
    %2748 = vmatprep.subr.bf16.mxu0 %v2310
    %2749 = vmatpush1.bf16.msra.mxu0 %v2309
    %2750 = vmatprep.subr.bf16.mxu0 %v2430
    %2751 = vmatpush2.bf16.msra.mxu0 %v2429
    %2752 = vmatprep.subr.bf16.mxu0 %v2422
    %2753 = vmatpush2.bf16.msra.mxu0 %v2421
    %2754 = vmatprep.subr.bf16.mxu0 %v2414
    %2755 = vmatpush2.bf16.msra.mxu0 %v2413
    %2756 = vmatprep.subr.bf16.mxu0 %v2406
    %2757 = vmatpush2.bf16.msra.mxu0 %v2405
    %2758 = vmatprep.subr.bf16.mxu0 %v2398
    %2759 = vmatpush2.bf16.msra.mxu0 %v2397
    %2760 = vmatprep.subr.bf16.mxu0 %v2390
    %2761 = vmatpush2.bf16.msra.mxu0 %v2389
    %2762 = vmatprep.subr.bf16.mxu0 %v2382
    %2763 = vmatpush2.bf16.msra.mxu0 %v2381
    %2764 = vmatprep.subr.bf16.mxu0 %v2374
    %2765 = vmatpush2.bf16.msra.mxu0 %v2373
    %2766 = vmatprep.mubr.bf16.mxu0 %v1412
    %2767 = vmatmul.mubr.bf16.gmra.mxu0 %v1411
    %v2768 = vpop.f32.mrf.mxu0
    %v2769 = vadd.f32 %v2728, %v2768
    %v2770 = vpop.f32.mrf.mxu0
    %v2771 = vadd.f32 %v2730, %v2770
    %v2772 = vpop.f32.mrf.mxu0
    %v2773 = vpop.f32.mrf.mxu0
    %2774 = vdwg.mxu0
    %2775 = vmatprep.subr.bf16.mxu0 %v2240
    %2776 = vmatpush1.bf16.msra.mxu0 %v2239
    %2777 = vmatprep.subr.bf16.mxu0 %v2232
    %2778 = vmatpush1.bf16.msra.mxu0 %v2231
    %2779 = vmatprep.subr.bf16.mxu0 %v2224
    %2780 = vmatpush1.bf16.msra.mxu0 %v2223
    %2781 = vmatprep.subr.bf16.mxu0 %v2216
    %2782 = vmatpush1.bf16.msra.mxu0 %v2215
    %2783 = vmatprep.subr.bf16.mxu0 %v2208
    %2784 = vmatpush1.bf16.msra.mxu0 %v2207
    %2785 = vmatprep.subr.bf16.mxu0 %v2200
    %2786 = vmatpush1.bf16.msra.mxu0 %v2199
    %2787 = vmatprep.subr.bf16.mxu0 %v2192
    %2788 = vmatpush1.bf16.msra.mxu0 %v2191
    %2789 = vmatprep.subr.bf16.mxu0 %v2184
    %2790 = vmatpush1.bf16.msra.mxu0 %v2183
    %2791 = vmatprep.subr.bf16.mxu0 %v2304
    %2792 = vmatpush2.bf16.msra.mxu0 %v2303
    %2793 = vmatprep.subr.bf16.mxu0 %v2296
    %2794 = vmatpush2.bf16.msra.mxu0 %v2295
    %2795 = vmatprep.subr.bf16.mxu0 %v2288
    %2796 = vmatpush2.bf16.msra.mxu0 %v2287
    %2797 = vmatprep.subr.bf16.mxu0 %v2280
    %2798 = vmatpush2.bf16.msra.mxu0 %v2279
    %2799 = vmatprep.subr.bf16.mxu0 %v2272
    %2800 = vmatpush2.bf16.msra.mxu0 %v2271
    %2801 = vmatprep.subr.bf16.mxu0 %v2264
    %2802 = vmatpush2.bf16.msra.mxu0 %v2263
    %2803 = vmatprep.subr.bf16.mxu0 %v2256
    %2804 = vmatpush2.bf16.msra.mxu0 %v2255
    %2805 = vmatprep.subr.bf16.mxu0 %v2248
    %2806 = vmatpush2.bf16.msra.mxu0 %v2247
    %2807 = vmatprep.mubr.bf16.mxu0 %v1410
    %2808 = vmatmul.mubr.bf16.gmra.mxu0 %v1409
    %v2809 = vpop.f32.mrf.mxu0
    %v2810 = vadd.f32 0.0, %v2809
    %v2811 = vpop.f32.mrf.mxu0
    %v2812 = vadd.f32 0.0, %v2811
    %v2813 = vpop.f32.mrf.mxu0
    %v2814 = vpop.f32.mrf.mxu0
    %2815 = vdwg.mxu0
    %2816 = vmatprep.subr.bf16.mxu0 %v2368
    %2817 = vmatpush1.bf16.msra.mxu0 %v2367
    %2818 = vmatprep.subr.bf16.mxu0 %v2360
    %2819 = vmatpush1.bf16.msra.mxu0 %v2359
    %2820 = vmatprep.subr.bf16.mxu0 %v2352
    %2821 = vmatpush1.bf16.msra.mxu0 %v2351
    %2822 = vmatprep.subr.bf16.mxu0 %v2344
    %2823 = vmatpush1.bf16.msra.mxu0 %v2343
    %2824 = vmatprep.subr.bf16.mxu0 %v2336
    %2825 = vmatpush1.bf16.msra.mxu0 %v2335
    %2826 = vmatprep.subr.bf16.mxu0 %v2328
    %2827 = vmatpush1.bf16.msra.mxu0 %v2327
    %2828 = vmatprep.subr.bf16.mxu0 %v2320
    %2829 = vmatpush1.bf16.msra.mxu0 %v2319
    %2830 = vmatprep.subr.bf16.mxu0 %v2312
    %2831 = vmatpush1.bf16.msra.mxu0 %v2311
    %2832 = vmatprep.subr.bf16.mxu0 %v2432
    %2833 = vmatpush2.bf16.msra.mxu0 %v2431
    %2834 = vmatprep.subr.bf16.mxu0 %v2424
    %2835 = vmatpush2.bf16.msra.mxu0 %v2423
    %2836 = vmatprep.subr.bf16.mxu0 %v2416
    %2837 = vmatpush2.bf16.msra.mxu0 %v2415
    %2838 = vmatprep.subr.bf16.mxu0 %v2408
    %2839 = vmatpush2.bf16.msra.mxu0 %v2407
    %2840 = vmatprep.subr.bf16.mxu0 %v2400
    %2841 = vmatpush2.bf16.msra.mxu0 %v2399
    %2842 = vmatprep.subr.bf16.mxu0 %v2392
    %2843 = vmatpush2.bf16.msra.mxu0 %v2391
    %2844 = vmatprep.subr.bf16.mxu0 %v2384
    %2845 = vmatpush2.bf16.msra.mxu0 %v2383
    %2846 = vmatprep.subr.bf16.mxu0 %v2376
    %2847 = vmatpush2.bf16.msra.mxu0 %v2375
    %2848 = vmatprep.mubr.bf16.mxu0 %v1412
    %2849 = vmatmul.mubr.bf16.gmra.mxu0 %v1411
    %v2850 = vpop.f32.mrf.mxu0
    %v2851 = vadd.f32 %v2810, %v2850
    %v2852 = vpop.f32.mrf.mxu0
    %v2853 = vadd.f32 %v2812, %v2852
    %v2854 = vpop.f32.mrf.mxu0
    %v2855 = vpop.f32.mrf.mxu0
    %2856 = vdwg.mxu0
    %2857 = vmatprep.subr.bf16.mxu0 %v2242
    %2858 = vmatpush1.bf16.msra.mxu0 %v2241
    %2859 = vmatprep.subr.bf16.mxu0 %v2234
    %2860 = vmatpush1.bf16.msra.mxu0 %v2233
    %2861 = vmatprep.subr.bf16.mxu0 %v2226
    %2862 = vmatpush1.bf16.msra.mxu0 %v2225
    %2863 = vmatprep.subr.bf16.mxu0 %v2218
    %2864 = vmatpush1.bf16.msra.mxu0 %v2217
    %2865 = vmatprep.subr.bf16.mxu0 %v2210
    %2866 = vmatpush1.bf16.msra.mxu0 %v2209
    %2867 = vmatprep.subr.bf16.mxu0 %v2202
    %2868 = vmatpush1.bf16.msra.mxu0 %v2201
    %2869 = vmatprep.subr.bf16.mxu0 %v2194
    %2870 = vmatpush1.bf16.msra.mxu0 %v2193
    %2871 = vmatprep.subr.bf16.mxu0 %v2186
    %2872 = vmatpush1.bf16.msra.mxu0 %v2185
    %2873 = vmatprep.subr.bf16.mxu0 %v2306
    %2874 = vmatpush2.bf16.msra.mxu0 %v2305
    %2875 = vmatprep.subr.bf16.mxu0 %v2298
    %2876 = vmatpush2.bf16.msra.mxu0 %v2297
    %2877 = vmatprep.subr.bf16.mxu0 %v2290
    %2878 = vmatpush2.bf16.msra.mxu0 %v2289
    %2879 = vmatprep.subr.bf16.mxu0 %v2282
    %2880 = vmatpush2.bf16.msra.mxu0 %v2281
    %2881 = vmatprep.subr.bf16.mxu0 %v2274
    %2882 = vmatpush2.bf16.msra.mxu0 %v2273
    %2883 = vmatprep.subr.bf16.mxu0 %v2266
    %2884 = vmatpush2.bf16.msra.mxu0 %v2265
    %2885 = vmatprep.subr.bf16.mxu0 %v2258
    %2886 = vmatpush2.bf16.msra.mxu0 %v2257
    %2887 = vmatprep.subr.bf16.mxu0 %v2250
    %2888 = vmatpush2.bf16.msra.mxu0 %v2249
    %2889 = vmatprep.mubr.bf16.mxu0 %v1410
    %2890 = vmatmul.mubr.bf16.gmra.mxu0 %v1409
    %v2891 = vpop.f32.mrf.mxu0
    %v2892 = vadd.f32 0.0, %v2891
    %v2893 = vpop.f32.mrf.mxu0
    %v2894 = vadd.f32 0.0, %v2893
    %v2895 = vpop.f32.mrf.mxu0
    %v2896 = vpop.f32.mrf.mxu0
    %2897 = vdwg.mxu0
    %2898 = vmatprep.subr.bf16.mxu0 %v2370
    %2899 = vmatpush1.bf16.msra.mxu0 %v2369
    %2900 = vmatprep.subr.bf16.mxu0 %v2362
    %2901 = vmatpush1.bf16.msra.mxu0 %v2361
    %2902 = vmatprep.subr.bf16.mxu0 %v2354
    %2903 = vmatpush1.bf16.msra.mxu0 %v2353
    %2904 = vmatprep.subr.bf16.mxu0 %v2346
    %2905 = vmatpush1.bf16.msra.mxu0 %v2345
    %2906 = vmatprep.subr.bf16.mxu0 %v2338
    %2907 = vmatpush1.bf16.msra.mxu0 %v2337
    %2908 = vmatprep.subr.bf16.mxu0 %v2330
    %2909 = vmatpush1.bf16.msra.mxu0 %v2329
    %2910 = vmatprep.subr.bf16.mxu0 %v2322
    %2911 = vmatpush1.bf16.msra.mxu0 %v2321
    %2912 = vmatprep.subr.bf16.mxu0 %v2314
    %2913 = vmatpush1.bf16.msra.mxu0 %v2313
    %2914 = vmatprep.subr.bf16.mxu0 %v2434
    %2915 = vmatpush2.bf16.msra.mxu0 %v2433
    %2916 = vmatprep.subr.bf16.mxu0 %v2426
    %2917 = vmatpush2.bf16.msra.mxu0 %v2425
    %2918 = vmatprep.subr.bf16.mxu0 %v2418
    %2919 = vmatpush2.bf16.msra.mxu0 %v2417
    %2920 = vmatprep.subr.bf16.mxu0 %v2410
    %2921 = vmatpush2.bf16.msra.mxu0 %v2409
    %2922 = vmatprep.subr.bf16.mxu0 %v2402
    %2923 = vmatpush2.bf16.msra.mxu0 %v2401
    %2924 = vmatprep.subr.bf16.mxu0 %v2394
    %2925 = vmatpush2.bf16.msra.mxu0 %v2393
    %2926 = vmatprep.subr.bf16.mxu0 %v2386
    %2927 = vmatpush2.bf16.msra.mxu0 %v2385
    %2928 = vmatprep.subr.bf16.mxu0 %v2378
    %2929 = vmatpush2.bf16.msra.mxu0 %v2377
    %2930 = vmatprep.mubr.bf16.mxu0 %v1412
    %2931 = vmatmul.mubr.bf16.gmra.mxu0 %v1411
    %v2932 = vpop.f32.mrf.mxu0
    %v2933 = vadd.f32 %v2892, %v2932
    %v2934 = vpop.f32.mrf.mxu0
    %v2935 = vadd.f32 %v2894, %v2934
    %v2936 = vpop.f32.mrf.mxu0
    %v2937 = vpop.f32.mrf.mxu0
    %2938 = vdwg.mxu0
    %2939 = vmatprep.subr.bf16.mxu0 %v2244
    %2940 = vmatpush1.bf16.msra.mxu0 %v2243
    %2941 = vmatprep.subr.bf16.mxu0 %v2236
    %2942 = vmatpush1.bf16.msra.mxu0 %v2235
    %2943 = vmatprep.subr.bf16.mxu0 %v2228
    %2944 = vmatpush1.bf16.msra.mxu0 %v2227
    %2945 = vmatprep.subr.bf16.mxu0 %v2220
    %2946 = vmatpush1.bf16.msra.mxu0 %v2219
    %2947 = vmatprep.subr.bf16.mxu0 %v2212
    %2948 = vmatpush1.bf16.msra.mxu0 %v2211
    %2949 = vmatprep.subr.bf16.mxu0 %v2204
    %2950 = vmatpush1.bf16.msra.mxu0 %v2203
    %2951 = vmatprep.subr.bf16.mxu0 %v2196
    %2952 = vmatpush1.bf16.msra.mxu0 %v2195
    %2953 = vmatprep.subr.bf16.mxu0 %v2188
    %2954 = vmatpush1.bf16.msra.mxu0 %v2187
    %2955 = vmatprep.subr.bf16.mxu0 %v2308
    %2956 = vmatpush2.bf16.msra.mxu0 %v2307
    %2957 = vmatprep.subr.bf16.mxu0 %v2300
    %2958 = vmatpush2.bf16.msra.mxu0 %v2299
    %2959 = vmatprep.subr.bf16.mxu0 %v2292
    %2960 = vmatpush2.bf16.msra.mxu0 %v2291
    %2961 = vmatprep.subr.bf16.mxu0 %v2284
    %2962 = vmatpush2.bf16.msra.mxu0 %v2283
    %2963 = vmatprep.subr.bf16.mxu0 %v2276
    %2964 = vmatpush2.bf16.msra.mxu0 %v2275
    %2965 = vmatprep.subr.bf16.mxu0 %v2268
    %2966 = vmatpush2.bf16.msra.mxu0 %v2267
    %2967 = vmatprep.subr.bf16.mxu0 %v2260
    %2968 = vmatpush2.bf16.msra.mxu0 %v2259
    %2969 = vmatprep.subr.bf16.mxu0 %v2252
    %2970 = vmatpush2.bf16.msra.mxu0 %v2251
    %2971 = vmatprep.mubr.bf16.mxu0 %v1410
    %2972 = vmatmul.mubr.bf16.gmra.mxu0 %v1409
    %v2973 = vpop.f32.mrf.mxu0
    %v2974 = vadd.f32 0.0, %v2973
    %v2975 = vpop.f32.mrf.mxu0
    %v2976 = vadd.f32 0.0, %v2975
    %v2977 = vpop.f32.mrf.mxu0
    %v2978 = vpop.f32.mrf.mxu0
    %2979 = vdwg.mxu0
    %2980 = vmatprep.subr.bf16.mxu0 %v2372
    %2981 = vmatpush1.bf16.msra.mxu0 %v2371
    %2982 = vmatprep.subr.bf16.mxu0 %v2364
    %2983 = vmatpush1.bf16.msra.mxu0 %v2363
    %2984 = vmatprep.subr.bf16.mxu0 %v2356
    %2985 = vmatpush1.bf16.msra.mxu0 %v2355
    %2986 = vmatprep.subr.bf16.mxu0 %v2348
    %2987 = vmatpush1.bf16.msra.mxu0 %v2347
    %2988 = vmatprep.subr.bf16.mxu0 %v2340
    %2989 = vmatpush1.bf16.msra.mxu0 %v2339
    %2990 = vmatprep.subr.bf16.mxu0 %v2332
    %2991 = vmatpush1.bf16.msra.mxu0 %v2331
    %2992 = vmatprep.subr.bf16.mxu0 %v2324
    %2993 = vmatpush1.bf16.msra.mxu0 %v2323
    %2994 = vmatprep.subr.bf16.mxu0 %v2316
    %2995 = vmatpush1.bf16.msra.mxu0 %v2315
    %2996 = vmatprep.subr.bf16.mxu0 %v2436
    %2997 = vmatpush2.bf16.msra.mxu0 %v2435
    %2998 = vmatprep.subr.bf16.mxu0 %v2428
    %2999 = vmatpush2.bf16.msra.mxu0 %v2427
    %3000 = vmatprep.subr.bf16.mxu0 %v2420
    %3001 = vmatpush2.bf16.msra.mxu0 %v2419
    %3002 = vmatprep.subr.bf16.mxu0 %v2412
    %3003 = vmatpush2.bf16.msra.mxu0 %v2411
    %3004 = vmatprep.subr.bf16.mxu0 %v2404
    %3005 = vmatpush2.bf16.msra.mxu0 %v2403
    %3006 = vmatprep.subr.bf16.mxu0 %v2396
    %3007 = vmatpush2.bf16.msra.mxu0 %v2395
    %3008 = vmatprep.subr.bf16.mxu0 %v2388
    %3009 = vmatpush2.bf16.msra.mxu0 %v2387
    %3010 = vmatprep.subr.bf16.mxu0 %v2380
    %3011 = vmatpush2.bf16.msra.mxu0 %v2379
    %3012 = vmatprep.mubr.bf16.mxu0 %v1412
    %3013 = vmatmul.mubr.bf16.gmra.mxu0 %v1411
    %v3014 = vpop.f32.mrf.mxu0
    %v3015 = vadd.f32 %v2974, %v3014
    %v3016 = vpop.f32.mrf.mxu0
    %v3017 = vadd.f32 %v2976, %v3016
    %v3018 = vpop.f32.mrf.mxu0
    %v3019 = vpop.f32.mrf.mxu0
    %3020 = vdwg.mxu0
    %v3021 = vrot.slane %v2769, 4
    %v3022 = vadd.f32 %v2769, %v3021
    %v3023 = vrot.slane %v3022, 2
    %v3024 = vadd.f32 %v3022, %v3023
    %v3025 = vrot.slane %v3024, 1
    %v3026 = vadd.f32 %v3024, %v3025
    %v3027 = vrot.slane %v2771, 4
    %v3028 = vadd.f32 %v2771, %v3027
    %v3029 = vrot.slane %v3028, 2
    %v3030 = vadd.f32 %v3028, %v3029
    %v3031 = vrot.slane %v3030, 1
    %v3032 = vadd.f32 %v3030, %v3031
    %v3033 = vrot.slane %v2851, 4
    %v3034 = vadd.f32 %v2851, %v3033
    %v3035 = vrot.slane %v3034, 2
    %v3036 = vadd.f32 %v3034, %v3035
    %v3037 = vrot.slane %v3036, 1
    %v3038 = vadd.f32 %v3036, %v3037
    %v3039 = vrot.slane %v2853, 4
    %v3040 = vadd.f32 %v2853, %v3039
    %v3041 = vrot.slane %v3040, 2
    %v3042 = vadd.f32 %v3040, %v3041
    %v3043 = vrot.slane %v3042, 1
    %v3044 = vadd.f32 %v3042, %v3043
    %v3045 = vrot.slane %v2933, 4
    %v3046 = vadd.f32 %v2933, %v3045
    %v3047 = vrot.slane %v3046, 2
    %v3048 = vadd.f32 %v3046, %v3047
    %v3049 = vrot.slane %v3048, 1
    %v3050 = vadd.f32 %v3048, %v3049
    %v3051 = vrot.slane %v2935, 4
    %v3052 = vadd.f32 %v2935, %v3051
    %v3053 = vrot.slane %v3052, 2
    %v3054 = vadd.f32 %v3052, %v3053
    %v3055 = vrot.slane %v3054, 1
    %v3056 = vadd.f32 %v3054, %v3055
    %v3057 = vrot.slane %v3015, 4
    %v3058 = vadd.f32 %v3015, %v3057
    %v3059 = vrot.slane %v3058, 2
    %v3060 = vadd.f32 %v3058, %v3059
    %v3061 = vrot.slane %v3060, 1
    %v3062 = vadd.f32 %v3060, %v3061
    %v3063 = vrot.slane %v3017, 4
    %v3064 = vadd.f32 %v3017, %v3063
    %v3065 = vrot.slane %v3064, 2
    %v3066 = vadd.f32 %v3064, %v3065
    %v3067 = vrot.slane %v3066, 1
    %v3068 = vadd.f32 %v3066, %v3067
    %v3069 = vmul.f32 %v3026, %v362
    %v3070 = vmul.f32 %v3032, %v362
    %v3071 = vmul.f32 %v3038, %v362
    %v3072 = vmul.f32 %v3044, %v362
    %v3073 = vmul.f32 %v3050, %v362
    %v3074 = vmul.f32 %v3056, %v362
    %v3075 = vmul.f32 %v3062, %v362
    %v3076 = vmul.f32 %v3068, %v362
    %v3077 = vmul.f32 %v2769, %v2769
    %v3078 = vmul.f32 %v2771, %v2771
    %v3079 = vmul.f32 %v2851, %v2851
    %v3080 = vmul.f32 %v2853, %v2853
    %v3081 = vmul.f32 %v2933, %v2933
    %v3082 = vmul.f32 %v2935, %v2935
    %v3083 = vmul.f32 %v3015, %v3015
    %v3084 = vmul.f32 %v3017, %v3017
    %v3085 = vrot.slane %v3077, 4
    %v3086 = vadd.f32 %v3077, %v3085
    %v3087 = vrot.slane %v3086, 2
    %v3088 = vadd.f32 %v3086, %v3087
    %v3089 = vrot.slane %v3088, 1
    %v3090 = vadd.f32 %v3088, %v3089
    %v3091 = vrot.slane %v3078, 4
    %v3092 = vadd.f32 %v3078, %v3091
    %v3093 = vrot.slane %v3092, 2
    %v3094 = vadd.f32 %v3092, %v3093
    %v3095 = vrot.slane %v3094, 1
    %v3096 = vadd.f32 %v3094, %v3095
    %v3097 = vrot.slane %v3079, 4
    %v3098 = vadd.f32 %v3079, %v3097
    %v3099 = vrot.slane %v3098, 2
    %v3100 = vadd.f32 %v3098, %v3099
    %v3101 = vrot.slane %v3100, 1
    %v3102 = vadd.f32 %v3100, %v3101
    %v3103 = vrot.slane %v3080, 4
    %v3104 = vadd.f32 %v3080, %v3103
    %v3105 = vrot.slane %v3104, 2
    %v3106 = vadd.f32 %v3104, %v3105
    %v3107 = vrot.slane %v3106, 1
    %v3108 = vadd.f32 %v3106, %v3107
    %v3109 = vrot.slane %v3081, 4
    %v3110 = vadd.f32 %v3081, %v3109
    %v3111 = vrot.slane %v3110, 2
    %v3112 = vadd.f32 %v3110, %v3111
    %v3113 = vrot.slane %v3112, 1
    %v3114 = vadd.f32 %v3112, %v3113
    %v3115 = vrot.slane %v3082, 4
    %v3116 = vadd.f32 %v3082, %v3115
    %v3117 = vrot.slane %v3116, 2
    %v3118 = vadd.f32 %v3116, %v3117
    %v3119 = vrot.slane %v3118, 1
    %v3120 = vadd.f32 %v3118, %v3119
    %v3121 = vrot.slane %v3083, 4
    %v3122 = vadd.f32 %v3083, %v3121
    %v3123 = vrot.slane %v3122, 2
    %v3124 = vadd.f32 %v3122, %v3123
    %v3125 = vrot.slane %v3124, 1
    %v3126 = vadd.f32 %v3124, %v3125
    %v3127 = vrot.slane %v3084, 4
    %v3128 = vadd.f32 %v3084, %v3127
    %v3129 = vrot.slane %v3128, 2
    %v3130 = vadd.f32 %v3128, %v3129
    %v3131 = vrot.slane %v3130, 1
    %v3132 = vadd.f32 %v3130, %v3131
    %v3133 = vmul.f32 %v3090, %v362
    %v3134 = vmul.f32 %v3096, %v362
    %v3135 = vmul.f32 %v3102, %v362
    %v3136 = vmul.f32 %v3108, %v362
    %v3137 = vmul.f32 %v3114, %v362
    %v3138 = vmul.f32 %v3120, %v362
    %v3139 = vmul.f32 %v3126, %v362
    %v3140 = vmul.f32 %v3132, %v362
    %v3141 = vmul.f32 %v3069, %v3069
    %v3142 = vmul.f32 %v3070, %v3070
    %v3143 = vmul.f32 %v3071, %v3071
    %v3144 = vmul.f32 %v3072, %v3072
    %v3145 = vmul.f32 %v3073, %v3073
    %v3146 = vmul.f32 %v3074, %v3074
    %v3147 = vmul.f32 %v3075, %v3075
    %v3148 = vmul.f32 %v3076, %v3076
    %v3149 = vsub.f32 %v3133, %v3141
    %v3150 = vsub.f32 %v3134, %v3142
    %v3151 = vsub.f32 %v3135, %v3143
    %v3152 = vsub.f32 %v3136, %v3144
    %v3153 = vsub.f32 %v3137, %v3145
    %v3154 = vsub.f32 %v3138, %v3146
    %v3155 = vsub.f32 %v3139, %v3147
    %v3156 = vsub.f32 %v3140, %v3148
    %v3157 = vmax.f32 %v3149, 0.0
    %v3158 = vmax.f32 %v3150, 0.0
    %v3159 = vmax.f32 %v3151, 0.0
    %v3160 = vmax.f32 %v3152, 0.0
    %v3161 = vmax.f32 %v3153, 0.0
    %v3162 = vmax.f32 %v3154, 0.0
    %v3163 = vmax.f32 %v3155, 0.0
    %v3164 = vmax.f32 %v3156, 0.0
    %v3165 = vadd.f32 %v3157, 1e-05
    %v3166 = vadd.f32 %v3158, 1e-05
    %v3167 = vadd.f32 %v3159, 1e-05
    %v3168 = vadd.f32 %v3160, 1e-05
    %v3169 = vadd.f32 %v3161, 1e-05
    %v3170 = vadd.f32 %v3162, 1e-05
    %v3171 = vadd.f32 %v3163, 1e-05
    %v3172 = vadd.f32 %v3164, 1e-05
    %v3173 = vrsqrt.pop %v3165
    %v3174 = vrsqrt.pop %v3166
    %v3175 = vrsqrt.pop %v3167
    %v3176 = vrsqrt.pop %v3168
    %v3177 = vrsqrt.pop %v3169
    %v3178 = vrsqrt.pop %v3170
    %v3179 = vrsqrt.pop %v3171
    %v3180 = vrsqrt.pop %v3172
    %v3189 = vcombine.low %v3173, %v3174
    %v3190 = vcombine.low %v3175, %v3176
    %v3191 = vcombine.low %v3177, %v3178
    %v3192 = vcombine.low %v3179, %v3180
    %v3194 = vunpack.c.l.s4 1966171168
    %v3195 = vunpack.c.0.s8 %v3194
    %v3196 = vlaneseq
    %v3197 = vshrl.u32 %v3196, 7
    %v3198 = vsub.s32 %v3195, %v3197
    %v3199 = vrot.slane %v3189, %v3198
    %v3201 = vunpack.c.l.s4 1966171168
    %v3202 = vunpack.c.0.s8 %v3201
    %v3203 = vlaneseq
    %v3204 = vshrl.u32 %v3203, 7
    %v3205 = vsub.s32 %v3202, %v3204
    %v3206 = vrot.slane %v3190, %v3205
    %v3208 = vunpack.c.l.s4 1966171168
    %v3209 = vunpack.c.0.s8 %v3208
    %v3210 = vlaneseq
    %v3211 = vshrl.u32 %v3210, 7
    %v3212 = vsub.s32 %v3209, %v3211
    %v3213 = vrot.slane %v3191, %v3212
    %v3215 = vunpack.c.l.s4 1966171168
    %v3216 = vunpack.c.0.s8 %v3215
    %v3217 = vlaneseq
    %v3218 = vshrl.u32 %v3217, 7
    %v3219 = vsub.s32 %v3216, %v3218
    %v3220 = vrot.slane %v3192, %v3219
    %v3221 = vcombine.low %v3199, %v3206
    %v3222 = vcombine.low %v3213, %v3220
    %v3224 = vunpack.c.l.s4 1966171168
    %v3225 = vunpack.c.0.s8 %v3224
    %v3226 = vlaneseq
    %v3227 = vshrl.u32 %v3226, 7
    %v3228 = vsub.s32 %v3225, %v3227
    %v3229 = vrot.slane %v3221, %v3228
    %v3231 = vunpack.c.l.s4 1966171168
    %v3232 = vunpack.c.0.s8 %v3231
    %v3233 = vlaneseq
    %v3234 = vshrl.u32 %v3233, 7
    %v3235 = vsub.s32 %v3232, %v3234
    %v3236 = vrot.slane %v3222, %v3235
    %v3237 = vcombine.low %v3229, %v3236
    %v3239 = vmul.f32 %v1404, %v3237
    %v3241 = vlaneseq
    %v3242 = vshrl.u32 %v3241, 7
    %v3243 = vsub.s32 0, %v3242
    %v3244 = vrot.slane %v3239, %v3243
    %v3245 = vlaneseq
    %v3246 = vshrl.u32 %v3245, 7
    %v3247 = vsub.s32 1, %v3246
    %v3248 = vrot.slane %v3239, %v3247
    %v3249 = vlaneseq
    %v3250 = vshrl.u32 %v3249, 7
    %v3251 = vsub.s32 2, %v3250
    %v3252 = vrot.slane %v3239, %v3251
    %v3253 = vlaneseq
    %v3254 = vshrl.u32 %v3253, 7
    %v3255 = vsub.s32 3, %v3254
    %v3256 = vrot.slane %v3239, %v3255
    %v3257 = vlaneseq
    %v3258 = vshrl.u32 %v3257, 7
    %v3259 = vsub.s32 4, %v3258
    %v3260 = vrot.slane %v3239, %v3259
    %v3261 = vlaneseq
    %v3262 = vshrl.u32 %v3261, 7
    %v3263 = vsub.s32 5, %v3262
    %v3264 = vrot.slane %v3239, %v3263
    %v3265 = vlaneseq
    %v3266 = vshrl.u32 %v3265, 7
    %v3267 = vsub.s32 6, %v3266
    %v3268 = vrot.slane %v3239, %v3267
    %v3269 = vlaneseq
    %v3270 = vshrl.u32 %v3269, 7
    %v3271 = vsub.s32 7, %v3270
    %v3272 = vrot.slane %v3239, %v3271
    %v3281 = vmul.f32 %v3069, %v3244
    %v3282 = vmul.f32 %v3070, %v3248
    %v3283 = vmul.f32 %v3071, %v3252
    %v3284 = vmul.f32 %v3072, %v3256
    %v3285 = vmul.f32 %v3073, %v3260
    %v3286 = vmul.f32 %v3074, %v3264
    %v3287 = vmul.f32 %v3075, %v3268
    %v3288 = vmul.f32 %v3076, %v3272
    %v3297 = vcombine.low %v3281, %v3282
    %v3298 = vcombine.low %v3283, %v3284
    %v3299 = vcombine.low %v3285, %v3286
    %v3300 = vcombine.low %v3287, %v3288
    %v3302 = vunpack.c.l.s4 1966171168
    %v3303 = vunpack.c.0.s8 %v3302
    %v3304 = vlaneseq
    %v3305 = vshrl.u32 %v3304, 7
    %v3306 = vsub.s32 %v3303, %v3305
    %v3307 = vrot.slane %v3297, %v3306
    %v3309 = vunpack.c.l.s4 1966171168
    %v3310 = vunpack.c.0.s8 %v3309
    %v3311 = vlaneseq
    %v3312 = vshrl.u32 %v3311, 7
    %v3313 = vsub.s32 %v3310, %v3312
    %v3314 = vrot.slane %v3298, %v3313
    %v3316 = vunpack.c.l.s4 1966171168
    %v3317 = vunpack.c.0.s8 %v3316
    %v3318 = vlaneseq
    %v3319 = vshrl.u32 %v3318, 7
    %v3320 = vsub.s32 %v3317, %v3319
    %v3321 = vrot.slane %v3299, %v3320
    %v3323 = vunpack.c.l.s4 1966171168
    %v3324 = vunpack.c.0.s8 %v3323
    %v3325 = vlaneseq
    %v3326 = vshrl.u32 %v3325, 7
    %v3327 = vsub.s32 %v3324, %v3326
    %v3328 = vrot.slane %v3300, %v3327
    %v3329 = vcombine.low %v3307, %v3314
    %v3330 = vcombine.low %v3321, %v3328
    %v3332 = vunpack.c.l.s4 1966171168
    %v3333 = vunpack.c.0.s8 %v3332
    %v3334 = vlaneseq
    %v3335 = vshrl.u32 %v3334, 7
    %v3336 = vsub.s32 %v3333, %v3335
    %v3337 = vrot.slane %v3329, %v3336
    %v3339 = vunpack.c.l.s4 1966171168
    %v3340 = vunpack.c.0.s8 %v3339
    %v3341 = vlaneseq
    %v3342 = vshrl.u32 %v3341, 7
    %v3343 = vsub.s32 %v3340, %v3342
    %v3344 = vrot.slane %v3330, %v3343
    %v3345 = vcombine.low %v3337, %v3344
    %v3347 = vsub.f32 %v1408, %v3345
    %v3348 = vmul.f32 %v2769, %v3244
    %v3349 = vmul.f32 %v2771, %v3248
    %v3350 = vmul.f32 %v2851, %v3252
    %v3351 = vmul.f32 %v2853, %v3256
    %v3352 = vmul.f32 %v2933, %v3260
    %v3353 = vmul.f32 %v2935, %v3264
    %v3354 = vmul.f32 %v3015, %v3268
    %v3355 = vmul.f32 %v3017, %v3272
    %v3357 = vlaneseq
    %v3358 = vshrl.u32 %v3357, 7
    %v3359 = vsub.s32 0, %v3358
    %v3360 = vrot.slane %v3347, %v3359
    %v3361 = vlaneseq
    %v3362 = vshrl.u32 %v3361, 7
    %v3363 = vsub.s32 1, %v3362
    %v3364 = vrot.slane %v3347, %v3363
    %v3365 = vlaneseq
    %v3366 = vshrl.u32 %v3365, 7
    %v3367 = vsub.s32 2, %v3366
    %v3368 = vrot.slane %v3347, %v3367
    %v3369 = vlaneseq
    %v3370 = vshrl.u32 %v3369, 7
    %v3371 = vsub.s32 3, %v3370
    %v3372 = vrot.slane %v3347, %v3371
    %v3373 = vlaneseq
    %v3374 = vshrl.u32 %v3373, 7
    %v3375 = vsub.s32 4, %v3374
    %v3376 = vrot.slane %v3347, %v3375
    %v3377 = vlaneseq
    %v3378 = vshrl.u32 %v3377, 7
    %v3379 = vsub.s32 5, %v3378
    %v3380 = vrot.slane %v3347, %v3379
    %v3381 = vlaneseq
    %v3382 = vshrl.u32 %v3381, 7
    %v3383 = vsub.s32 6, %v3382
    %v3384 = vrot.slane %v3347, %v3383
    %v3385 = vlaneseq
    %v3386 = vshrl.u32 %v3385, 7
    %v3387 = vsub.s32 7, %v3386
    %v3388 = vrot.slane %v3347, %v3387
    %v3397 = vadd.f32 %v3348, %v3360
    %v3398 = vadd.f32 %v3349, %v3364
    %v3399 = vadd.f32 %v3350, %v3368
    %v3400 = vadd.f32 %v3351, %v3372
    %v3401 = vadd.f32 %v3352, %v3376
    %v3402 = vadd.f32 %v3353, %v3380
    %v3403 = vadd.f32 %v3354, %v3384
    %v3404 = vadd.f32 %v3355, %v3388
    %vm3405 = vcmp.gt.f32.partialorder %v3397, 0.0
    %vm3406 = vcmp.gt.f32.partialorder %v3398, 0.0
    %vm3407 = vcmp.gt.f32.partialorder %v3399, 0.0
    %vm3408 = vcmp.gt.f32.partialorder %v3400, 0.0
    %vm3409 = vcmp.gt.f32.partialorder %v3401, 0.0
    %vm3410 = vcmp.gt.f32.partialorder %v3402, 0.0
    %vm3411 = vcmp.gt.f32.partialorder %v3403, 0.0
    %vm3412 = vcmp.gt.f32.partialorder %v3404, 0.0
    %v3413 = vmul.f32 %v3397, 0.2
    %v3414 = vmul.f32 %v3398, 0.2
    %v3415 = vmul.f32 %v3399, 0.2
    %v3416 = vmul.f32 %v3400, 0.2
    %v3417 = vmul.f32 %v3401, 0.2
    %v3418 = vmul.f32 %v3402, 0.2
    %v3419 = vmul.f32 %v3403, 0.2
    %v3420 = vmul.f32 %v3404, 0.2
    %v3421 = vsel %vm3405, %v3397, %v3413
    %v3422 = vsel %vm3406, %v3398, %v3414
    %v3423 = vsel %vm3407, %v3399, %v3415
    %v3424 = vsel %vm3408, %v3400, %v3416
    %v3425 = vsel %vm3409, %v3401, %v3417
    %v3426 = vsel %vm3410, %v3402, %v3418
    %v3427 = vsel %vm3411, %v3403, %v3419
    %v3428 = vsel %vm3412, %v3404, %v3420
    %s3429 = smul.u32 4, 128
    %s3430 = smul.u32 %s3429, 7
    %s3431 = sshll.u32 %s3430, 4
    %3432 = dma.done %s87, %s3431
    %v3433 = vpack.c.bf16 %v3421, %v3421
    %v3434 = vpack.c.bf16 %v3422, %v3422
    %v3435 = vpack.c.bf16 %v3423, %v3423
    %v3436 = vpack.c.bf16 %v3424, %v3424
    %v3437 = vpack.c.bf16 %v3425, %v3425
    %v3438 = vpack.c.bf16 %v3426, %v3426
    %v3439 = vpack.c.bf16 %v3427, %v3427
    %v3440 = vpack.c.bf16 %v3428, %v3428
    %v3441 = vld [vmem:[#allocation3] sm:$0xff]
    %v3442 = vld [vmem:[#allocation3 + $0x8] sm:$0xff]
    %v3443 = vld [vmem:[#allocation3 + $0x10] sm:$0xff]
    %v3444 = vld [vmem:[#allocation3 + $0x18] sm:$0xf]
    %v3445 = vld [vmem:[#allocation3 + $0x1c] sm:$0xff]
    %v3446 = vld [vmem:[#allocation3 + $0x24] sm:$0xff]
    %v3447 = vld [vmem:[#allocation3 + $0x2c] sm:$0xff]
    %v3448 = vld [vmem:[#allocation3 + $0x34] sm:$0xf]
    %v3449 = vld [vmem:[#allocation3 + $0x38] sm:$0xff]
    %v3450 = vld [vmem:[#allocation3 + $0x40] sm:$0xff]
    %v3451 = vld [vmem:[#allocation3 + $0x48] sm:$0xff]
    %v3452 = vld [vmem:[#allocation3 + $0x50] sm:$0xf]
    %v3453 = vld [vmem:[#allocation3 + $0x54] sm:$0xff]
    %v3454 = vld [vmem:[#allocation3 + $0x5c] sm:$0xff]
    %v3455 = vld [vmem:[#allocation3 + $0x64] sm:$0xff]
    %v3456 = vld [vmem:[#allocation3 + $0x6c] sm:$0xf]
    %v3457 = vld [vmem:[#allocation3 + $0x70] sm:$0xff]
    %v3458 = vld [vmem:[#allocation3 + $0x78] sm:$0xff]
    %v3459 = vld [vmem:[#allocation3 + $0x80] sm:$0xff]
    %v3460 = vld [vmem:[#allocation3 + $0x88] sm:$0xf]
    %v3461 = vld [vmem:[#allocation3 + $0x8c] sm:$0xff]
    %v3462 = vld [vmem:[#allocation3 + $0x94] sm:$0xff]
    %v3463 = vld [vmem:[#allocation3 + $0x9c] sm:$0xff]
    %v3464 = vld [vmem:[#allocation3 + $0xa4] sm:$0xf]
    %v3465 = vld [vmem:[#allocation3 + $0xa8] sm:$0xff]
    %v3466 = vld [vmem:[#allocation3 + $0xb0] sm:$0xff]
    %v3467 = vld [vmem:[#allocation3 + $0xb8] sm:$0xff]
    %v3468 = vld [vmem:[#allocation3 + $0xc0] sm:$0xf]
    %v3469 = vld [vmem:[#allocation3 + $0xc4] sm:$0xff]
    %v3470 = vld [vmem:[#allocation3 + $0xcc] sm:$0xff]
    %v3471 = vld [vmem:[#allocation3 + $0xd4] sm:$0xff]
    %v3472 = vld [vmem:[#allocation3 + $0xdc] sm:$0xf]
    %v3473 = vld [vmem:[#allocation3 + $0xe0] sm:$0xff]
    %v3474 = vld [vmem:[#allocation3 + $0xe8] sm:$0xff]
    %v3475 = vld [vmem:[#allocation3 + $0xf0] sm:$0xff]
    %v3476 = vld [vmem:[#allocation3 + $0xf8] sm:$0xf]
    %v3477 = vld [vmem:[#allocation3 + $0xfc] sm:$0xff]
    %v3478 = vld [vmem:[#allocation3 + $0x104] sm:$0xff]
    %v3479 = vld [vmem:[#allocation3 + $0x10c] sm:$0xff]
    %v3480 = vld [vmem:[#allocation3 + $0x114] sm:$0xf]
    %v3481 = vld [vmem:[#allocation3 + $0x118] sm:$0xff]
    %v3482 = vld [vmem:[#allocation3 + $0x120] sm:$0xff]
    %v3483 = vld [vmem:[#allocation3 + $0x128] sm:$0xff]
    %v3484 = vld [vmem:[#allocation3 + $0x130] sm:$0xf]
    %v3485 = vld [vmem:[#allocation3 + $0x134] sm:$0xff]
    %v3486 = vld [vmem:[#allocation3 + $0x13c] sm:$0xff]
    %v3487 = vld [vmem:[#allocation3 + $0x144] sm:$0xff]
    %v3488 = vld [vmem:[#allocation3 + $0x14c] sm:$0xf]
    %v3489 = vld [vmem:[#allocation3 + $0x150] sm:$0xff]
    %v3490 = vld [vmem:[#allocation3 + $0x158] sm:$0xff]
    %v3491 = vld [vmem:[#allocation3 + $0x160] sm:$0xff]
    %v3492 = vld [vmem:[#allocation3 + $0x168] sm:$0xf]
    %v3493 = vld [vmem:[#allocation3 + $0x16c] sm:$0xff]
    %v3494 = vld [vmem:[#allocation3 + $0x174] sm:$0xff]
    %v3495 = vld [vmem:[#allocation3 + $0x17c] sm:$0xff]
    %v3496 = vld [vmem:[#allocation3 + $0x184] sm:$0xf]
    %v3497 = vld [vmem:[#allocation3 + $0x188] sm:$0xff]
    %v3498 = vld [vmem:[#allocation3 + $0x190] sm:$0xff]
    %v3499 = vld [vmem:[#allocation3 + $0x198] sm:$0xff]
    %v3500 = vld [vmem:[#allocation3 + $0x1a0] sm:$0xf]
    %v3501 = vld [vmem:[#allocation3 + $0x1a4] sm:$0xff]
    %v3502 = vld [vmem:[#allocation3 + $0x1ac] sm:$0xff]
    %v3503 = vld [vmem:[#allocation3 + $0x1b4] sm:$0xff]
    %v3504 = vld [vmem:[#allocation3 + $0x1bc] sm:$0xf]
    %v3505 = vld [vmem:[#allocation3 + $0x1c0] sm:$0xff]
    %v3506 = vld [vmem:[#allocation3 + $0x1c8] sm:$0xff]
    %v3507 = vld [vmem:[#allocation3 + $0x1d0] sm:$0xff]
    %v3508 = vld [vmem:[#allocation3 + $0x1d8] sm:$0xf]
    %v3509 = vld [vmem:[#allocation3 + $0x1dc] sm:$0xff]
    %v3510 = vld [vmem:[#allocation3 + $0x1e4] sm:$0xff]
    %v3511 = vld [vmem:[#allocation3 + $0x1ec] sm:$0xff]
    %v3512 = vld [vmem:[#allocation3 + $0x1f4] sm:$0xf]
    %v3513 = vld [vmem:[#allocation3 + $0x1f8] sm:$0xff]
    %v3514 = vld [vmem:[#allocation3 + $0x200] sm:$0xff]
    %v3515 = vld [vmem:[#allocation3 + $0x208] sm:$0xff]
    %v3516 = vld [vmem:[#allocation3 + $0x210] sm:$0xf]
    %v3517 = vld [vmem:[#allocation3 + $0x214] sm:$0xff]
    %v3518 = vld [vmem:[#allocation3 + $0x21c] sm:$0xff]
    %v3519 = vld [vmem:[#allocation3 + $0x224] sm:$0xff]
    %v3520 = vld [vmem:[#allocation3 + $0x22c] sm:$0xf]
    %v3521 = vld [vmem:[#allocation3 + $0x230] sm:$0xff]
    %v3522 = vld [vmem:[#allocation3 + $0x238] sm:$0xff]
    %v3523 = vld [vmem:[#allocation3 + $0x240] sm:$0xff]
    %v3524 = vld [vmem:[#allocation3 + $0x248] sm:$0xf]
    %v3525 = vld [vmem:[#allocation3 + $0x24c] sm:$0xff]
    %v3526 = vld [vmem:[#allocation3 + $0x254] sm:$0xff]
    %v3527 = vld [vmem:[#allocation3 + $0x25c] sm:$0xff]
    %v3528 = vld [vmem:[#allocation3 + $0x264] sm:$0xf]
    %v3529 = vld [vmem:[#allocation3 + $0x268] sm:$0xff]
    %v3530 = vld [vmem:[#allocation3 + $0x270] sm:$0xff]
    %v3531 = vld [vmem:[#allocation3 + $0x278] sm:$0xff]
    %v3532 = vld [vmem:[#allocation3 + $0x280] sm:$0xf]
    %v3533 = vld [vmem:[#allocation3 + $0x284] sm:$0xff]
    %v3534 = vld [vmem:[#allocation3 + $0x28c] sm:$0xff]
    %v3535 = vld [vmem:[#allocation3 + $0x294] sm:$0xff]
    %v3536 = vld [vmem:[#allocation3 + $0x29c] sm:$0xf]
    %v3537 = vld [vmem:[#allocation3 + $0x2a0] sm:$0xff]
    %v3538 = vld [vmem:[#allocation3 + $0x2a8] sm:$0xff]
    %v3539 = vld [vmem:[#allocation3 + $0x2b0] sm:$0xff]
    %v3540 = vld [vmem:[#allocation3 + $0x2b8] sm:$0xf]
    %v3541 = vld [vmem:[#allocation3 + $0x2bc] sm:$0xff]
    %v3542 = vld [vmem:[#allocation3 + $0x2c4] sm:$0xff]
    %v3543 = vld [vmem:[#allocation3 + $0x2cc] sm:$0xff]
    %v3544 = vld [vmem:[#allocation3 + $0x2d4] sm:$0xf]
    %v3545 = vld [vmem:[#allocation3 + $0x2d8] sm:$0xff]
    %v3546 = vld [vmem:[#allocation3 + $0x2e0] sm:$0xff]
    %v3547 = vld [vmem:[#allocation3 + $0x2e8] sm:$0xff]
    %v3548 = vld [vmem:[#allocation3 + $0x2f0] sm:$0xf]
    %v3549 = vld [vmem:[#allocation3 + $0x2f4] sm:$0xff]
    %v3550 = vld [vmem:[#allocation3 + $0x2fc] sm:$0xff]
    %v3551 = vld [vmem:[#allocation3 + $0x304] sm:$0xff]
    %v3552 = vld [vmem:[#allocation3 + $0x30c] sm:$0xf]
    %v3553 = vld [vmem:[#allocation3 + $0x310] sm:$0xff]
    %v3554 = vld [vmem:[#allocation3 + $0x318] sm:$0xff]
    %v3555 = vld [vmem:[#allocation3 + $0x320] sm:$0xff]
    %v3556 = vld [vmem:[#allocation3 + $0x328] sm:$0xf]
    %v3557 = vld [vmem:[#allocation3 + $0x32c] sm:$0xff]
    %v3558 = vld [vmem:[#allocation3 + $0x334] sm:$0xff]
    %v3559 = vld [vmem:[#allocation3 + $0x33c] sm:$0xff]
    %v3560 = vld [vmem:[#allocation3 + $0x344] sm:$0xf]
    %v3561 = vld [vmem:[#allocation3 + $0x348] sm:$0xff]
    %v3562 = vld [vmem:[#allocation3 + $0x350] sm:$0xff]
    %v3563 = vld [vmem:[#allocation3 + $0x358] sm:$0xff]
    %v3564 = vld [vmem:[#allocation3 + $0x360] sm:$0xf]
    %v3565 = vld [vmem:[#allocation3 + $0x364] sm:$0xff]
    %v3566 = vld [vmem:[#allocation3 + $0x36c] sm:$0xff]
    %v3567 = vld [vmem:[#allocation3 + $0x374] sm:$0xff]
    %v3568 = vld [vmem:[#allocation3 + $0x37c] sm:$0xf]
    %v3569 = vld [vmem:[#allocation3 + $0x380] sm:$0xff]
    %v3570 = vld [vmem:[#allocation3 + $0x388] sm:$0xff]
    %v3571 = vld [vmem:[#allocation3 + $0x390] sm:$0xff]
    %v3572 = vld [vmem:[#allocation3 + $0x398] sm:$0xf]
    %v3573 = vld [vmem:[#allocation3 + $0x39c] sm:$0xff]
    %v3574 = vld [vmem:[#allocation3 + $0x3a4] sm:$0xff]
    %v3575 = vld [vmem:[#allocation3 + $0x3ac] sm:$0xff]
    %v3576 = vld [vmem:[#allocation3 + $0x3b4] sm:$0xf]
    %v3577 = vld [vmem:[#allocation3 + $0x3b8] sm:$0xff]
    %v3578 = vld [vmem:[#allocation3 + $0x3c0] sm:$0xff]
    %v3579 = vld [vmem:[#allocation3 + $0x3c8] sm:$0xff]
    %v3580 = vld [vmem:[#allocation3 + $0x3d0] sm:$0xf]
    %v3581 = vld [vmem:[#allocation3 + $0x3d4] sm:$0xff]
    %v3582 = vld [vmem:[#allocation3 + $0x3dc] sm:$0xff]
    %v3583 = vld [vmem:[#allocation3 + $0x3e4] sm:$0xff]
    %v3584 = vld [vmem:[#allocation3 + $0x3ec] sm:$0xf]
    %v3585 = vld [vmem:[#allocation3 + $0x3f0] sm:$0xff]
    %v3586 = vld [vmem:[#allocation3 + $0x3f8] sm:$0xff]
    %v3587 = vld [vmem:[#allocation3 + $0x400] sm:$0xff]
    %v3588 = vld [vmem:[#allocation3 + $0x408] sm:$0xf]
    %v3589 = vld [vmem:[#allocation3 + $0x40c] sm:$0xff]
    %v3590 = vld [vmem:[#allocation3 + $0x414] sm:$0xff]
    %v3591 = vld [vmem:[#allocation3 + $0x41c] sm:$0xff]
    %v3592 = vld [vmem:[#allocation3 + $0x424] sm:$0xf]
    %v3593 = vld [vmem:[#allocation3 + $0x428] sm:$0xff]
    %v3594 = vld [vmem:[#allocation3 + $0x430] sm:$0xff]
    %v3595 = vld [vmem:[#allocation3 + $0x438] sm:$0xff]
    %v3596 = vld [vmem:[#allocation3 + $0x440] sm:$0xf]
    %v3597 = vld [vmem:[#allocation3 + $0x444] sm:$0xff]
    %v3598 = vld [vmem:[#allocation3 + $0x44c] sm:$0xff]
    %v3599 = vld [vmem:[#allocation3 + $0x454] sm:$0xff]
    %v3600 = vld [vmem:[#allocation3 + $0x45c] sm:$0xf]
    %v3601 = vld [vmem:[#allocation3 + $0x460] sm:$0xff]
    %v3602 = vld [vmem:[#allocation3 + $0x468] sm:$0xff]
    %v3603 = vld [vmem:[#allocation3 + $0x470] sm:$0xff]
    %v3604 = vld [vmem:[#allocation3 + $0x478] sm:$0xf]
    %v3605 = vld [vmem:[#allocation3 + $0x47c] sm:$0xff]
    %v3606 = vld [vmem:[#allocation3 + $0x484] sm:$0xff]
    %v3607 = vld [vmem:[#allocation3 + $0x48c] sm:$0xff]
    %v3608 = vld [vmem:[#allocation3 + $0x494] sm:$0xf]
    %v3609 = vld [vmem:[#allocation3 + $0x498] sm:$0xff]
    %v3610 = vld [vmem:[#allocation3 + $0x4a0] sm:$0xff]
    %v3611 = vld [vmem:[#allocation3 + $0x4a8] sm:$0xff]
    %v3612 = vld [vmem:[#allocation3 + $0x4b0] sm:$0xf]
    %v3613 = vld [vmem:[#allocation3 + $0x4b4] sm:$0xff]
    %v3614 = vld [vmem:[#allocation3 + $0x4bc] sm:$0xff]
    %v3615 = vld [vmem:[#allocation3 + $0x4c4] sm:$0xff]
    %v3616 = vld [vmem:[#allocation3 + $0x4cc] sm:$0xf]
    %v3617 = vld [vmem:[#allocation3 + $0x4d0] sm:$0xff]
    %v3618 = vld [vmem:[#allocation3 + $0x4d8] sm:$0xff]
    %v3619 = vld [vmem:[#allocation3 + $0x4e0] sm:$0xff]
    %v3620 = vld [vmem:[#allocation3 + $0x4e8] sm:$0xf]
    %v3621 = vld [vmem:[#allocation3 + $0x4ec] sm:$0xff]
    %v3622 = vld [vmem:[#allocation3 + $0x4f4] sm:$0xff]
    %v3623 = vld [vmem:[#allocation3 + $0x4fc] sm:$0xff]
    %v3624 = vld [vmem:[#allocation3 + $0x504] sm:$0xf]
    %v3625 = vld [vmem:[#allocation3 + $0x508] sm:$0xff]
    %v3626 = vld [vmem:[#allocation3 + $0x510] sm:$0xff]
    %v3627 = vld [vmem:[#allocation3 + $0x518] sm:$0xff]
    %v3628 = vld [vmem:[#allocation3 + $0x520] sm:$0xf]
    %v3629 = vld [vmem:[#allocation3 + $0x524] sm:$0xff]
    %v3630 = vld [vmem:[#allocation3 + $0x52c] sm:$0xff]
    %v3631 = vld [vmem:[#allocation3 + $0x534] sm:$0xff]
    %v3632 = vld [vmem:[#allocation3 + $0x53c] sm:$0xf]
    %v3633 = vld [vmem:[#allocation3 + $0x540] sm:$0xff]
    %v3634 = vld [vmem:[#allocation3 + $0x548] sm:$0xff]
    %v3635 = vld [vmem:[#allocation3 + $0x550] sm:$0xff]
    %v3636 = vld [vmem:[#allocation3 + $0x558] sm:$0xf]
    %v3637 = vld [vmem:[#allocation3 + $0x55c] sm:$0xff]
    %v3638 = vld [vmem:[#allocation3 + $0x564] sm:$0xff]
    %v3639 = vld [vmem:[#allocation3 + $0x56c] sm:$0xff]
    %v3640 = vld [vmem:[#allocation3 + $0x574] sm:$0xf]
    %v3641 = vld [vmem:[#allocation3 + $0x578] sm:$0xff]
    %v3642 = vld [vmem:[#allocation3 + $0x580] sm:$0xff]
    %v3643 = vld [vmem:[#allocation3 + $0x588] sm:$0xff]
    %v3644 = vld [vmem:[#allocation3 + $0x590] sm:$0xf]
    %v3645 = vld [vmem:[#allocation3 + $0x594] sm:$0xff]
    %v3646 = vld [vmem:[#allocation3 + $0x59c] sm:$0xff]
    %v3647 = vld [vmem:[#allocation3 + $0x5a4] sm:$0xff]
    %v3648 = vld [vmem:[#allocation3 + $0x5ac] sm:$0xf]
    %v3649 = vld [vmem:[#allocation3 + $0x5b0] sm:$0xff]
    %v3650 = vld [vmem:[#allocation3 + $0x5b8] sm:$0xff]
    %v3651 = vld [vmem:[#allocation3 + $0x5c0] sm:$0xff]
    %v3652 = vld [vmem:[#allocation3 + $0x5c8] sm:$0xf]
    %v3653 = vld [vmem:[#allocation3 + $0x5cc] sm:$0xff]
    %v3654 = vld [vmem:[#allocation3 + $0x5d4] sm:$0xff]
    %v3655 = vld [vmem:[#allocation3 + $0x5dc] sm:$0xff]
    %v3656 = vld [vmem:[#allocation3 + $0x5e4] sm:$0xf]
    %v3657 = vld [vmem:[#allocation3 + $0x5e8] sm:$0xff]
    %v3658 = vld [vmem:[#allocation3 + $0x5f0] sm:$0xff]
    %v3659 = vld [vmem:[#allocation3 + $0x5f8] sm:$0xff]
    %v3660 = vld [vmem:[#allocation3 + $0x600] sm:$0xf]
    %v3661 = vld [vmem:[#allocation3 + $0x604] sm:$0xff]
    %v3662 = vld [vmem:[#allocation3 + $0x60c] sm:$0xff]
    %v3663 = vld [vmem:[#allocation3 + $0x614] sm:$0xff]
    %v3664 = vld [vmem:[#allocation3 + $0x61c] sm:$0xf]
    %v3665 = vld [vmem:[#allocation3 + $0x620] sm:$0xff]
    %v3666 = vld [vmem:[#allocation3 + $0x628] sm:$0xff]
    %v3667 = vld [vmem:[#allocation3 + $0x630] sm:$0xff]
    %v3668 = vld [vmem:[#allocation3 + $0x638] sm:$0xf]
    %v3669 = vld [vmem:[#allocation3 + $0x63c] sm:$0xff]
    %v3670 = vld [vmem:[#allocation3 + $0x644] sm:$0xff]
    %v3671 = vld [vmem:[#allocation3 + $0x64c] sm:$0xff]
    %v3672 = vld [vmem:[#allocation3 + $0x654] sm:$0xf]
    %v3673 = vld [vmem:[#allocation3 + $0x658] sm:$0xff]
    %v3674 = vld [vmem:[#allocation3 + $0x660] sm:$0xff]
    %v3675 = vld [vmem:[#allocation3 + $0x668] sm:$0xff]
    %v3676 = vld [vmem:[#allocation3 + $0x670] sm:$0xf]
    %v3677 = vld [vmem:[#allocation3 + $0x674] sm:$0xff]
    %v3678 = vld [vmem:[#allocation3 + $0x67c] sm:$0xff]
    %v3679 = vld [vmem:[#allocation3 + $0x684] sm:$0xff]
    %v3680 = vld [vmem:[#allocation3 + $0x68c] sm:$0xf]
    %v3681 = vld [vmem:[#allocation3 + $0x690] sm:$0xff]
    %v3682 = vld [vmem:[#allocation3 + $0x698] sm:$0xff]
    %v3683 = vld [vmem:[#allocation3 + $0x6a0] sm:$0xff]
    %v3684 = vld [vmem:[#allocation3 + $0x6a8] sm:$0xf]
    %v3685 = vld [vmem:[#allocation3 + $0x6ac] sm:$0xff]
    %v3686 = vld [vmem:[#allocation3 + $0x6b4] sm:$0xff]
    %v3687 = vld [vmem:[#allocation3 + $0x6bc] sm:$0xff]
    %v3688 = vld [vmem:[#allocation3 + $0x6c4] sm:$0xf]
    %v3689 = vld [vmem:[#allocation3 + $0x6c8] sm:$0xff]
    %v3690 = vld [vmem:[#allocation3 + $0x6d0] sm:$0xff]
    %v3691 = vld [vmem:[#allocation3 + $0x6d8] sm:$0xff]
    %v3692 = vld [vmem:[#allocation3 + $0x6e0] sm:$0xf]
    %v3693 = vld [vmem:[#allocation3 + $0x6e4] sm:$0xff]
    %v3694 = vld [vmem:[#allocation3 + $0x6ec] sm:$0xff]
    %v3695 = vld [vmem:[#allocation3 + $0x6f4] sm:$0xff]
    %v3696 = vld [vmem:[#allocation3 + $0x6fc] sm:$0xf]
    %v3697 = vld [vmem:[#allocation3 + $0x700] sm:$0xff]
    %v3698 = vld [vmem:[#allocation3 + $0x708] sm:$0xff]
    %v3699 = vld [vmem:[#allocation3 + $0x710] sm:$0xff]
    %v3700 = vld [vmem:[#allocation3 + $0x718] sm:$0xf]
    %v3701 = vld [vmem:[#allocation3 + $0x71c] sm:$0xff]
    %v3702 = vld [vmem:[#allocation3 + $0x724] sm:$0xff]
    %v3703 = vld [vmem:[#allocation3 + $0x72c] sm:$0xff]
    %v3704 = vld [vmem:[#allocation3 + $0x734] sm:$0xf]
    %v3705 = vld [vmem:[#allocation3 + $0x738] sm:$0xff]
    %v3706 = vld [vmem:[#allocation3 + $0x740] sm:$0xff]
    %v3707 = vld [vmem:[#allocation3 + $0x748] sm:$0xff]
    %v3708 = vld [vmem:[#allocation3 + $0x750] sm:$0xf]
    %v3709 = vld [vmem:[#allocation3 + $0x754] sm:$0xff]
    %v3710 = vld [vmem:[#allocation3 + $0x75c] sm:$0xff]
    %v3711 = vld [vmem:[#allocation3 + $0x764] sm:$0xff]
    %v3712 = vld [vmem:[#allocation3 + $0x76c] sm:$0xf]
    %v3713 = vld [vmem:[#allocation3 + $0x770] sm:$0xff]
    %v3714 = vld [vmem:[#allocation3 + $0x778] sm:$0xff]
    %v3715 = vld [vmem:[#allocation3 + $0x780] sm:$0xff]
    %v3716 = vld [vmem:[#allocation3 + $0x788] sm:$0xf]
    %v3717 = vld [vmem:[#allocation3 + $0x78c] sm:$0xff]
    %v3718 = vld [vmem:[#allocation3 + $0x794] sm:$0xff]
    %v3719 = vld [vmem:[#allocation3 + $0x79c] sm:$0xff]
    %v3720 = vld [vmem:[#allocation3 + $0x7a4] sm:$0xf]
    %v3721 = vld [vmem:[#allocation3 + $0x7a8] sm:$0xff]
    %v3722 = vld [vmem:[#allocation3 + $0x7b0] sm:$0xff]
    %v3723 = vld [vmem:[#allocation3 + $0x7b8] sm:$0xff]
    %v3724 = vld [vmem:[#allocation3 + $0x7c0] sm:$0xf]
    %v3725 = vld [vmem:[#allocation3 + $0x7c4] sm:$0xff]
    %v3726 = vld [vmem:[#allocation3 + $0x7cc] sm:$0xff]
    %v3727 = vld [vmem:[#allocation3 + $0x7d4] sm:$0xff]
    %v3728 = vld [vmem:[#allocation3 + $0x7dc] sm:$0xf]
    %v3729 = vld [vmem:[#allocation3 + $0x7e0] sm:$0xff]
    %v3730 = vld [vmem:[#allocation3 + $0x7e8] sm:$0xff]
    %v3731 = vld [vmem:[#allocation3 + $0x7f0] sm:$0xff]
    %v3732 = vld [vmem:[#allocation3 + $0x7f8] sm:$0xf]
    %v3733 = vld [vmem:[#allocation3 + $0x7fc] sm:$0xff]
    %v3734 = vld [vmem:[#allocation3 + $0x804] sm:$0xff]
    %v3735 = vld [vmem:[#allocation3 + $0x80c] sm:$0xff]
    %v3736 = vld [vmem:[#allocation3 + $0x814] sm:$0xf]
    %v3737 = vld [vmem:[#allocation3 + $0x818] sm:$0xff]
    %v3738 = vld [vmem:[#allocation3 + $0x820] sm:$0xff]
    %v3739 = vld [vmem:[#allocation3 + $0x828] sm:$0xff]
    %v3740 = vld [vmem:[#allocation3 + $0x830] sm:$0xf]
    %v3741 = vld [vmem:[#allocation3 + $0x834] sm:$0xff]
    %v3742 = vld [vmem:[#allocation3 + $0x83c] sm:$0xff]
    %v3743 = vld [vmem:[#allocation3 + $0x844] sm:$0xff]
    %v3744 = vld [vmem:[#allocation3 + $0x84c] sm:$0xf]
    %v3745 = vld [vmem:[#allocation3 + $0x850] sm:$0xff]
    %v3746 = vld [vmem:[#allocation3 + $0x858] sm:$0xff]
    %v3747 = vld [vmem:[#allocation3 + $0x860] sm:$0xff]
    %v3748 = vld [vmem:[#allocation3 + $0x868] sm:$0xf]
    %v3749 = vld [vmem:[#allocation3 + $0x86c] sm:$0xff]
    %v3750 = vld [vmem:[#allocation3 + $0x874] sm:$0xff]
    %v3751 = vld [vmem:[#allocation3 + $0x87c] sm:$0xff]
    %v3752 = vld [vmem:[#allocation3 + $0x884] sm:$0xf]
    %v3753 = vld [vmem:[#allocation3 + $0x888] sm:$0xff]
    %v3754 = vld [vmem:[#allocation3 + $0x890] sm:$0xff]
    %v3755 = vld [vmem:[#allocation3 + $0x898] sm:$0xff]
    %v3756 = vld [vmem:[#allocation3 + $0x8a0] sm:$0xf]
    %v3757 = vld [vmem:[#allocation3 + $0x8a4] sm:$0xff]
    %v3758 = vld [vmem:[#allocation3 + $0x8ac] sm:$0xff]
    %v3759 = vld [vmem:[#allocation3 + $0x8b4] sm:$0xff]
    %v3760 = vld [vmem:[#allocation3 + $0x8bc] sm:$0xf]
    %v3761 = vld [vmem:[#allocation3 + $0x8c0] sm:$0xff]
    %v3762 = vld [vmem:[#allocation3 + $0x8c8] sm:$0xff]
    %v3763 = vld [vmem:[#allocation3 + $0x8d0] sm:$0xff]
    %v3764 = vld [vmem:[#allocation3 + $0x8d8] sm:$0xf]
    %v3765 = vld [vmem:[#allocation3 + $0x8dc] sm:$0xff]
    %v3766 = vld [vmem:[#allocation3 + $0x8e4] sm:$0xff]
    %v3767 = vld [vmem:[#allocation3 + $0x8ec] sm:$0xff]
    %v3768 = vld [vmem:[#allocation3 + $0x8f4] sm:$0xf]
    %v3769 = vld [vmem:[#allocation3 + $0x8f8] sm:$0xff]
    %v3770 = vld [vmem:[#allocation3 + $0x900] sm:$0xff]
    %v3771 = vld [vmem:[#allocation3 + $0x908] sm:$0xff]
    %v3772 = vld [vmem:[#allocation3 + $0x910] sm:$0xf]
    %v3773 = vld [vmem:[#allocation3 + $0x914] sm:$0xff]
    %v3774 = vld [vmem:[#allocation3 + $0x91c] sm:$0xff]
    %v3775 = vld [vmem:[#allocation3 + $0x924] sm:$0xff]
    %v3776 = vld [vmem:[#allocation3 + $0x92c] sm:$0xf]
    %v3777 = vld [vmem:[#allocation3 + $0x930] sm:$0xff]
    %v3778 = vld [vmem:[#allocation3 + $0x938] sm:$0xff]
    %v3779 = vld [vmem:[#allocation3 + $0x940] sm:$0xff]
    %v3780 = vld [vmem:[#allocation3 + $0x948] sm:$0xf]
    %v3781 = vld [vmem:[#allocation3 + $0x94c] sm:$0xff]
    %v3782 = vld [vmem:[#allocation3 + $0x954] sm:$0xff]
    %v3783 = vld [vmem:[#allocation3 + $0x95c] sm:$0xff]
    %v3784 = vld [vmem:[#allocation3 + $0x964] sm:$0xf]
    %v3785 = vld [vmem:[#allocation3 + $0x968] sm:$0xff]
    %v3786 = vld [vmem:[#allocation3 + $0x970] sm:$0xff]
    %v3787 = vld [vmem:[#allocation3 + $0x978] sm:$0xff]
    %v3788 = vld [vmem:[#allocation3 + $0x980] sm:$0xf]
    %v3789 = vld [vmem:[#allocation3 + $0x984] sm:$0xff]
    %v3790 = vld [vmem:[#allocation3 + $0x98c] sm:$0xff]
    %v3791 = vld [vmem:[#allocation3 + $0x994] sm:$0xff]
    %v3792 = vld [vmem:[#allocation3 + $0x99c] sm:$0xf]
    %v3793 = vld [vmem:[#allocation3 + $0x9a0] sm:$0xff]
    %v3794 = vld [vmem:[#allocation3 + $0x9a8] sm:$0xff]
    %v3795 = vld [vmem:[#allocation3 + $0x9b0] sm:$0xff]
    %v3796 = vld [vmem:[#allocation3 + $0x9b8] sm:$0xf]
    %v3797 = vld [vmem:[#allocation3 + $0x9bc] sm:$0xff]
    %v3798 = vld [vmem:[#allocation3 + $0x9c4] sm:$0xff]
    %v3799 = vld [vmem:[#allocation3 + $0x9cc] sm:$0xff]
    %v3800 = vld [vmem:[#allocation3 + $0x9d4] sm:$0xf]
    %v3801 = vld [vmem:[#allocation3 + $0x9d8] sm:$0xff]
    %v3802 = vld [vmem:[#allocation3 + $0x9e0] sm:$0xff]
    %v3803 = vld [vmem:[#allocation3 + $0x9e8] sm:$0xff]
    %v3804 = vld [vmem:[#allocation3 + $0x9f0] sm:$0xf]
    %v3805 = vld [vmem:[#allocation3 + $0x9f4] sm:$0xff]
    %v3806 = vld [vmem:[#allocation3 + $0x9fc] sm:$0xff]
    %v3807 = vld [vmem:[#allocation3 + $0xa04] sm:$0xff]
    %v3808 = vld [vmem:[#allocation3 + $0xa0c] sm:$0xf]
    %v3809 = vld [vmem:[#allocation3 + $0xa10] sm:$0xff]
    %v3810 = vld [vmem:[#allocation3 + $0xa18] sm:$0xff]
    %v3811 = vld [vmem:[#allocation3 + $0xa20] sm:$0xff]
    %v3812 = vld [vmem:[#allocation3 + $0xa28] sm:$0xf]
    %v3813 = vld [vmem:[#allocation3 + $0xa2c] sm:$0xff]
    %v3814 = vld [vmem:[#allocation3 + $0xa34] sm:$0xff]
    %v3815 = vld [vmem:[#allocation3 + $0xa3c] sm:$0xff]
    %v3816 = vld [vmem:[#allocation3 + $0xa44] sm:$0xf]
    %v3817 = vld [vmem:[#allocation3 + $0xa48] sm:$0xff]
    %v3818 = vld [vmem:[#allocation3 + $0xa50] sm:$0xff]
    %v3819 = vld [vmem:[#allocation3 + $0xa58] sm:$0xff]
    %v3820 = vld [vmem:[#allocation3 + $0xa60] sm:$0xf]
    %v3821 = vld [vmem:[#allocation3 + $0xa64] sm:$0xff]
    %v3822 = vld [vmem:[#allocation3 + $0xa6c] sm:$0xff]
    %v3823 = vld [vmem:[#allocation3 + $0xa74] sm:$0xff]
    %v3824 = vld [vmem:[#allocation3 + $0xa7c] sm:$0xf]
    %v3825 = vld [vmem:[#allocation3 + $0xa80] sm:$0xff]
    %v3826 = vld [vmem:[#allocation3 + $0xa88] sm:$0xff]
    %v3827 = vld [vmem:[#allocation3 + $0xa90] sm:$0xff]
    %v3828 = vld [vmem:[#allocation3 + $0xa98] sm:$0xf]
    %v3829 = vld [vmem:[#allocation3 + $0xa9c] sm:$0xff]
    %v3830 = vld [vmem:[#allocation3 + $0xaa4] sm:$0xff]
    %v3831 = vld [vmem:[#allocation3 + $0xaac] sm:$0xff]
    %v3832 = vld [vmem:[#allocation3 + $0xab4] sm:$0xf]
    %v3833 = vld [vmem:[#allocation3 + $0xab8] sm:$0xff]
    %v3834 = vld [vmem:[#allocation3 + $0xac0] sm:$0xff]
    %v3835 = vld [vmem:[#allocation3 + $0xac8] sm:$0xff]
    %v3836 = vld [vmem:[#allocation3 + $0xad0] sm:$0xf]
    %v3837 = vld [vmem:[#allocation3 + $0xad4] sm:$0xff]
    %v3838 = vld [vmem:[#allocation3 + $0xadc] sm:$0xff]
    %v3839 = vld [vmem:[#allocation3 + $0xae4] sm:$0xff]
    %v3840 = vld [vmem:[#allocation3 + $0xaec] sm:$0xf]
    %v3841 = vld [vmem:[#allocation3 + $0xaf0] sm:$0xff]
    %v3842 = vld [vmem:[#allocation3 + $0xaf8] sm:$0xff]
    %v3843 = vld [vmem:[#allocation3 + $0xb00] sm:$0xff]
    %v3844 = vld [vmem:[#allocation3 + $0xb08] sm:$0xf]
    %v3845 = vld [vmem:[#allocation3 + $0xb0c] sm:$0xff]
    %v3846 = vld [vmem:[#allocation3 + $0xb14] sm:$0xff]
    %v3847 = vld [vmem:[#allocation3 + $0xb1c] sm:$0xff]
    %v3848 = vld [vmem:[#allocation3 + $0xb24] sm:$0xf]
    %v3849 = vld [vmem:[#allocation3 + $0xb28] sm:$0xff]
    %v3850 = vld [vmem:[#allocation3 + $0xb30] sm:$0xff]
    %v3851 = vld [vmem:[#allocation3 + $0xb38] sm:$0xff]
    %v3852 = vld [vmem:[#allocation3 + $0xb40] sm:$0xf]
    %v3853 = vld [vmem:[#allocation3 + $0xb44] sm:$0xff]
    %v3854 = vld [vmem:[#allocation3 + $0xb4c] sm:$0xff]
    %v3855 = vld [vmem:[#allocation3 + $0xb54] sm:$0xff]
    %v3856 = vld [vmem:[#allocation3 + $0xb5c] sm:$0xf]
    %v3857 = vld [vmem:[#allocation3 + $0xb60] sm:$0xff]
    %v3858 = vld [vmem:[#allocation3 + $0xb68] sm:$0xff]
    %v3859 = vld [vmem:[#allocation3 + $0xb70] sm:$0xff]
    %v3860 = vld [vmem:[#allocation3 + $0xb78] sm:$0xf]
    %v3861 = vld [vmem:[#allocation3 + $0xb7c] sm:$0xff]
    %v3862 = vld [vmem:[#allocation3 + $0xb84] sm:$0xff]
    %v3863 = vld [vmem:[#allocation3 + $0xb8c] sm:$0xff]
    %v3864 = vld [vmem:[#allocation3 + $0xb94] sm:$0xf]
    %v3865 = vld [vmem:[#allocation3 + $0xb98] sm:$0xff]
    %v3866 = vld [vmem:[#allocation3 + $0xba0] sm:$0xff]
    %v3867 = vld [vmem:[#allocation3 + $0xba8] sm:$0xff]
    %v3868 = vld [vmem:[#allocation3 + $0xbb0] sm:$0xf]
    %v3869 = vld [vmem:[#allocation3 + $0xbb4] sm:$0xff]
    %v3870 = vld [vmem:[#allocation3 + $0xbbc] sm:$0xff]
    %v3871 = vld [vmem:[#allocation3 + $0xbc4] sm:$0xff]
    %v3872 = vld [vmem:[#allocation3 + $0xbcc] sm:$0xf]
    %v3873 = vld [vmem:[#allocation3 + $0xbd0] sm:$0xff]
    %v3874 = vld [vmem:[#allocation3 + $0xbd8] sm:$0xff]
    %v3875 = vld [vmem:[#allocation3 + $0xbe0] sm:$0xff]
    %v3876 = vld [vmem:[#allocation3 + $0xbe8] sm:$0xf]
    %v3877 = vld [vmem:[#allocation3 + $0xbec] sm:$0xff]
    %v3878 = vld [vmem:[#allocation3 + $0xbf4] sm:$0xff]
    %v3879 = vld [vmem:[#allocation3 + $0xbfc] sm:$0xff]
    %v3880 = vld [vmem:[#allocation3 + $0xc04] sm:$0xf]
    %v3881 = vld [vmem:[#allocation3 + $0xc08] sm:$0xff]
    %v3882 = vld [vmem:[#allocation3 + $0xc10] sm:$0xff]
    %v3883 = vld [vmem:[#allocation3 + $0xc18] sm:$0xff]
    %v3884 = vld [vmem:[#allocation3 + $0xc20] sm:$0xf]
    %v3885 = vld [vmem:[#allocation3 + $0xc24] sm:$0xff]
    %v3886 = vld [vmem:[#allocation3 + $0xc2c] sm:$0xff]
    %v3887 = vld [vmem:[#allocation3 + $0xc34] sm:$0xff]
    %v3888 = vld [vmem:[#allocation3 + $0xc3c] sm:$0xf]
    %v3889 = vld [vmem:[#allocation3 + $0xc40] sm:$0xff]
    %v3890 = vld [vmem:[#allocation3 + $0xc48] sm:$0xff]
    %v3891 = vld [vmem:[#allocation3 + $0xc50] sm:$0xff]
    %v3892 = vld [vmem:[#allocation3 + $0xc58] sm:$0xf]
    %v3893 = vld [vmem:[#allocation3 + $0xc5c] sm:$0xff]
    %v3894 = vld [vmem:[#allocation3 + $0xc64] sm:$0xff]
    %v3895 = vld [vmem:[#allocation3 + $0xc6c] sm:$0xff]
    %v3896 = vld [vmem:[#allocation3 + $0xc74] sm:$0xf]
    %v3897 = vld [vmem:[#allocation3 + $0xc78] sm:$0xff]
    %v3898 = vld [vmem:[#allocation3 + $0xc80] sm:$0xff]
    %v3899 = vld [vmem:[#allocation3 + $0xc88] sm:$0xff]
    %v3900 = vld [vmem:[#allocation3 + $0xc90] sm:$0xf]
    %v3901 = vld [vmem:[#allocation3 + $0xc94] sm:$0xff]
    %v3902 = vld [vmem:[#allocation3 + $0xc9c] sm:$0xff]
    %v3903 = vld [vmem:[#allocation3 + $0xca4] sm:$0xff]
    %v3904 = vld [vmem:[#allocation3 + $0xcac] sm:$0xf]
    %v3905 = vld [vmem:[#allocation3 + $0xcb0] sm:$0xff]
    %v3906 = vld [vmem:[#allocation3 + $0xcb8] sm:$0xff]
    %v3907 = vld [vmem:[#allocation3 + $0xcc0] sm:$0xff]
    %v3908 = vld [vmem:[#allocation3 + $0xcc8] sm:$0xf]
    %v3909 = vld [vmem:[#allocation3 + $0xccc] sm:$0xff]
    %v3910 = vld [vmem:[#allocation3 + $0xcd4] sm:$0xff]
    %v3911 = vld [vmem:[#allocation3 + $0xcdc] sm:$0xff]
    %v3912 = vld [vmem:[#allocation3 + $0xce4] sm:$0xf]
    %v3913 = vld [vmem:[#allocation3 + $0xce8] sm:$0xff]
    %v3914 = vld [vmem:[#allocation3 + $0xcf0] sm:$0xff]
    %v3915 = vld [vmem:[#allocation3 + $0xcf8] sm:$0xff]
    %v3916 = vld [vmem:[#allocation3 + $0xd00] sm:$0xf]
    %v3917 = vld [vmem:[#allocation3 + $0xd04] sm:$0xff]
    %v3918 = vld [vmem:[#allocation3 + $0xd0c] sm:$0xff]
    %v3919 = vld [vmem:[#allocation3 + $0xd14] sm:$0xff]
    %v3920 = vld [vmem:[#allocation3 + $0xd1c] sm:$0xf]
    %v3921 = vld [vmem:[#allocation3 + $0xd20] sm:$0xff]
    %v3922 = vld [vmem:[#allocation3 + $0xd28] sm:$0xff]
    %v3923 = vld [vmem:[#allocation3 + $0xd30] sm:$0xff]
    %v3924 = vld [vmem:[#allocation3 + $0xd38] sm:$0xf]
    %v3925 = vld [vmem:[#allocation3 + $0xd3c] sm:$0xff]
    %v3926 = vld [vmem:[#allocation3 + $0xd44] sm:$0xff]
    %v3927 = vld [vmem:[#allocation3 + $0xd4c] sm:$0xff]
    %v3928 = vld [vmem:[#allocation3 + $0xd54] sm:$0xf]
    %v3929 = vld [vmem:[#allocation3 + $0xd58] sm:$0xff]
    %v3930 = vld [vmem:[#allocation3 + $0xd60] sm:$0xff]
    %v3931 = vld [vmem:[#allocation3 + $0xd68] sm:$0xff]
    %v3932 = vld [vmem:[#allocation3 + $0xd70] sm:$0xf]
    %v3933 = vld [vmem:[#allocation3 + $0xd74] sm:$0xff]
    %v3934 = vld [vmem:[#allocation3 + $0xd7c] sm:$0xff]
    %v3935 = vld [vmem:[#allocation3 + $0xd84] sm:$0xff]
    %v3936 = vld [vmem:[#allocation3 + $0xd8c] sm:$0xf]
    %v3937 = vld [vmem:[#allocation3 + $0xd90] sm:$0xff]
    %v3938 = vld [vmem:[#allocation3 + $0xd98] sm:$0xff]
    %v3939 = vld [vmem:[#allocation3 + $0xda0] sm:$0xff]
    %v3940 = vld [vmem:[#allocation3 + $0xda8] sm:$0xf]
    %v3941 = vld [vmem:[#allocation3 + $0xdac] sm:$0xff]
    %v3942 = vld [vmem:[#allocation3 + $0xdb4] sm:$0xff]
    %v3943 = vld [vmem:[#allocation3 + $0xdbc] sm:$0xff]
    %v3944 = vld [vmem:[#allocation3 + $0xdc4] sm:$0xf]
    %v3945 = vld [vmem:[#allocation3 + $0xdc8] sm:$0xff]
    %v3946 = vld [vmem:[#allocation3 + $0xdd0] sm:$0xff]
    %v3947 = vld [vmem:[#allocation3 + $0xdd8] sm:$0xff]
    %v3948 = vld [vmem:[#allocation3 + $0xde0] sm:$0xf]
    %v3949 = vld [vmem:[#allocation3 + $0xde4] sm:$0xff]
    %v3950 = vld [vmem:[#allocation3 + $0xdec] sm:$0xff]
    %v3951 = vld [vmem:[#allocation3 + $0xdf4] sm:$0xff]
    %v3952 = vld [vmem:[#allocation3 + $0xdfc] sm:$0xf]
    %s3953 = scalar_lea.vmem [#allocation10], 7
    %v3954 = vld [vmem:[%s3953] ss:$8 sm:$0xf]
    %v3955 = vld [vmem:[%s3953] ss:$8 sm:$0xf0]
    %v3956 = vor.u32 %v3954, %v3955
    %v3958 = vlaneseq
    %v3959 = vshrl.u32 %v3958, 7
    %v3960 = vsub.s32 0, %v3959
    %v3961 = vrot.slane %v3956, %v3960
    %v3962 = vlaneseq
    %v3963 = vshrl.u32 %v3962, 7
    %v3964 = vsub.s32 1, %v3963
    %v3965 = vrot.slane %v3956, %v3964
    %v3966 = vlaneseq
    %v3967 = vshrl.u32 %v3966, 7
    %v3968 = vsub.s32 2, %v3967
    %v3969 = vrot.slane %v3956, %v3968
    %v3970 = vlaneseq
    %v3971 = vshrl.u32 %v3970, 7
    %v3972 = vsub.s32 3, %v3971
    %v3973 = vrot.slane %v3956, %v3972
    %v3974 = vlaneseq
    %v3975 = vshrl.u32 %v3974, 7
    %v3976 = vsub.s32 4, %v3975
    %v3977 = vrot.slane %v3956, %v3976
    %v3978 = vlaneseq
    %v3979 = vshrl.u32 %v3978, 7
    %v3980 = vsub.s32 5, %v3979
    %v3981 = vrot.slane %v3956, %v3980
    %v3982 = vlaneseq
    %v3983 = vshrl.u32 %v3982, 7
    %v3984 = vsub.s32 6, %v3983
    %v3985 = vrot.slane %v3956, %v3984
    %v4505 = vunpack.c.l.b16 %v3441
    %v4506 = vunpack.c.h.b16 %v3441
    %v4507 = vunpack.c.l.b16 %v3442
    %v4508 = vunpack.c.h.b16 %v3442
    %v4509 = vunpack.c.l.b16 %v3443
    %v4510 = vunpack.c.h.b16 %v3443
    %v4511 = vunpack.c.l.b16 %v3444
    %v4512 = vunpack.c.l.b16 %v3445
    %v4513 = vunpack.c.h.b16 %v3445
    %v4514 = vunpack.c.l.b16 %v3446
    %v4515 = vunpack.c.h.b16 %v3446
    %v4516 = vunpack.c.l.b16 %v3447
    %v4517 = vunpack.c.h.b16 %v3447
    %v4518 = vunpack.c.l.b16 %v3448
    %v4519 = vunpack.c.l.b16 %v3449
    %v4520 = vunpack.c.h.b16 %v3449
    %v4521 = vunpack.c.l.b16 %v3450
    %v4522 = vunpack.c.h.b16 %v3450
    %v4523 = vunpack.c.l.b16 %v3451
    %v4524 = vunpack.c.h.b16 %v3451
    %v4525 = vunpack.c.l.b16 %v3452
    %v4526 = vunpack.c.l.b16 %v3453
    %v4527 = vunpack.c.h.b16 %v3453
    %v4528 = vunpack.c.l.b16 %v3454
    %v4529 = vunpack.c.h.b16 %v3454
    %v4530 = vunpack.c.l.b16 %v3455
    %v4531 = vunpack.c.h.b16 %v3455
    %v4532 = vunpack.c.l.b16 %v3456
    %v4533 = vunpack.c.l.b16 %v3457
    %v4534 = vunpack.c.h.b16 %v3457
    %v4535 = vunpack.c.l.b16 %v3458
    %v4536 = vunpack.c.h.b16 %v3458
    %v4537 = vunpack.c.l.b16 %v3459
    %v4538 = vunpack.c.h.b16 %v3459
    %v4539 = vunpack.c.l.b16 %v3460
    %v4540 = vunpack.c.l.b16 %v3461
    %v4541 = vunpack.c.h.b16 %v3461
    %v4542 = vunpack.c.l.b16 %v3462
    %v4543 = vunpack.c.h.b16 %v3462
    %v4544 = vunpack.c.l.b16 %v3463
    %v4545 = vunpack.c.h.b16 %v3463
    %v4546 = vunpack.c.l.b16 %v3464
    %v4547 = vunpack.c.l.b16 %v3465
    %v4548 = vunpack.c.h.b16 %v3465
    %v4549 = vunpack.c.l.b16 %v3466
    %v4550 = vunpack.c.h.b16 %v3466
    %v4551 = vunpack.c.l.b16 %v3467
    %v4552 = vunpack.c.h.b16 %v3467
    %v4553 = vunpack.c.l.b16 %v3468
    %v4554 = vunpack.c.l.b16 %v3469
    %v4555 = vunpack.c.h.b16 %v3469
    %v4556 = vunpack.c.l.b16 %v3470
    %v4557 = vunpack.c.h.b16 %v3470
    %v4558 = vunpack.c.l.b16 %v3471
    %v4559 = vunpack.c.h.b16 %v3471
    %v4560 = vunpack.c.l.b16 %v3472
    %v4561 = vunpack.c.l.b16 %v3473
    %v4562 = vunpack.c.h.b16 %v3473
    %v4563 = vunpack.c.l.b16 %v3474
    %v4564 = vunpack.c.h.b16 %v3474
    %v4565 = vunpack.c.l.b16 %v3475
    %v4566 = vunpack.c.h.b16 %v3475
    %v4567 = vunpack.c.l.b16 %v3476
    %v4568 = vunpack.c.l.b16 %v3477
    %v4569 = vunpack.c.h.b16 %v3477
    %v4570 = vunpack.c.l.b16 %v3478
    %v4571 = vunpack.c.h.b16 %v3478
    %v4572 = vunpack.c.l.b16 %v3479
    %v4573 = vunpack.c.h.b16 %v3479
    %v4574 = vunpack.c.l.b16 %v3480
    %v4575 = vunpack.c.l.b16 %v3481
    %v4576 = vunpack.c.h.b16 %v3481
    %v4577 = vunpack.c.l.b16 %v3482
    %v4578 = vunpack.c.h.b16 %v3482
    %v4579 = vunpack.c.l.b16 %v3483
    %v4580 = vunpack.c.h.b16 %v3483
    %v4581 = vunpack.c.l.b16 %v3484
    %v4582 = vunpack.c.l.b16 %v3485
    %v4583 = vunpack.c.h.b16 %v3485
    %v4584 = vunpack.c.l.b16 %v3486
    %v4585 = vunpack.c.h.b16 %v3486
    %v4586 = vunpack.c.l.b16 %v3487
    %v4587 = vunpack.c.h.b16 %v3487
    %v4588 = vunpack.c.l.b16 %v3488
    %v4589 = vunpack.c.l.b16 %v3489
    %v4590 = vunpack.c.h.b16 %v3489
    %v4591 = vunpack.c.l.b16 %v3490
    %v4592 = vunpack.c.h.b16 %v3490
    %v4593 = vunpack.c.l.b16 %v3491
    %v4594 = vunpack.c.h.b16 %v3491
    %v4595 = vunpack.c.l.b16 %v3492
    %v4596 = vunpack.c.l.b16 %v3493
    %v4597 = vunpack.c.h.b16 %v3493
    %v4598 = vunpack.c.l.b16 %v3494
    %v4599 = vunpack.c.h.b16 %v3494
    %v4600 = vunpack.c.l.b16 %v3495
    %v4601 = vunpack.c.h.b16 %v3495
    %v4602 = vunpack.c.l.b16 %v3496
    %v4603 = vunpack.c.l.b16 %v3497
    %v4604 = vunpack.c.h.b16 %v3497
    %v4605 = vunpack.c.l.b16 %v3498
    %v4606 = vunpack.c.h.b16 %v3498
    %v4607 = vunpack.c.l.b16 %v3499
    %v4608 = vunpack.c.h.b16 %v3499
    %v4609 = vunpack.c.l.b16 %v3500
    %v4610 = vunpack.c.l.b16 %v3501
    %v4611 = vunpack.c.h.b16 %v3501
    %v4612 = vunpack.c.l.b16 %v3502
    %v4613 = vunpack.c.h.b16 %v3502
    %v4614 = vunpack.c.l.b16 %v3503
    %v4615 = vunpack.c.h.b16 %v3503
    %v4616 = vunpack.c.l.b16 %v3504
    %v4617 = vunpack.c.l.b16 %v3505
    %v4618 = vunpack.c.h.b16 %v3505
    %v4619 = vunpack.c.l.b16 %v3506
    %v4620 = vunpack.c.h.b16 %v3506
    %v4621 = vunpack.c.l.b16 %v3507
    %v4622 = vunpack.c.h.b16 %v3507
    %v4623 = vunpack.c.l.b16 %v3508
    %v4624 = vunpack.c.l.b16 %v3509
    %v4625 = vunpack.c.h.b16 %v3509
    %v4626 = vunpack.c.l.b16 %v3510
    %v4627 = vunpack.c.h.b16 %v3510
    %v4628 = vunpack.c.l.b16 %v3511
    %v4629 = vunpack.c.h.b16 %v3511
    %v4630 = vunpack.c.l.b16 %v3512
    %v4631 = vunpack.c.l.b16 %v3513
    %v4632 = vunpack.c.h.b16 %v3513
    %v4633 = vunpack.c.l.b16 %v3514
    %v4634 = vunpack.c.h.b16 %v3514
    %v4635 = vunpack.c.l.b16 %v3515
    %v4636 = vunpack.c.h.b16 %v3515
    %v4637 = vunpack.c.l.b16 %v3516
    %v4638 = vunpack.c.l.b16 %v3517
    %v4639 = vunpack.c.h.b16 %v3517
    %v4640 = vunpack.c.l.b16 %v3518
    %v4641 = vunpack.c.h.b16 %v3518
    %v4642 = vunpack.c.l.b16 %v3519
    %v4643 = vunpack.c.h.b16 %v3519
    %v4644 = vunpack.c.l.b16 %v3520
    %v4645 = vunpack.c.l.b16 %v3521
    %v4646 = vunpack.c.h.b16 %v3521
    %v4647 = vunpack.c.l.b16 %v3522
    %v4648 = vunpack.c.h.b16 %v3522
    %v4649 = vunpack.c.l.b16 %v3523
    %v4650 = vunpack.c.h.b16 %v3523
    %v4651 = vunpack.c.l.b16 %v3524
    %v4652 = vunpack.c.l.b16 %v3525
    %v4653 = vunpack.c.h.b16 %v3525
    %v4654 = vunpack.c.l.b16 %v3526
    %v4655 = vunpack.c.h.b16 %v3526
    %v4656 = vunpack.c.l.b16 %v3527
    %v4657 = vunpack.c.h.b16 %v3527
    %v4658 = vunpack.c.l.b16 %v3528
    %v4659 = vunpack.c.l.b16 %v3529
    %v4660 = vunpack.c.h.b16 %v3529
    %v4661 = vunpack.c.l.b16 %v3530
    %v4662 = vunpack.c.h.b16 %v3530
    %v4663 = vunpack.c.l.b16 %v3531
    %v4664 = vunpack.c.h.b16 %v3531
    %v4665 = vunpack.c.l.b16 %v3532
    %v4666 = vunpack.c.l.b16 %v3533
    %v4667 = vunpack.c.h.b16 %v3533
    %v4668 = vunpack.c.l.b16 %v3534
    %v4669 = vunpack.c.h.b16 %v3534
    %v4670 = vunpack.c.l.b16 %v3535
    %v4671 = vunpack.c.h.b16 %v3535
    %v4672 = vunpack.c.l.b16 %v3536
    %v4673 = vunpack.c.l.b16 %v3537
    %v4674 = vunpack.c.h.b16 %v3537
    %v4675 = vunpack.c.l.b16 %v3538
    %v4676 = vunpack.c.h.b16 %v3538
    %v4677 = vunpack.c.l.b16 %v3539
    %v4678 = vunpack.c.h.b16 %v3539
    %v4679 = vunpack.c.l.b16 %v3540
    %v4680 = vunpack.c.l.b16 %v3541
    %v4681 = vunpack.c.h.b16 %v3541
    %v4682 = vunpack.c.l.b16 %v3542
    %v4683 = vunpack.c.h.b16 %v3542
    %v4684 = vunpack.c.l.b16 %v3543
    %v4685 = vunpack.c.h.b16 %v3543
    %v4686 = vunpack.c.l.b16 %v3544
    %v4687 = vunpack.c.l.b16 %v3545
    %v4688 = vunpack.c.h.b16 %v3545
    %v4689 = vunpack.c.l.b16 %v3546
    %v4690 = vunpack.c.h.b16 %v3546
    %v4691 = vunpack.c.l.b16 %v3547
    %v4692 = vunpack.c.h.b16 %v3547
    %v4693 = vunpack.c.l.b16 %v3548
    %v4694 = vunpack.c.l.b16 %v3549
    %v4695 = vunpack.c.h.b16 %v3549
    %v4696 = vunpack.c.l.b16 %v3550
    %v4697 = vunpack.c.h.b16 %v3550
    %v4698 = vunpack.c.l.b16 %v3551
    %v4699 = vunpack.c.h.b16 %v3551
    %v4700 = vunpack.c.l.b16 %v3552
    %v4701 = vunpack.c.l.b16 %v3553
    %v4702 = vunpack.c.h.b16 %v3553
    %v4703 = vunpack.c.l.b16 %v3554
    %v4704 = vunpack.c.h.b16 %v3554
    %v4705 = vunpack.c.l.b16 %v3555
    %v4706 = vunpack.c.h.b16 %v3555
    %v4707 = vunpack.c.l.b16 %v3556
    %v4708 = vunpack.c.l.b16 %v3557
    %v4709 = vunpack.c.h.b16 %v3557
    %v4710 = vunpack.c.l.b16 %v3558
    %v4711 = vunpack.c.h.b16 %v3558
    %v4712 = vunpack.c.l.b16 %v3559
    %v4713 = vunpack.c.h.b16 %v3559
    %v4714 = vunpack.c.l.b16 %v3560
    %v4715 = vunpack.c.l.b16 %v3561
    %v4716 = vunpack.c.h.b16 %v3561
    %v4717 = vunpack.c.l.b16 %v3562
    %v4718 = vunpack.c.h.b16 %v3562
    %v4719 = vunpack.c.l.b16 %v3563
    %v4720 = vunpack.c.h.b16 %v3563
    %v4721 = vunpack.c.l.b16 %v3564
    %v4722 = vunpack.c.l.b16 %v3565
    %v4723 = vunpack.c.h.b16 %v3565
    %v4724 = vunpack.c.l.b16 %v3566
    %v4725 = vunpack.c.h.b16 %v3566
    %v4726 = vunpack.c.l.b16 %v3567
    %v4727 = vunpack.c.h.b16 %v3567
    %v4728 = vunpack.c.l.b16 %v3568
    %v4729 = vunpack.c.l.b16 %v3569
    %v4730 = vunpack.c.h.b16 %v3569
    %v4731 = vunpack.c.l.b16 %v3570
    %v4732 = vunpack.c.h.b16 %v3570
    %v4733 = vunpack.c.l.b16 %v3571
    %v4734 = vunpack.c.h.b16 %v3571
    %v4735 = vunpack.c.l.b16 %v3572
    %v4736 = vunpack.c.l.b16 %v3573
    %v4737 = vunpack.c.h.b16 %v3573
    %v4738 = vunpack.c.l.b16 %v3574
    %v4739 = vunpack.c.h.b16 %v3574
    %v4740 = vunpack.c.l.b16 %v3575
    %v4741 = vunpack.c.h.b16 %v3575
    %v4742 = vunpack.c.l.b16 %v3576
    %v4743 = vunpack.c.l.b16 %v3577
    %v4744 = vunpack.c.h.b16 %v3577
    %v4745 = vunpack.c.l.b16 %v3578
    %v4746 = vunpack.c.h.b16 %v3578
    %v4747 = vunpack.c.l.b16 %v3579
    %v4748 = vunpack.c.h.b16 %v3579
    %v4749 = vunpack.c.l.b16 %v3580
    %v4750 = vunpack.c.l.b16 %v3581
    %v4751 = vunpack.c.h.b16 %v3581
    %v4752 = vunpack.c.l.b16 %v3582
    %v4753 = vunpack.c.h.b16 %v3582
    %v4754 = vunpack.c.l.b16 %v3583
    %v4755 = vunpack.c.h.b16 %v3583
    %v4756 = vunpack.c.l.b16 %v3584
    %v4757 = vunpack.c.l.b16 %v3585
    %v4758 = vunpack.c.h.b16 %v3585
    %v4759 = vunpack.c.l.b16 %v3586
    %v4760 = vunpack.c.h.b16 %v3586
    %v4761 = vunpack.c.l.b16 %v3587
    %v4762 = vunpack.c.h.b16 %v3587
    %v4763 = vunpack.c.l.b16 %v3588
    %v4764 = vunpack.c.l.b16 %v3589
    %v4765 = vunpack.c.h.b16 %v3589
    %v4766 = vunpack.c.l.b16 %v3590
    %v4767 = vunpack.c.h.b16 %v3590
    %v4768 = vunpack.c.l.b16 %v3591
    %v4769 = vunpack.c.h.b16 %v3591
    %v4770 = vunpack.c.l.b16 %v3592
    %v4771 = vunpack.c.l.b16 %v3593
    %v4772 = vunpack.c.h.b16 %v3593
    %v4773 = vunpack.c.l.b16 %v3594
    %v4774 = vunpack.c.h.b16 %v3594
    %v4775 = vunpack.c.l.b16 %v3595
    %v4776 = vunpack.c.h.b16 %v3595
    %v4777 = vunpack.c.l.b16 %v3596
    %v4778 = vunpack.c.l.b16 %v3597
    %v4779 = vunpack.c.h.b16 %v3597
    %v4780 = vunpack.c.l.b16 %v3598
    %v4781 = vunpack.c.h.b16 %v3598
    %v4782 = vunpack.c.l.b16 %v3599
    %v4783 = vunpack.c.h.b16 %v3599
    %v4784 = vunpack.c.l.b16 %v3600
    %v4785 = vunpack.c.l.b16 %v3601
    %v4786 = vunpack.c.h.b16 %v3601
    %v4787 = vunpack.c.l.b16 %v3602
    %v4788 = vunpack.c.h.b16 %v3602
    %v4789 = vunpack.c.l.b16 %v3603
    %v4790 = vunpack.c.h.b16 %v3603
    %v4791 = vunpack.c.l.b16 %v3604
    %v4792 = vunpack.c.l.b16 %v3605
    %v4793 = vunpack.c.h.b16 %v3605
    %v4794 = vunpack.c.l.b16 %v3606
    %v4795 = vunpack.c.h.b16 %v3606
    %v4796 = vunpack.c.l.b16 %v3607
    %v4797 = vunpack.c.h.b16 %v3607
    %v4798 = vunpack.c.l.b16 %v3608
    %v4799 = vunpack.c.l.b16 %v3609
    %v4800 = vunpack.c.h.b16 %v3609
    %v4801 = vunpack.c.l.b16 %v3610
    %v4802 = vunpack.c.h.b16 %v3610
    %v4803 = vunpack.c.l.b16 %v3611
    %v4804 = vunpack.c.h.b16 %v3611
    %v4805 = vunpack.c.l.b16 %v3612
    %v4806 = vunpack.c.l.b16 %v3613
    %v4807 = vunpack.c.h.b16 %v3613
    %v4808 = vunpack.c.l.b16 %v3614
    %v4809 = vunpack.c.h.b16 %v3614
    %v4810 = vunpack.c.l.b16 %v3615
    %v4811 = vunpack.c.h.b16 %v3615
    %v4812 = vunpack.c.l.b16 %v3616
    %v4813 = vunpack.c.l.b16 %v3617
    %v4814 = vunpack.c.h.b16 %v3617
    %v4815 = vunpack.c.l.b16 %v3618
    %v4816 = vunpack.c.h.b16 %v3618
    %v4817 = vunpack.c.l.b16 %v3619
    %v4818 = vunpack.c.h.b16 %v3619
    %v4819 = vunpack.c.l.b16 %v3620
    %v4820 = vunpack.c.l.b16 %v3621
    %v4821 = vunpack.c.h.b16 %v3621
    %v4822 = vunpack.c.l.b16 %v3622
    %v4823 = vunpack.c.h.b16 %v3622
    %v4824 = vunpack.c.l.b16 %v3623
    %v4825 = vunpack.c.h.b16 %v3623
    %v4826 = vunpack.c.l.b16 %v3624
    %v4827 = vunpack.c.l.b16 %v3625
    %v4828 = vunpack.c.h.b16 %v3625
    %v4829 = vunpack.c.l.b16 %v3626
    %v4830 = vunpack.c.h.b16 %v3626
    %v4831 = vunpack.c.l.b16 %v3627
    %v4832 = vunpack.c.h.b16 %v3627
    %v4833 = vunpack.c.l.b16 %v3628
    %v4834 = vunpack.c.l.b16 %v3629
    %v4835 = vunpack.c.h.b16 %v3629
    %v4836 = vunpack.c.l.b16 %v3630
    %v4837 = vunpack.c.h.b16 %v3630
    %v4838 = vunpack.c.l.b16 %v3631
    %v4839 = vunpack.c.h.b16 %v3631
    %v4840 = vunpack.c.l.b16 %v3632
    %v4841 = vunpack.c.l.b16 %v3633
    %v4842 = vunpack.c.h.b16 %v3633
    %v4843 = vunpack.c.l.b16 %v3634
    %v4844 = vunpack.c.h.b16 %v3634
    %v4845 = vunpack.c.l.b16 %v3635
    %v4846 = vunpack.c.h.b16 %v3635
    %v4847 = vunpack.c.l.b16 %v3636
    %v4848 = vunpack.c.l.b16 %v3637
    %v4849 = vunpack.c.h.b16 %v3637
    %v4850 = vunpack.c.l.b16 %v3638
    %v4851 = vunpack.c.h.b16 %v3638
    %v4852 = vunpack.c.l.b16 %v3639
    %v4853 = vunpack.c.h.b16 %v3639
    %v4854 = vunpack.c.l.b16 %v3640
    %v4855 = vunpack.c.l.b16 %v3641
    %v4856 = vunpack.c.h.b16 %v3641
    %v4857 = vunpack.c.l.b16 %v3642
    %v4858 = vunpack.c.h.b16 %v3642
    %v4859 = vunpack.c.l.b16 %v3643
    %v4860 = vunpack.c.h.b16 %v3643
    %v4861 = vunpack.c.l.b16 %v3644
    %v4862 = vunpack.c.l.b16 %v3645
    %v4863 = vunpack.c.h.b16 %v3645
    %v4864 = vunpack.c.l.b16 %v3646
    %v4865 = vunpack.c.h.b16 %v3646
    %v4866 = vunpack.c.l.b16 %v3647
    %v4867 = vunpack.c.h.b16 %v3647
    %v4868 = vunpack.c.l.b16 %v3648
    %v4869 = vunpack.c.l.b16 %v3649
    %v4870 = vunpack.c.h.b16 %v3649
    %v4871 = vunpack.c.l.b16 %v3650
    %v4872 = vunpack.c.h.b16 %v3650
    %v4873 = vunpack.c.l.b16 %v3651
    %v4874 = vunpack.c.h.b16 %v3651
    %v4875 = vunpack.c.l.b16 %v3652
    %v4876 = vunpack.c.l.b16 %v3653
    %v4877 = vunpack.c.h.b16 %v3653
    %v4878 = vunpack.c.l.b16 %v3654
    %v4879 = vunpack.c.h.b16 %v3654
    %v4880 = vunpack.c.l.b16 %v3655
    %v4881 = vunpack.c.h.b16 %v3655
    %v4882 = vunpack.c.l.b16 %v3656
    %v4883 = vunpack.c.l.b16 %v3657
    %v4884 = vunpack.c.h.b16 %v3657
    %v4885 = vunpack.c.l.b16 %v3658
    %v4886 = vunpack.c.h.b16 %v3658
    %v4887 = vunpack.c.l.b16 %v3659
    %v4888 = vunpack.c.h.b16 %v3659
    %v4889 = vunpack.c.l.b16 %v3660
    %v4890 = vunpack.c.l.b16 %v3661
    %v4891 = vunpack.c.h.b16 %v3661
    %v4892 = vunpack.c.l.b16 %v3662
    %v4893 = vunpack.c.h.b16 %v3662
    %v4894 = vunpack.c.l.b16 %v3663
    %v4895 = vunpack.c.h.b16 %v3663
    %v4896 = vunpack.c.l.b16 %v3664
    %v4897 = vunpack.c.l.b16 %v3665
    %v4898 = vunpack.c.h.b16 %v3665
    %v4899 = vunpack.c.l.b16 %v3666
    %v4900 = vunpack.c.h.b16 %v3666
    %v4901 = vunpack.c.l.b16 %v3667
    %v4902 = vunpack.c.h.b16 %v3667
    %v4903 = vunpack.c.l.b16 %v3668
    %v4904 = vunpack.c.l.b16 %v3669
    %v4905 = vunpack.c.h.b16 %v3669
    %v4906 = vunpack.c.l.b16 %v3670
    %v4907 = vunpack.c.h.b16 %v3670
    %v4908 = vunpack.c.l.b16 %v3671
    %v4909 = vunpack.c.h.b16 %v3671
    %v4910 = vunpack.c.l.b16 %v3672
    %v4911 = vunpack.c.l.b16 %v3673
    %v4912 = vunpack.c.h.b16 %v3673
    %v4913 = vunpack.c.l.b16 %v3674
    %v4914 = vunpack.c.h.b16 %v3674
    %v4915 = vunpack.c.l.b16 %v3675
    %v4916 = vunpack.c.h.b16 %v3675
    %v4917 = vunpack.c.l.b16 %v3676
    %v4918 = vunpack.c.l.b16 %v3677
    %v4919 = vunpack.c.h.b16 %v3677
    %v4920 = vunpack.c.l.b16 %v3678
    %v4921 = vunpack.c.h.b16 %v3678
    %v4922 = vunpack.c.l.b16 %v3679
    %v4923 = vunpack.c.h.b16 %v3679
    %v4924 = vunpack.c.l.b16 %v3680
    %v4925 = vunpack.c.l.b16 %v3681
    %v4926 = vunpack.c.h.b16 %v3681
    %v4927 = vunpack.c.l.b16 %v3682
    %v4928 = vunpack.c.h.b16 %v3682
    %v4929 = vunpack.c.l.b16 %v3683
    %v4930 = vunpack.c.h.b16 %v3683
    %v4931 = vunpack.c.l.b16 %v3684
    %v4932 = vunpack.c.l.b16 %v3685
    %v4933 = vunpack.c.h.b16 %v3685
    %v4934 = vunpack.c.l.b16 %v3686
    %v4935 = vunpack.c.h.b16 %v3686
    %v4936 = vunpack.c.l.b16 %v3687
    %v4937 = vunpack.c.h.b16 %v3687
    %v4938 = vunpack.c.l.b16 %v3688
    %v4939 = vunpack.c.l.b16 %v3689
    %v4940 = vunpack.c.h.b16 %v3689
    %v4941 = vunpack.c.l.b16 %v3690
    %v4942 = vunpack.c.h.b16 %v3690
    %v4943 = vunpack.c.l.b16 %v3691
    %v4944 = vunpack.c.h.b16 %v3691
    %v4945 = vunpack.c.l.b16 %v3692
    %v4946 = vunpack.c.l.b16 %v3693
    %v4947 = vunpack.c.h.b16 %v3693
    %v4948 = vunpack.c.l.b16 %v3694
    %v4949 = vunpack.c.h.b16 %v3694
    %v4950 = vunpack.c.l.b16 %v3695
    %v4951 = vunpack.c.h.b16 %v3695
    %v4952 = vunpack.c.l.b16 %v3696
    %v4953 = vunpack.c.l.b16 %v3697
    %v4954 = vunpack.c.h.b16 %v3697
    %v4955 = vunpack.c.l.b16 %v3698
    %v4956 = vunpack.c.h.b16 %v3698
    %v4957 = vunpack.c.l.b16 %v3699
    %v4958 = vunpack.c.h.b16 %v3699
    %v4959 = vunpack.c.l.b16 %v3700
    %v4960 = vunpack.c.l.b16 %v3701
    %v4961 = vunpack.c.h.b16 %v3701
    %v4962 = vunpack.c.l.b16 %v3702
    %v4963 = vunpack.c.h.b16 %v3702
    %v4964 = vunpack.c.l.b16 %v3703
    %v4965 = vunpack.c.h.b16 %v3703
    %v4966 = vunpack.c.l.b16 %v3704
    %v4967 = vunpack.c.l.b16 %v3705
    %v4968 = vunpack.c.h.b16 %v3705
    %v4969 = vunpack.c.l.b16 %v3706
    %v4970 = vunpack.c.h.b16 %v3706
    %v4971 = vunpack.c.l.b16 %v3707
    %v4972 = vunpack.c.h.b16 %v3707
    %v4973 = vunpack.c.l.b16 %v3708
    %v4974 = vunpack.c.l.b16 %v3709
    %v4975 = vunpack.c.h.b16 %v3709
    %v4976 = vunpack.c.l.b16 %v3710
    %v4977 = vunpack.c.h.b16 %v3710
    %v4978 = vunpack.c.l.b16 %v3711
    %v4979 = vunpack.c.h.b16 %v3711
    %v4980 = vunpack.c.l.b16 %v3712
    %v4981 = vunpack.c.l.b16 %v3713
    %v4982 = vunpack.c.h.b16 %v3713
    %v4983 = vunpack.c.l.b16 %v3714
    %v4984 = vunpack.c.h.b16 %v3714
    %v4985 = vunpack.c.l.b16 %v3715
    %v4986 = vunpack.c.h.b16 %v3715
    %v4987 = vunpack.c.l.b16 %v3716
    %v4988 = vunpack.c.l.b16 %v3717
    %v4989 = vunpack.c.h.b16 %v3717
    %v4990 = vunpack.c.l.b16 %v3718
    %v4991 = vunpack.c.h.b16 %v3718
    %v4992 = vunpack.c.l.b16 %v3719
    %v4993 = vunpack.c.h.b16 %v3719
    %v4994 = vunpack.c.l.b16 %v3720
    %v4995 = vunpack.c.l.b16 %v3721
    %v4996 = vunpack.c.h.b16 %v3721
    %v4997 = vunpack.c.l.b16 %v3722
    %v4998 = vunpack.c.h.b16 %v3722
    %v4999 = vunpack.c.l.b16 %v3723
    %v5000 = vunpack.c.h.b16 %v3723
    %v5001 = vunpack.c.l.b16 %v3724
    %v5002 = vunpack.c.l.b16 %v3725
    %v5003 = vunpack.c.h.b16 %v3725
    %v5004 = vunpack.c.l.b16 %v3726
    %v5005 = vunpack.c.h.b16 %v3726
    %v5006 = vunpack.c.l.b16 %v3727
    %v5007 = vunpack.c.h.b16 %v3727
    %v5008 = vunpack.c.l.b16 %v3728
    %v5009 = vunpack.c.l.b16 %v3729
    %v5010 = vunpack.c.h.b16 %v3729
    %v5011 = vunpack.c.l.b16 %v3730
    %v5012 = vunpack.c.h.b16 %v3730
    %v5013 = vunpack.c.l.b16 %v3731
    %v5014 = vunpack.c.h.b16 %v3731
    %v5015 = vunpack.c.l.b16 %v3732
    %v5016 = vunpack.c.l.b16 %v3733
    %v5017 = vunpack.c.h.b16 %v3733
    %v5018 = vunpack.c.l.b16 %v3734
    %v5019 = vunpack.c.h.b16 %v3734
    %v5020 = vunpack.c.l.b16 %v3735
    %v5021 = vunpack.c.h.b16 %v3735
    %v5022 = vunpack.c.l.b16 %v3736
    %v5023 = vunpack.c.l.b16 %v3737
    %v5024 = vunpack.c.h.b16 %v3737
    %v5025 = vunpack.c.l.b16 %v3738
    %v5026 = vunpack.c.h.b16 %v3738
    %v5027 = vunpack.c.l.b16 %v3739
    %v5028 = vunpack.c.h.b16 %v3739
    %v5029 = vunpack.c.l.b16 %v3740
    %v5030 = vunpack.c.l.b16 %v3741
    %v5031 = vunpack.c.h.b16 %v3741
    %v5032 = vunpack.c.l.b16 %v3742
    %v5033 = vunpack.c.h.b16 %v3742
    %v5034 = vunpack.c.l.b16 %v3743
    %v5035 = vunpack.c.h.b16 %v3743
    %v5036 = vunpack.c.l.b16 %v3744
    %v5037 = vunpack.c.l.b16 %v3745
    %v5038 = vunpack.c.h.b16 %v3745
    %v5039 = vunpack.c.l.b16 %v3746
    %v5040 = vunpack.c.h.b16 %v3746
    %v5041 = vunpack.c.l.b16 %v3747
    %v5042 = vunpack.c.h.b16 %v3747
    %v5043 = vunpack.c.l.b16 %v3748
    %v5044 = vunpack.c.l.b16 %v3749
    %v5045 = vunpack.c.h.b16 %v3749
    %v5046 = vunpack.c.l.b16 %v3750
    %v5047 = vunpack.c.h.b16 %v3750
    %v5048 = vunpack.c.l.b16 %v3751
    %v5049 = vunpack.c.h.b16 %v3751
    %v5050 = vunpack.c.l.b16 %v3752
    %v5051 = vunpack.c.l.b16 %v3753
    %v5052 = vunpack.c.h.b16 %v3753
    %v5053 = vunpack.c.l.b16 %v3754
    %v5054 = vunpack.c.h.b16 %v3754
    %v5055 = vunpack.c.l.b16 %v3755
    %v5056 = vunpack.c.h.b16 %v3755
    %v5057 = vunpack.c.l.b16 %v3756
    %v5058 = vunpack.c.l.b16 %v3757
    %v5059 = vunpack.c.h.b16 %v3757
    %v5060 = vunpack.c.l.b16 %v3758
    %v5061 = vunpack.c.h.b16 %v3758
    %v5062 = vunpack.c.l.b16 %v3759
    %v5063 = vunpack.c.h.b16 %v3759
    %v5064 = vunpack.c.l.b16 %v3760
    %v5065 = vunpack.c.l.b16 %v3761
    %v5066 = vunpack.c.h.b16 %v3761
    %v5067 = vunpack.c.l.b16 %v3762
    %v5068 = vunpack.c.h.b16 %v3762
    %v5069 = vunpack.c.l.b16 %v3763
    %v5070 = vunpack.c.h.b16 %v3763
    %v5071 = vunpack.c.l.b16 %v3764
    %v5072 = vunpack.c.l.b16 %v3765
    %v5073 = vunpack.c.h.b16 %v3765
    %v5074 = vunpack.c.l.b16 %v3766
    %v5075 = vunpack.c.h.b16 %v3766
    %v5076 = vunpack.c.l.b16 %v3767
    %v5077 = vunpack.c.h.b16 %v3767
    %v5078 = vunpack.c.l.b16 %v3768
    %v5079 = vunpack.c.l.b16 %v3769
    %v5080 = vunpack.c.h.b16 %v3769
    %v5081 = vunpack.c.l.b16 %v3770
    %v5082 = vunpack.c.h.b16 %v3770
    %v5083 = vunpack.c.l.b16 %v3771
    %v5084 = vunpack.c.h.b16 %v3771
    %v5085 = vunpack.c.l.b16 %v3772
    %v5086 = vunpack.c.l.b16 %v3773
    %v5087 = vunpack.c.h.b16 %v3773
    %v5088 = vunpack.c.l.b16 %v3774
    %v5089 = vunpack.c.h.b16 %v3774
    %v5090 = vunpack.c.l.b16 %v3775
    %v5091 = vunpack.c.h.b16 %v3775
    %v5092 = vunpack.c.l.b16 %v3776
    %v5093 = vunpack.c.l.b16 %v3777
    %v5094 = vunpack.c.h.b16 %v3777
    %v5095 = vunpack.c.l.b16 %v3778
    %v5096 = vunpack.c.h.b16 %v3778
    %v5097 = vunpack.c.l.b16 %v3779
    %v5098 = vunpack.c.h.b16 %v3779
    %v5099 = vunpack.c.l.b16 %v3780
    %v5100 = vunpack.c.l.b16 %v3781
    %v5101 = vunpack.c.h.b16 %v3781
    %v5102 = vunpack.c.l.b16 %v3782
    %v5103 = vunpack.c.h.b16 %v3782
    %v5104 = vunpack.c.l.b16 %v3783
    %v5105 = vunpack.c.h.b16 %v3783
    %v5106 = vunpack.c.l.b16 %v3784
    %v5107 = vunpack.c.l.b16 %v3785
    %v5108 = vunpack.c.h.b16 %v3785
    %v5109 = vunpack.c.l.b16 %v3786
    %v5110 = vunpack.c.h.b16 %v3786
    %v5111 = vunpack.c.l.b16 %v3787
    %v5112 = vunpack.c.h.b16 %v3787
    %v5113 = vunpack.c.l.b16 %v3788
    %v5114 = vunpack.c.l.b16 %v3789
    %v5115 = vunpack.c.h.b16 %v3789
    %v5116 = vunpack.c.l.b16 %v3790
    %v5117 = vunpack.c.h.b16 %v3790
    %v5118 = vunpack.c.l.b16 %v3791
    %v5119 = vunpack.c.h.b16 %v3791
    %v5120 = vunpack.c.l.b16 %v3792
    %v5121 = vunpack.c.l.b16 %v3793
    %v5122 = vunpack.c.h.b16 %v3793
    %v5123 = vunpack.c.l.b16 %v3794
    %v5124 = vunpack.c.h.b16 %v3794
    %v5125 = vunpack.c.l.b16 %v3795
    %v5126 = vunpack.c.h.b16 %v3795
    %v5127 = vunpack.c.l.b16 %v3796
    %v5128 = vunpack.c.l.b16 %v3797
    %v5129 = vunpack.c.h.b16 %v3797
    %v5130 = vunpack.c.l.b16 %v3798
    %v5131 = vunpack.c.h.b16 %v3798
    %v5132 = vunpack.c.l.b16 %v3799
    %v5133 = vunpack.c.h.b16 %v3799
    %v5134 = vunpack.c.l.b16 %v3800
    %v5135 = vunpack.c.l.b16 %v3801
    %v5136 = vunpack.c.h.b16 %v3801
    %v5137 = vunpack.c.l.b16 %v3802
    %v5138 = vunpack.c.h.b16 %v3802
    %v5139 = vunpack.c.l.b16 %v3803
    %v5140 = vunpack.c.h.b16 %v3803
    %v5141 = vunpack.c.l.b16 %v3804
    %v5142 = vunpack.c.l.b16 %v3805
    %v5143 = vunpack.c.h.b16 %v3805
    %v5144 = vunpack.c.l.b16 %v3806
    %v5145 = vunpack.c.h.b16 %v3806
    %v5146 = vunpack.c.l.b16 %v3807
    %v5147 = vunpack.c.h.b16 %v3807
    %v5148 = vunpack.c.l.b16 %v3808
    %v5149 = vunpack.c.l.b16 %v3809
    %v5150 = vunpack.c.h.b16 %v3809
    %v5151 = vunpack.c.l.b16 %v3810
    %v5152 = vunpack.c.h.b16 %v3810
    %v5153 = vunpack.c.l.b16 %v3811
    %v5154 = vunpack.c.h.b16 %v3811
    %v5155 = vunpack.c.l.b16 %v3812
    %v5156 = vunpack.c.l.b16 %v3813
    %v5157 = vunpack.c.h.b16 %v3813
    %v5158 = vunpack.c.l.b16 %v3814
    %v5159 = vunpack.c.h.b16 %v3814
    %v5160 = vunpack.c.l.b16 %v3815
    %v5161 = vunpack.c.h.b16 %v3815
    %v5162 = vunpack.c.l.b16 %v3816
    %v5163 = vunpack.c.l.b16 %v3817
    %v5164 = vunpack.c.h.b16 %v3817
    %v5165 = vunpack.c.l.b16 %v3818
    %v5166 = vunpack.c.h.b16 %v3818
    %v5167 = vunpack.c.l.b16 %v3819
    %v5168 = vunpack.c.h.b16 %v3819
    %v5169 = vunpack.c.l.b16 %v3820
    %v5170 = vunpack.c.l.b16 %v3821
    %v5171 = vunpack.c.h.b16 %v3821
    %v5172 = vunpack.c.l.b16 %v3822
    %v5173 = vunpack.c.h.b16 %v3822
    %v5174 = vunpack.c.l.b16 %v3823
    %v5175 = vunpack.c.h.b16 %v3823
    %v5176 = vunpack.c.l.b16 %v3824
    %v5177 = vunpack.c.l.b16 %v3825
    %v5178 = vunpack.c.h.b16 %v3825
    %v5179 = vunpack.c.l.b16 %v3826
    %v5180 = vunpack.c.h.b16 %v3826
    %v5181 = vunpack.c.l.b16 %v3827
    %v5182 = vunpack.c.h.b16 %v3827
    %v5183 = vunpack.c.l.b16 %v3828
    %v5184 = vunpack.c.l.b16 %v3829
    %v5185 = vunpack.c.h.b16 %v3829
    %v5186 = vunpack.c.l.b16 %v3830
    %v5187 = vunpack.c.h.b16 %v3830
    %v5188 = vunpack.c.l.b16 %v3831
    %v5189 = vunpack.c.h.b16 %v3831
    %v5190 = vunpack.c.l.b16 %v3832
    %v5191 = vunpack.c.l.b16 %v3833
    %v5192 = vunpack.c.h.b16 %v3833
    %v5193 = vunpack.c.l.b16 %v3834
    %v5194 = vunpack.c.h.b16 %v3834
    %v5195 = vunpack.c.l.b16 %v3835
    %v5196 = vunpack.c.h.b16 %v3835
    %v5197 = vunpack.c.l.b16 %v3836
    %v5198 = vunpack.c.l.b16 %v3837
    %v5199 = vunpack.c.h.b16 %v3837
    %v5200 = vunpack.c.l.b16 %v3838
    %v5201 = vunpack.c.h.b16 %v3838
    %v5202 = vunpack.c.l.b16 %v3839
    %v5203 = vunpack.c.h.b16 %v3839
    %v5204 = vunpack.c.l.b16 %v3840
    %v5205 = vunpack.c.l.b16 %v3841
    %v5206 = vunpack.c.h.b16 %v3841
    %v5207 = vunpack.c.l.b16 %v3842
    %v5208 = vunpack.c.h.b16 %v3842
    %v5209 = vunpack.c.l.b16 %v3843
    %v5210 = vunpack.c.h.b16 %v3843
    %v5211 = vunpack.c.l.b16 %v3844
    %v5212 = vunpack.c.l.b16 %v3845
    %v5213 = vunpack.c.h.b16 %v3845
    %v5214 = vunpack.c.l.b16 %v3846
    %v5215 = vunpack.c.h.b16 %v3846
    %v5216 = vunpack.c.l.b16 %v3847
    %v5217 = vunpack.c.h.b16 %v3847
    %v5218 = vunpack.c.l.b16 %v3848
    %v5219 = vunpack.c.l.b16 %v3849
    %v5220 = vunpack.c.h.b16 %v3849
    %v5221 = vunpack.c.l.b16 %v3850
    %v5222 = vunpack.c.h.b16 %v3850
    %v5223 = vunpack.c.l.b16 %v3851
    %v5224 = vunpack.c.h.b16 %v3851
    %v5225 = vunpack.c.l.b16 %v3852
    %v5226 = vunpack.c.l.b16 %v3853
    %v5227 = vunpack.c.h.b16 %v3853
    %v5228 = vunpack.c.l.b16 %v3854
    %v5229 = vunpack.c.h.b16 %v3854
    %v5230 = vunpack.c.l.b16 %v3855
    %v5231 = vunpack.c.h.b16 %v3855
    %v5232 = vunpack.c.l.b16 %v3856
    %v5233 = vunpack.c.l.b16 %v3857
    %v5234 = vunpack.c.h.b16 %v3857
    %v5235 = vunpack.c.l.b16 %v3858
    %v5236 = vunpack.c.h.b16 %v3858
    %v5237 = vunpack.c.l.b16 %v3859
    %v5238 = vunpack.c.h.b16 %v3859
    %v5239 = vunpack.c.l.b16 %v3860
    %v5240 = vunpack.c.l.b16 %v3861
    %v5241 = vunpack.c.h.b16 %v3861
    %v5242 = vunpack.c.l.b16 %v3862
    %v5243 = vunpack.c.h.b16 %v3862
    %v5244 = vunpack.c.l.b16 %v3863
    %v5245 = vunpack.c.h.b16 %v3863
    %v5246 = vunpack.c.l.b16 %v3864
    %v5247 = vunpack.c.l.b16 %v3865
    %v5248 = vunpack.c.h.b16 %v3865
    %v5249 = vunpack.c.l.b16 %v3866
    %v5250 = vunpack.c.h.b16 %v3866
    %v5251 = vunpack.c.l.b16 %v3867
    %v5252 = vunpack.c.h.b16 %v3867
    %v5253 = vunpack.c.l.b16 %v3868
    %v5254 = vunpack.c.l.b16 %v3869
    %v5255 = vunpack.c.h.b16 %v3869
    %v5256 = vunpack.c.l.b16 %v3870
    %v5257 = vunpack.c.h.b16 %v3870
    %v5258 = vunpack.c.l.b16 %v3871
    %v5259 = vunpack.c.h.b16 %v3871
    %v5260 = vunpack.c.l.b16 %v3872
    %v5261 = vunpack.c.l.b16 %v3873
    %v5262 = vunpack.c.h.b16 %v3873
    %v5263 = vunpack.c.l.b16 %v3874
    %v5264 = vunpack.c.h.b16 %v3874
    %v5265 = vunpack.c.l.b16 %v3875
    %v5266 = vunpack.c.h.b16 %v3875
    %v5267 = vunpack.c.l.b16 %v3876
    %v5268 = vunpack.c.l.b16 %v3877
    %v5269 = vunpack.c.h.b16 %v3877
    %v5270 = vunpack.c.l.b16 %v3878
    %v5271 = vunpack.c.h.b16 %v3878
    %v5272 = vunpack.c.l.b16 %v3879
    %v5273 = vunpack.c.h.b16 %v3879
    %v5274 = vunpack.c.l.b16 %v3880
    %v5275 = vunpack.c.l.b16 %v3881
    %v5276 = vunpack.c.h.b16 %v3881
    %v5277 = vunpack.c.l.b16 %v3882
    %v5278 = vunpack.c.h.b16 %v3882
    %v5279 = vunpack.c.l.b16 %v3883
    %v5280 = vunpack.c.h.b16 %v3883
    %v5281 = vunpack.c.l.b16 %v3884
    %v5282 = vunpack.c.l.b16 %v3885
    %v5283 = vunpack.c.h.b16 %v3885
    %v5284 = vunpack.c.l.b16 %v3886
    %v5285 = vunpack.c.h.b16 %v3886
    %v5286 = vunpack.c.l.b16 %v3887
    %v5287 = vunpack.c.h.b16 %v3887
    %v5288 = vunpack.c.l.b16 %v3888
    %v5289 = vunpack.c.l.b16 %v3889
    %v5290 = vunpack.c.h.b16 %v3889
    %v5291 = vunpack.c.l.b16 %v3890
    %v5292 = vunpack.c.h.b16 %v3890
    %v5293 = vunpack.c.l.b16 %v3891
    %v5294 = vunpack.c.h.b16 %v3891
    %v5295 = vunpack.c.l.b16 %v3892
    %v5296 = vunpack.c.l.b16 %v3893
    %v5297 = vunpack.c.h.b16 %v3893
    %v5298 = vunpack.c.l.b16 %v3894
    %v5299 = vunpack.c.h.b16 %v3894
    %v5300 = vunpack.c.l.b16 %v3895
    %v5301 = vunpack.c.h.b16 %v3895
    %v5302 = vunpack.c.l.b16 %v3896
    %v5303 = vunpack.c.l.b16 %v3897
    %v5304 = vunpack.c.h.b16 %v3897
    %v5305 = vunpack.c.l.b16 %v3898
    %v5306 = vunpack.c.h.b16 %v3898
    %v5307 = vunpack.c.l.b16 %v3899
    %v5308 = vunpack.c.h.b16 %v3899
    %v5309 = vunpack.c.l.b16 %v3900
    %v5310 = vunpack.c.l.b16 %v3901
    %v5311 = vunpack.c.h.b16 %v3901
    %v5312 = vunpack.c.l.b16 %v3902
    %v5313 = vunpack.c.h.b16 %v3902
    %v5314 = vunpack.c.l.b16 %v3903
    %v5315 = vunpack.c.h.b16 %v3903
    %v5316 = vunpack.c.l.b16 %v3904
    %v5317 = vunpack.c.l.b16 %v3905
    %v5318 = vunpack.c.h.b16 %v3905
    %v5319 = vunpack.c.l.b16 %v3906
    %v5320 = vunpack.c.h.b16 %v3906
    %v5321 = vunpack.c.l.b16 %v3907
    %v5322 = vunpack.c.h.b16 %v3907
    %v5323 = vunpack.c.l.b16 %v3908
    %v5324 = vunpack.c.l.b16 %v3909
    %v5325 = vunpack.c.h.b16 %v3909
    %v5326 = vunpack.c.l.b16 %v3910
    %v5327 = vunpack.c.h.b16 %v3910
    %v5328 = vunpack.c.l.b16 %v3911
    %v5329 = vunpack.c.h.b16 %v3911
    %v5330 = vunpack.c.l.b16 %v3912
    %v5331 = vunpack.c.l.b16 %v3913
    %v5332 = vunpack.c.h.b16 %v3913
    %v5333 = vunpack.c.l.b16 %v3914
    %v5334 = vunpack.c.h.b16 %v3914
    %v5335 = vunpack.c.l.b16 %v3915
    %v5336 = vunpack.c.h.b16 %v3915
    %v5337 = vunpack.c.l.b16 %v3916
    %v5338 = vunpack.c.l.b16 %v3917
    %v5339 = vunpack.c.h.b16 %v3917
    %v5340 = vunpack.c.l.b16 %v3918
    %v5341 = vunpack.c.h.b16 %v3918
    %v5342 = vunpack.c.l.b16 %v3919
    %v5343 = vunpack.c.h.b16 %v3919
    %v5344 = vunpack.c.l.b16 %v3920
    %v5345 = vunpack.c.l.b16 %v3921
    %v5346 = vunpack.c.h.b16 %v3921
    %v5347 = vunpack.c.l.b16 %v3922
    %v5348 = vunpack.c.h.b16 %v3922
    %v5349 = vunpack.c.l.b16 %v3923
    %v5350 = vunpack.c.h.b16 %v3923
    %v5351 = vunpack.c.l.b16 %v3924
    %v5352 = vunpack.c.l.b16 %v3925
    %v5353 = vunpack.c.h.b16 %v3925
    %v5354 = vunpack.c.l.b16 %v3926
    %v5355 = vunpack.c.h.b16 %v3926
    %v5356 = vunpack.c.l.b16 %v3927
    %v5357 = vunpack.c.h.b16 %v3927
    %v5358 = vunpack.c.l.b16 %v3928
    %v5359 = vunpack.c.l.b16 %v3929
    %v5360 = vunpack.c.h.b16 %v3929
    %v5361 = vunpack.c.l.b16 %v3930
    %v5362 = vunpack.c.h.b16 %v3930
    %v5363 = vunpack.c.l.b16 %v3931
    %v5364 = vunpack.c.h.b16 %v3931
    %v5365 = vunpack.c.l.b16 %v3932
    %v5366 = vunpack.c.l.b16 %v3933
    %v5367 = vunpack.c.h.b16 %v3933
    %v5368 = vunpack.c.l.b16 %v3934
    %v5369 = vunpack.c.h.b16 %v3934
    %v5370 = vunpack.c.l.b16 %v3935
    %v5371 = vunpack.c.h.b16 %v3935
    %v5372 = vunpack.c.l.b16 %v3936
    %v5373 = vunpack.c.l.b16 %v3937
    %v5374 = vunpack.c.h.b16 %v3937
    %v5375 = vunpack.c.l.b16 %v3938
    %v5376 = vunpack.c.h.b16 %v3938
    %v5377 = vunpack.c.l.b16 %v3939
    %v5378 = vunpack.c.h.b16 %v3939
    %v5379 = vunpack.c.l.b16 %v3940
    %v5380 = vunpack.c.l.b16 %v3941
    %v5381 = vunpack.c.h.b16 %v3941
    %v5382 = vunpack.c.l.b16 %v3942
    %v5383 = vunpack.c.h.b16 %v3942
    %v5384 = vunpack.c.l.b16 %v3943
    %v5385 = vunpack.c.h.b16 %v3943
    %v5386 = vunpack.c.l.b16 %v3944
    %v5387 = vunpack.c.l.b16 %v3945
    %v5388 = vunpack.c.h.b16 %v3945
    %v5389 = vunpack.c.l.b16 %v3946
    %v5390 = vunpack.c.h.b16 %v3946
    %v5391 = vunpack.c.l.b16 %v3947
    %v5392 = vunpack.c.h.b16 %v3947
    %v5393 = vunpack.c.l.b16 %v3948
    %v5394 = vunpack.c.l.b16 %v3949
    %v5395 = vunpack.c.h.b16 %v3949
    %v5396 = vunpack.c.l.b16 %v3950
    %v5397 = vunpack.c.h.b16 %v3950
    %v5398 = vunpack.c.l.b16 %v3951
    %v5399 = vunpack.c.h.b16 %v3951
    %v5400 = vunpack.c.l.b16 %v3952
    %v5401 = vpack.c.b16 %v4512, %v4505
    %v5402 = vpack.c.b16 %v4513, %v4506
    %v5403 = vpack.c.b16 %v4514, %v4507
    %v5404 = vpack.c.b16 %v4515, %v4508
    %v5405 = vpack.c.b16 %v4516, %v4509
    %v5406 = vpack.c.b16 %v4517, %v4510
    %v5407 = vpack.c.b16 %v4518, %v4511
    %v5408 = vpack.c.b16 %v4526, %v4519
    %v5409 = vpack.c.b16 %v4527, %v4520
    %v5410 = vpack.c.b16 %v4528, %v4521
    %v5411 = vpack.c.b16 %v4529, %v4522
    %v5412 = vpack.c.b16 %v4530, %v4523
    %v5413 = vpack.c.b16 %v4531, %v4524
    %v5414 = vpack.c.b16 %v4532, %v4525
    %v5415 = vpack.c.b16 %v4540, %v4533
    %v5416 = vpack.c.b16 %v4541, %v4534
    %v5417 = vpack.c.b16 %v4542, %v4535
    %v5418 = vpack.c.b16 %v4543, %v4536
    %v5419 = vpack.c.b16 %v4544, %v4537
    %v5420 = vpack.c.b16 %v4545, %v4538
    %v5421 = vpack.c.b16 %v4546, %v4539
    %v5422 = vpack.c.b16 %v4554, %v4547
    %v5423 = vpack.c.b16 %v4555, %v4548
    %v5424 = vpack.c.b16 %v4556, %v4549
    %v5425 = vpack.c.b16 %v4557, %v4550
    %v5426 = vpack.c.b16 %v4558, %v4551
    %v5427 = vpack.c.b16 %v4559, %v4552
    %v5428 = vpack.c.b16 %v4560, %v4553
    %v5429 = vpack.c.b16 %v4568, %v4561
    %v5430 = vpack.c.b16 %v4569, %v4562
    %v5431 = vpack.c.b16 %v4570, %v4563
    %v5432 = vpack.c.b16 %v4571, %v4564
    %v5433 = vpack.c.b16 %v4572, %v4565
    %v5434 = vpack.c.b16 %v4573, %v4566
    %v5435 = vpack.c.b16 %v4574, %v4567
    %v5436 = vpack.c.b16 %v4582, %v4575
    %v5437 = vpack.c.b16 %v4583, %v4576
    %v5438 = vpack.c.b16 %v4584, %v4577
    %v5439 = vpack.c.b16 %v4585, %v4578
    %v5440 = vpack.c.b16 %v4586, %v4579
    %v5441 = vpack.c.b16 %v4587, %v4580
    %v5442 = vpack.c.b16 %v4588, %v4581
    %v5443 = vpack.c.b16 %v4596, %v4589
    %v5444 = vpack.c.b16 %v4597, %v4590
    %v5445 = vpack.c.b16 %v4598, %v4591
    %v5446 = vpack.c.b16 %v4599, %v4592
    %v5447 = vpack.c.b16 %v4600, %v4593
    %v5448 = vpack.c.b16 %v4601, %v4594
    %v5449 = vpack.c.b16 %v4602, %v4595
    %v5450 = vpack.c.b16 %v4610, %v4603
    %v5451 = vpack.c.b16 %v4611, %v4604
    %v5452 = vpack.c.b16 %v4612, %v4605
    %v5453 = vpack.c.b16 %v4613, %v4606
    %v5454 = vpack.c.b16 %v4614, %v4607
    %v5455 = vpack.c.b16 %v4615, %v4608
    %v5456 = vpack.c.b16 %v4616, %v4609
    %v5457 = vpack.c.b16 %v4624, %v4617
    %v5458 = vpack.c.b16 %v4625, %v4618
    %v5459 = vpack.c.b16 %v4626, %v4619
    %v5460 = vpack.c.b16 %v4627, %v4620
    %v5461 = vpack.c.b16 %v4628, %v4621
    %v5462 = vpack.c.b16 %v4629, %v4622
    %v5463 = vpack.c.b16 %v4630, %v4623
    %v5464 = vpack.c.b16 %v4638, %v4631
    %v5465 = vpack.c.b16 %v4639, %v4632
    %v5466 = vpack.c.b16 %v4640, %v4633
    %v5467 = vpack.c.b16 %v4641, %v4634
    %v5468 = vpack.c.b16 %v4642, %v4635
    %v5469 = vpack.c.b16 %v4643, %v4636
    %v5470 = vpack.c.b16 %v4644, %v4637
    %v5471 = vpack.c.b16 %v4652, %v4645
    %v5472 = vpack.c.b16 %v4653, %v4646
    %v5473 = vpack.c.b16 %v4654, %v4647
    %v5474 = vpack.c.b16 %v4655, %v4648
    %v5475 = vpack.c.b16 %v4656, %v4649
    %v5476 = vpack.c.b16 %v4657, %v4650
    %v5477 = vpack.c.b16 %v4658, %v4651
    %v5478 = vpack.c.b16 %v4666, %v4659
    %v5479 = vpack.c.b16 %v4667, %v4660
    %v5480 = vpack.c.b16 %v4668, %v4661
    %v5481 = vpack.c.b16 %v4669, %v4662
    %v5482 = vpack.c.b16 %v4670, %v4663
    %v5483 = vpack.c.b16 %v4671, %v4664
    %v5484 = vpack.c.b16 %v4672, %v4665
    %v5485 = vpack.c.b16 %v4680, %v4673
    %v5486 = vpack.c.b16 %v4681, %v4674
    %v5487 = vpack.c.b16 %v4682, %v4675
    %v5488 = vpack.c.b16 %v4683, %v4676
    %v5489 = vpack.c.b16 %v4684, %v4677
    %v5490 = vpack.c.b16 %v4685, %v4678
    %v5491 = vpack.c.b16 %v4686, %v4679
    %v5492 = vpack.c.b16 %v4694, %v4687
    %v5493 = vpack.c.b16 %v4695, %v4688
    %v5494 = vpack.c.b16 %v4696, %v4689
    %v5495 = vpack.c.b16 %v4697, %v4690
    %v5496 = vpack.c.b16 %v4698, %v4691
    %v5497 = vpack.c.b16 %v4699, %v4692
    %v5498 = vpack.c.b16 %v4700, %v4693
    %v5499 = vpack.c.b16 %v4708, %v4701
    %v5500 = vpack.c.b16 %v4709, %v4702
    %v5501 = vpack.c.b16 %v4710, %v4703
    %v5502 = vpack.c.b16 %v4711, %v4704
    %v5503 = vpack.c.b16 %v4712, %v4705
    %v5504 = vpack.c.b16 %v4713, %v4706
    %v5505 = vpack.c.b16 %v4714, %v4707
    %v5506 = vpack.c.b16 %v4722, %v4715
    %v5507 = vpack.c.b16 %v4723, %v4716
    %v5508 = vpack.c.b16 %v4724, %v4717
    %v5509 = vpack.c.b16 %v4725, %v4718
    %v5510 = vpack.c.b16 %v4726, %v4719
    %v5511 = vpack.c.b16 %v4727, %v4720
    %v5512 = vpack.c.b16 %v4728, %v4721
    %v5513 = vpack.c.b16 %v4736, %v4729
    %v5514 = vpack.c.b16 %v4737, %v4730
    %v5515 = vpack.c.b16 %v4738, %v4731
    %v5516 = vpack.c.b16 %v4739, %v4732
    %v5517 = vpack.c.b16 %v4740, %v4733
    %v5518 = vpack.c.b16 %v4741, %v4734
    %v5519 = vpack.c.b16 %v4742, %v4735
    %v5520 = vpack.c.b16 %v4750, %v4743
    %v5521 = vpack.c.b16 %v4751, %v4744
    %v5522 = vpack.c.b16 %v4752, %v4745
    %v5523 = vpack.c.b16 %v4753, %v4746
    %v5524 = vpack.c.b16 %v4754, %v4747
    %v5525 = vpack.c.b16 %v4755, %v4748
    %v5526 = vpack.c.b16 %v4756, %v4749
    %v5527 = vpack.c.b16 %v4764, %v4757
    %v5528 = vpack.c.b16 %v4765, %v4758
    %v5529 = vpack.c.b16 %v4766, %v4759
    %v5530 = vpack.c.b16 %v4767, %v4760
    %v5531 = vpack.c.b16 %v4768, %v4761
    %v5532 = vpack.c.b16 %v4769, %v4762
    %v5533 = vpack.c.b16 %v4770, %v4763
    %v5534 = vpack.c.b16 %v4778, %v4771
    %v5535 = vpack.c.b16 %v4779, %v4772
    %v5536 = vpack.c.b16 %v4780, %v4773
    %v5537 = vpack.c.b16 %v4781, %v4774
    %v5538 = vpack.c.b16 %v4782, %v4775
    %v5539 = vpack.c.b16 %v4783, %v4776
    %v5540 = vpack.c.b16 %v4784, %v4777
    %v5541 = vpack.c.b16 %v4792, %v4785
    %v5542 = vpack.c.b16 %v4793, %v4786
    %v5543 = vpack.c.b16 %v4794, %v4787
    %v5544 = vpack.c.b16 %v4795, %v4788
    %v5545 = vpack.c.b16 %v4796, %v4789
    %v5546 = vpack.c.b16 %v4797, %v4790
    %v5547 = vpack.c.b16 %v4798, %v4791
    %v5548 = vpack.c.b16 %v4806, %v4799
    %v5549 = vpack.c.b16 %v4807, %v4800
    %v5550 = vpack.c.b16 %v4808, %v4801
    %v5551 = vpack.c.b16 %v4809, %v4802
    %v5552 = vpack.c.b16 %v4810, %v4803
    %v5553 = vpack.c.b16 %v4811, %v4804
    %v5554 = vpack.c.b16 %v4812, %v4805
    %v5555 = vpack.c.b16 %v4820, %v4813
    %v5556 = vpack.c.b16 %v4821, %v4814
    %v5557 = vpack.c.b16 %v4822, %v4815
    %v5558 = vpack.c.b16 %v4823, %v4816
    %v5559 = vpack.c.b16 %v4824, %v4817
    %v5560 = vpack.c.b16 %v4825, %v4818
    %v5561 = vpack.c.b16 %v4826, %v4819
    %v5562 = vpack.c.b16 %v4834, %v4827
    %v5563 = vpack.c.b16 %v4835, %v4828
    %v5564 = vpack.c.b16 %v4836, %v4829
    %v5565 = vpack.c.b16 %v4837, %v4830
    %v5566 = vpack.c.b16 %v4838, %v4831
    %v5567 = vpack.c.b16 %v4839, %v4832
    %v5568 = vpack.c.b16 %v4840, %v4833
    %v5569 = vpack.c.b16 %v4848, %v4841
    %v5570 = vpack.c.b16 %v4849, %v4842
    %v5571 = vpack.c.b16 %v4850, %v4843
    %v5572 = vpack.c.b16 %v4851, %v4844
    %v5573 = vpack.c.b16 %v4852, %v4845
    %v5574 = vpack.c.b16 %v4853, %v4846
    %v5575 = vpack.c.b16 %v4854, %v4847
    %v5576 = vpack.c.b16 %v4862, %v4855
    %v5577 = vpack.c.b16 %v4863, %v4856
    %v5578 = vpack.c.b16 %v4864, %v4857
    %v5579 = vpack.c.b16 %v4865, %v4858
    %v5580 = vpack.c.b16 %v4866, %v4859
    %v5581 = vpack.c.b16 %v4867, %v4860
    %v5582 = vpack.c.b16 %v4868, %v4861
    %v5583 = vpack.c.b16 %v4876, %v4869
    %v5584 = vpack.c.b16 %v4877, %v4870
    %v5585 = vpack.c.b16 %v4878, %v4871
    %v5586 = vpack.c.b16 %v4879, %v4872
    %v5587 = vpack.c.b16 %v4880, %v4873
    %v5588 = vpack.c.b16 %v4881, %v4874
    %v5589 = vpack.c.b16 %v4882, %v4875
    %v5590 = vpack.c.b16 %v4890, %v4883
    %v5591 = vpack.c.b16 %v4891, %v4884
    %v5592 = vpack.c.b16 %v4892, %v4885
    %v5593 = vpack.c.b16 %v4893, %v4886
    %v5594 = vpack.c.b16 %v4894, %v4887
    %v5595 = vpack.c.b16 %v4895, %v4888
    %v5596 = vpack.c.b16 %v4896, %v4889
    %v5597 = vpack.c.b16 %v4904, %v4897
    %v5598 = vpack.c.b16 %v4905, %v4898
    %v5599 = vpack.c.b16 %v4906, %v4899
    %v5600 = vpack.c.b16 %v4907, %v4900
    %v5601 = vpack.c.b16 %v4908, %v4901
    %v5602 = vpack.c.b16 %v4909, %v4902
    %v5603 = vpack.c.b16 %v4910, %v4903
    %v5604 = vpack.c.b16 %v4918, %v4911
    %v5605 = vpack.c.b16 %v4919, %v4912
    %v5606 = vpack.c.b16 %v4920, %v4913
    %v5607 = vpack.c.b16 %v4921, %v4914
    %v5608 = vpack.c.b16 %v4922, %v4915
    %v5609 = vpack.c.b16 %v4923, %v4916
    %v5610 = vpack.c.b16 %v4924, %v4917
    %v5611 = vpack.c.b16 %v4932, %v4925
    %v5612 = vpack.c.b16 %v4933, %v4926
    %v5613 = vpack.c.b16 %v4934, %v4927
    %v5614 = vpack.c.b16 %v4935, %v4928
    %v5615 = vpack.c.b16 %v4936, %v4929
    %v5616 = vpack.c.b16 %v4937, %v4930
    %v5617 = vpack.c.b16 %v4938, %v4931
    %v5618 = vpack.c.b16 %v4946, %v4939
    %v5619 = vpack.c.b16 %v4947, %v4940
    %v5620 = vpack.c.b16 %v4948, %v4941
    %v5621 = vpack.c.b16 %v4949, %v4942
    %v5622 = vpack.c.b16 %v4950, %v4943
    %v5623 = vpack.c.b16 %v4951, %v4944
    %v5624 = vpack.c.b16 %v4952, %v4945
    %v5625 = vpack.c.b16 %v4960, %v4953
    %v5626 = vpack.c.b16 %v4961, %v4954
    %v5627 = vpack.c.b16 %v4962, %v4955
    %v5628 = vpack.c.b16 %v4963, %v4956
    %v5629 = vpack.c.b16 %v4964, %v4957
    %v5630 = vpack.c.b16 %v4965, %v4958
    %v5631 = vpack.c.b16 %v4966, %v4959
    %v5632 = vpack.c.b16 %v4974, %v4967
    %v5633 = vpack.c.b16 %v4975, %v4968
    %v5634 = vpack.c.b16 %v4976, %v4969
    %v5635 = vpack.c.b16 %v4977, %v4970
    %v5636 = vpack.c.b16 %v4978, %v4971
    %v5637 = vpack.c.b16 %v4979, %v4972
    %v5638 = vpack.c.b16 %v4980, %v4973
    %v5639 = vpack.c.b16 %v4988, %v4981
    %v5640 = vpack.c.b16 %v4989, %v4982
    %v5641 = vpack.c.b16 %v4990, %v4983
    %v5642 = vpack.c.b16 %v4991, %v4984
    %v5643 = vpack.c.b16 %v4992, %v4985
    %v5644 = vpack.c.b16 %v4993, %v4986
    %v5645 = vpack.c.b16 %v4994, %v4987
    %v5646 = vpack.c.b16 %v5002, %v4995
    %v5647 = vpack.c.b16 %v5003, %v4996
    %v5648 = vpack.c.b16 %v5004, %v4997
    %v5649 = vpack.c.b16 %v5005, %v4998
    %v5650 = vpack.c.b16 %v5006, %v4999
    %v5651 = vpack.c.b16 %v5007, %v5000
    %v5652 = vpack.c.b16 %v5008, %v5001
    %v5653 = vpack.c.b16 %v5016, %v5009
    %v5654 = vpack.c.b16 %v5017, %v5010
    %v5655 = vpack.c.b16 %v5018, %v5011
    %v5656 = vpack.c.b16 %v5019, %v5012
    %v5657 = vpack.c.b16 %v5020, %v5013
    %v5658 = vpack.c.b16 %v5021, %v5014
    %v5659 = vpack.c.b16 %v5022, %v5015
    %v5660 = vpack.c.b16 %v5030, %v5023
    %v5661 = vpack.c.b16 %v5031, %v5024
    %v5662 = vpack.c.b16 %v5032, %v5025
    %v5663 = vpack.c.b16 %v5033, %v5026
    %v5664 = vpack.c.b16 %v5034, %v5027
    %v5665 = vpack.c.b16 %v5035, %v5028
    %v5666 = vpack.c.b16 %v5036, %v5029
    %v5667 = vpack.c.b16 %v5044, %v5037
    %v5668 = vpack.c.b16 %v5045, %v5038
    %v5669 = vpack.c.b16 %v5046, %v5039
    %v5670 = vpack.c.b16 %v5047, %v5040
    %v5671 = vpack.c.b16 %v5048, %v5041
    %v5672 = vpack.c.b16 %v5049, %v5042
    %v5673 = vpack.c.b16 %v5050, %v5043
    %v5674 = vpack.c.b16 %v5058, %v5051
    %v5675 = vpack.c.b16 %v5059, %v5052
    %v5676 = vpack.c.b16 %v5060, %v5053
    %v5677 = vpack.c.b16 %v5061, %v5054
    %v5678 = vpack.c.b16 %v5062, %v5055
    %v5679 = vpack.c.b16 %v5063, %v5056
    %v5680 = vpack.c.b16 %v5064, %v5057
    %v5681 = vpack.c.b16 %v5072, %v5065
    %v5682 = vpack.c.b16 %v5073, %v5066
    %v5683 = vpack.c.b16 %v5074, %v5067
    %v5684 = vpack.c.b16 %v5075, %v5068
    %v5685 = vpack.c.b16 %v5076, %v5069
    %v5686 = vpack.c.b16 %v5077, %v5070
    %v5687 = vpack.c.b16 %v5078, %v5071
    %v5688 = vpack.c.b16 %v5086, %v5079
    %v5689 = vpack.c.b16 %v5087, %v5080
    %v5690 = vpack.c.b16 %v5088, %v5081
    %v5691 = vpack.c.b16 %v5089, %v5082
    %v5692 = vpack.c.b16 %v5090, %v5083
    %v5693 = vpack.c.b16 %v5091, %v5084
    %v5694 = vpack.c.b16 %v5092, %v5085
    %v5695 = vpack.c.b16 %v5100, %v5093
    %v5696 = vpack.c.b16 %v5101, %v5094
    %v5697 = vpack.c.b16 %v5102, %v5095
    %v5698 = vpack.c.b16 %v5103, %v5096
    %v5699 = vpack.c.b16 %v5104, %v5097
    %v5700 = vpack.c.b16 %v5105, %v5098
    %v5701 = vpack.c.b16 %v5106, %v5099
    %v5702 = vpack.c.b16 %v5114, %v5107
    %v5703 = vpack.c.b16 %v5115, %v5108
    %v5704 = vpack.c.b16 %v5116, %v5109
    %v5705 = vpack.c.b16 %v5117, %v5110
    %v5706 = vpack.c.b16 %v5118, %v5111
    %v5707 = vpack.c.b16 %v5119, %v5112
    %v5708 = vpack.c.b16 %v5120, %v5113
    %v5709 = vpack.c.b16 %v5128, %v5121
    %v5710 = vpack.c.b16 %v5129, %v5122
    %v5711 = vpack.c.b16 %v5130, %v5123
    %v5712 = vpack.c.b16 %v5131, %v5124
    %v5713 = vpack.c.b16 %v5132, %v5125
    %v5714 = vpack.c.b16 %v5133, %v5126
    %v5715 = vpack.c.b16 %v5134, %v5127
    %v5716 = vpack.c.b16 %v5142, %v5135
    %v5717 = vpack.c.b16 %v5143, %v5136
    %v5718 = vpack.c.b16 %v5144, %v5137
    %v5719 = vpack.c.b16 %v5145, %v5138
    %v5720 = vpack.c.b16 %v5146, %v5139
    %v5721 = vpack.c.b16 %v5147, %v5140
    %v5722 = vpack.c.b16 %v5148, %v5141
    %v5723 = vpack.c.b16 %v5156, %v5149
    %v5724 = vpack.c.b16 %v5157, %v5150
    %v5725 = vpack.c.b16 %v5158, %v5151
    %v5726 = vpack.c.b16 %v5159, %v5152
    %v5727 = vpack.c.b16 %v5160, %v5153
    %v5728 = vpack.c.b16 %v5161, %v5154
    %v5729 = vpack.c.b16 %v5162, %v5155
    %v5730 = vpack.c.b16 %v5170, %v5163
    %v5731 = vpack.c.b16 %v5171, %v5164
    %v5732 = vpack.c.b16 %v5172, %v5165
    %v5733 = vpack.c.b16 %v5173, %v5166
    %v5734 = vpack.c.b16 %v5174, %v5167
    %v5735 = vpack.c.b16 %v5175, %v5168
    %v5736 = vpack.c.b16 %v5176, %v5169
    %v5737 = vpack.c.b16 %v5184, %v5177
    %v5738 = vpack.c.b16 %v5185, %v5178
    %v5739 = vpack.c.b16 %v5186, %v5179
    %v5740 = vpack.c.b16 %v5187, %v5180
    %v5741 = vpack.c.b16 %v5188, %v5181
    %v5742 = vpack.c.b16 %v5189, %v5182
    %v5743 = vpack.c.b16 %v5190, %v5183
    %v5744 = vpack.c.b16 %v5198, %v5191
    %v5745 = vpack.c.b16 %v5199, %v5192
    %v5746 = vpack.c.b16 %v5200, %v5193
    %v5747 = vpack.c.b16 %v5201, %v5194
    %v5748 = vpack.c.b16 %v5202, %v5195
    %v5749 = vpack.c.b16 %v5203, %v5196
    %v5750 = vpack.c.b16 %v5204, %v5197
    %v5751 = vpack.c.b16 %v5212, %v5205
    %v5752 = vpack.c.b16 %v5213, %v5206
    %v5753 = vpack.c.b16 %v5214, %v5207
    %v5754 = vpack.c.b16 %v5215, %v5208
    %v5755 = vpack.c.b16 %v5216, %v5209
    %v5756 = vpack.c.b16 %v5217, %v5210
    %v5757 = vpack.c.b16 %v5218, %v5211
    %v5758 = vpack.c.b16 %v5226, %v5219
    %v5759 = vpack.c.b16 %v5227, %v5220
    %v5760 = vpack.c.b16 %v5228, %v5221
    %v5761 = vpack.c.b16 %v5229, %v5222
    %v5762 = vpack.c.b16 %v5230, %v5223
    %v5763 = vpack.c.b16 %v5231, %v5224
    %v5764 = vpack.c.b16 %v5232, %v5225
    %v5765 = vpack.c.b16 %v5240, %v5233
    %v5766 = vpack.c.b16 %v5241, %v5234
    %v5767 = vpack.c.b16 %v5242, %v5235
    %v5768 = vpack.c.b16 %v5243, %v5236
    %v5769 = vpack.c.b16 %v5244, %v5237
    %v5770 = vpack.c.b16 %v5245, %v5238
    %v5771 = vpack.c.b16 %v5246, %v5239
    %v5772 = vpack.c.b16 %v5254, %v5247
    %v5773 = vpack.c.b16 %v5255, %v5248
    %v5774 = vpack.c.b16 %v5256, %v5249
    %v5775 = vpack.c.b16 %v5257, %v5250
    %v5776 = vpack.c.b16 %v5258, %v5251
    %v5777 = vpack.c.b16 %v5259, %v5252
    %v5778 = vpack.c.b16 %v5260, %v5253
    %v5779 = vpack.c.b16 %v5268, %v5261
    %v5780 = vpack.c.b16 %v5269, %v5262
    %v5781 = vpack.c.b16 %v5270, %v5263
    %v5782 = vpack.c.b16 %v5271, %v5264
    %v5783 = vpack.c.b16 %v5272, %v5265
    %v5784 = vpack.c.b16 %v5273, %v5266
    %v5785 = vpack.c.b16 %v5274, %v5267
    %v5786 = vpack.c.b16 %v5282, %v5275
    %v5787 = vpack.c.b16 %v5283, %v5276
    %v5788 = vpack.c.b16 %v5284, %v5277
    %v5789 = vpack.c.b16 %v5285, %v5278
    %v5790 = vpack.c.b16 %v5286, %v5279
    %v5791 = vpack.c.b16 %v5287, %v5280
    %v5792 = vpack.c.b16 %v5288, %v5281
    %v5793 = vpack.c.b16 %v5296, %v5289
    %v5794 = vpack.c.b16 %v5297, %v5290
    %v5795 = vpack.c.b16 %v5298, %v5291
    %v5796 = vpack.c.b16 %v5299, %v5292
    %v5797 = vpack.c.b16 %v5300, %v5293
    %v5798 = vpack.c.b16 %v5301, %v5294
    %v5799 = vpack.c.b16 %v5302, %v5295
    %v5800 = vpack.c.b16 %v5310, %v5303
    %v5801 = vpack.c.b16 %v5311, %v5304
    %v5802 = vpack.c.b16 %v5312, %v5305
    %v5803 = vpack.c.b16 %v5313, %v5306
    %v5804 = vpack.c.b16 %v5314, %v5307
    %v5805 = vpack.c.b16 %v5315, %v5308
    %v5806 = vpack.c.b16 %v5316, %v5309
    %v5807 = vpack.c.b16 %v5324, %v5317
    %v5808 = vpack.c.b16 %v5325, %v5318
    %v5809 = vpack.c.b16 %v5326, %v5319
    %v5810 = vpack.c.b16 %v5327, %v5320
    %v5811 = vpack.c.b16 %v5328, %v5321
    %v5812 = vpack.c.b16 %v5329, %v5322
    %v5813 = vpack.c.b16 %v5330, %v5323
    %v5814 = vpack.c.b16 %v5338, %v5331
    %v5815 = vpack.c.b16 %v5339, %v5332
    %v5816 = vpack.c.b16 %v5340, %v5333
    %v5817 = vpack.c.b16 %v5341, %v5334
    %v5818 = vpack.c.b16 %v5342, %v5335
    %v5819 = vpack.c.b16 %v5343, %v5336
    %v5820 = vpack.c.b16 %v5344, %v5337
    %v5821 = vpack.c.b16 %v5352, %v5345
    %v5822 = vpack.c.b16 %v5353, %v5346
    %v5823 = vpack.c.b16 %v5354, %v5347
    %v5824 = vpack.c.b16 %v5355, %v5348
    %v5825 = vpack.c.b16 %v5356, %v5349
    %v5826 = vpack.c.b16 %v5357, %v5350
    %v5827 = vpack.c.b16 %v5358, %v5351
    %v5828 = vpack.c.b16 %v5366, %v5359
    %v5829 = vpack.c.b16 %v5367, %v5360
    %v5830 = vpack.c.b16 %v5368, %v5361
    %v5831 = vpack.c.b16 %v5369, %v5362
    %v5832 = vpack.c.b16 %v5370, %v5363
    %v5833 = vpack.c.b16 %v5371, %v5364
    %v5834 = vpack.c.b16 %v5372, %v5365
    %v5835 = vpack.c.b16 %v5380, %v5373
    %v5836 = vpack.c.b16 %v5381, %v5374
    %v5837 = vpack.c.b16 %v5382, %v5375
    %v5838 = vpack.c.b16 %v5383, %v5376
    %v5839 = vpack.c.b16 %v5384, %v5377
    %v5840 = vpack.c.b16 %v5385, %v5378
    %v5841 = vpack.c.b16 %v5386, %v5379
    %v5842 = vpack.c.b16 %v5394, %v5387
    %v5843 = vpack.c.b16 %v5395, %v5388
    %v5844 = vpack.c.b16 %v5396, %v5389
    %v5845 = vpack.c.b16 %v5397, %v5390
    %v5846 = vpack.c.b16 %v5398, %v5391
    %v5847 = vpack.c.b16 %v5399, %v5392
    %v5848 = vpack.c.b16 %v5400, %v5393
    %6297 = vmatprep.subr.bf16.mxu0 %v5451
    %6298 = vmatpush1.bf16.msra.mxu0 %v5450
    %6299 = vmatprep.subr.bf16.mxu0 %v5444
    %6300 = vmatpush1.bf16.msra.mxu0 %v5443
    %6301 = vmatprep.subr.bf16.mxu0 %v5437
    %6302 = vmatpush1.bf16.msra.mxu0 %v5436
    %6303 = vmatprep.subr.bf16.mxu0 %v5430
    %6304 = vmatpush1.bf16.msra.mxu0 %v5429
    %6305 = vmatprep.subr.bf16.mxu0 %v5423
    %6306 = vmatpush1.bf16.msra.mxu0 %v5422
    %6307 = vmatprep.subr.bf16.mxu0 %v5416
    %6308 = vmatpush1.bf16.msra.mxu0 %v5415
    %6309 = vmatprep.subr.bf16.mxu0 %v5409
    %6310 = vmatpush1.bf16.msra.mxu0 %v5408
    %6311 = vmatprep.subr.bf16.mxu0 %v5402
    %6312 = vmatpush1.bf16.msra.mxu0 %v5401
    %6313 = vmatprep.subr.bf16.mxu0 %v5507
    %6314 = vmatpush2.bf16.msra.mxu0 %v5506
    %6315 = vmatprep.subr.bf16.mxu0 %v5500
    %6316 = vmatpush2.bf16.msra.mxu0 %v5499
    %6317 = vmatprep.subr.bf16.mxu0 %v5493
    %6318 = vmatpush2.bf16.msra.mxu0 %v5492
    %6319 = vmatprep.subr.bf16.mxu0 %v5486
    %6320 = vmatpush2.bf16.msra.mxu0 %v5485
    %6321 = vmatprep.subr.bf16.mxu0 %v5479
    %6322 = vmatpush2.bf16.msra.mxu0 %v5478
    %6323 = vmatprep.subr.bf16.mxu0 %v5472
    %6324 = vmatpush2.bf16.msra.mxu0 %v5471
    %6325 = vmatprep.subr.bf16.mxu0 %v5465
    %6326 = vmatpush2.bf16.msra.mxu0 %v5464
    %6327 = vmatprep.subr.bf16.mxu0 %v5458
    %6328 = vmatpush2.bf16.msra.mxu0 %v5457
    %6329 = vmatprep.mubr.bf16.mxu0 %v3434
    %6330 = vmatmul.mubr.bf16.gmra.mxu0 %v3433
    %v6331 = vpop.f32.mrf.mxu0
    %v6332 = vadd.f32 %v3961, %v6331
    %v6333 = vpop.f32.mrf.mxu0
    %v6334 = vadd.f32 %v3965, %v6333
    %v6335 = vpop.f32.mrf.mxu0
    %v6336 = vpop.f32.mrf.mxu0
    %6337 = vdwg.mxu0
    %6338 = vmatprep.subr.bf16.mxu0 %v5563
    %6339 = vmatpush1.bf16.msra.mxu0 %v5562
    %6340 = vmatprep.subr.bf16.mxu0 %v5556
    %6341 = vmatpush1.bf16.msra.mxu0 %v5555
    %6342 = vmatprep.subr.bf16.mxu0 %v5549
    %6343 = vmatpush1.bf16.msra.mxu0 %v5548
    %6344 = vmatprep.subr.bf16.mxu0 %v5542
    %6345 = vmatpush1.bf16.msra.mxu0 %v5541
    %6346 = vmatprep.subr.bf16.mxu0 %v5535
    %6347 = vmatpush1.bf16.msra.mxu0 %v5534
    %6348 = vmatprep.subr.bf16.mxu0 %v5528
    %6349 = vmatpush1.bf16.msra.mxu0 %v5527
    %6350 = vmatprep.subr.bf16.mxu0 %v5521
    %6351 = vmatpush1.bf16.msra.mxu0 %v5520
    %6352 = vmatprep.subr.bf16.mxu0 %v5514
    %6353 = vmatpush1.bf16.msra.mxu0 %v5513
    %6354 = vmatprep.subr.bf16.mxu0 %v5619
    %6355 = vmatpush2.bf16.msra.mxu0 %v5618
    %6356 = vmatprep.subr.bf16.mxu0 %v5612
    %6357 = vmatpush2.bf16.msra.mxu0 %v5611
    %6358 = vmatprep.subr.bf16.mxu0 %v5605
    %6359 = vmatpush2.bf16.msra.mxu0 %v5604
    %6360 = vmatprep.subr.bf16.mxu0 %v5598
    %6361 = vmatpush2.bf16.msra.mxu0 %v5597
    %6362 = vmatprep.subr.bf16.mxu0 %v5591
    %6363 = vmatpush2.bf16.msra.mxu0 %v5590
    %6364 = vmatprep.subr.bf16.mxu0 %v5584
    %6365 = vmatpush2.bf16.msra.mxu0 %v5583
    %6366 = vmatprep.subr.bf16.mxu0 %v5577
    %6367 = vmatpush2.bf16.msra.mxu0 %v5576
    %6368 = vmatprep.subr.bf16.mxu0 %v5570
    %6369 = vmatpush2.bf16.msra.mxu0 %v5569
    %6370 = vmatprep.mubr.bf16.mxu0 %v3436
    %6371 = vmatmul.mubr.bf16.gmra.mxu0 %v3435
    %v6372 = vpop.f32.mrf.mxu0
    %v6373 = vadd.f32 %v6332, %v6372
    %v6374 = vpop.f32.mrf.mxu0
    %v6375 = vadd.f32 %v6334, %v6374
    %v6376 = vpop.f32.mrf.mxu0
    %v6377 = vpop.f32.mrf.mxu0
    %6378 = vdwg.mxu0
    %6379 = vmatprep.subr.bf16.mxu0 %v5675
    %6380 = vmatpush1.bf16.msra.mxu0 %v5674
    %6381 = vmatprep.subr.bf16.mxu0 %v5668
    %6382 = vmatpush1.bf16.msra.mxu0 %v5667
    %6383 = vmatprep.subr.bf16.mxu0 %v5661
    %6384 = vmatpush1.bf16.msra.mxu0 %v5660
    %6385 = vmatprep.subr.bf16.mxu0 %v5654
    %6386 = vmatpush1.bf16.msra.mxu0 %v5653
    %6387 = vmatprep.subr.bf16.mxu0 %v5647
    %6388 = vmatpush1.bf16.msra.mxu0 %v5646
    %6389 = vmatprep.subr.bf16.mxu0 %v5640
    %6390 = vmatpush1.bf16.msra.mxu0 %v5639
    %6391 = vmatprep.subr.bf16.mxu0 %v5633
    %6392 = vmatpush1.bf16.msra.mxu0 %v5632
    %6393 = vmatprep.subr.bf16.mxu0 %v5626
    %6394 = vmatpush1.bf16.msra.mxu0 %v5625
    %6395 = vmatprep.subr.bf16.mxu0 %v5731
    %6396 = vmatpush2.bf16.msra.mxu0 %v5730
    %6397 = vmatprep.subr.bf16.mxu0 %v5724
    %6398 = vmatpush2.bf16.msra.mxu0 %v5723
    %6399 = vmatprep.subr.bf16.mxu0 %v5717
    %6400 = vmatpush2.bf16.msra.mxu0 %v5716
    %6401 = vmatprep.subr.bf16.mxu0 %v5710
    %6402 = vmatpush2.bf16.msra.mxu0 %v5709
    %6403 = vmatprep.subr.bf16.mxu0 %v5703
    %6404 = vmatpush2.bf16.msra.mxu0 %v5702
    %6405 = vmatprep.subr.bf16.mxu0 %v5696
    %6406 = vmatpush2.bf16.msra.mxu0 %v5695
    %6407 = vmatprep.subr.bf16.mxu0 %v5689
    %6408 = vmatpush2.bf16.msra.mxu0 %v5688
    %6409 = vmatprep.subr.bf16.mxu0 %v5682
    %6410 = vmatpush2.bf16.msra.mxu0 %v5681
    %6411 = vmatprep.mubr.bf16.mxu0 %v3438
    %6412 = vmatmul.mubr.bf16.gmra.mxu0 %v3437
    %v6413 = vpop.f32.mrf.mxu0
    %v6414 = vadd.f32 %v6373, %v6413
    %v6415 = vpop.f32.mrf.mxu0
    %v6416 = vadd.f32 %v6375, %v6415
    %v6417 = vpop.f32.mrf.mxu0
    %v6418 = vpop.f32.mrf.mxu0
    %6419 = vdwg.mxu0
    %6420 = vmatprep.subr.bf16.mxu0 %v5787
    %6421 = vmatpush1.bf16.msra.mxu0 %v5786
    %6422 = vmatprep.subr.bf16.mxu0 %v5780
    %6423 = vmatpush1.bf16.msra.mxu0 %v5779
    %6424 = vmatprep.subr.bf16.mxu0 %v5773
    %6425 = vmatpush1.bf16.msra.mxu0 %v5772
    %6426 = vmatprep.subr.bf16.mxu0 %v5766
    %6427 = vmatpush1.bf16.msra.mxu0 %v5765
    %6428 = vmatprep.subr.bf16.mxu0 %v5759
    %6429 = vmatpush1.bf16.msra.mxu0 %v5758
    %6430 = vmatprep.subr.bf16.mxu0 %v5752
    %6431 = vmatpush1.bf16.msra.mxu0 %v5751
    %6432 = vmatprep.subr.bf16.mxu0 %v5745
    %6433 = vmatpush1.bf16.msra.mxu0 %v5744
    %6434 = vmatprep.subr.bf16.mxu0 %v5738
    %6435 = vmatpush1.bf16.msra.mxu0 %v5737
    %6436 = vmatprep.subr.bf16.mxu0 %v5843
    %6437 = vmatpush2.bf16.msra.mxu0 %v5842
    %6438 = vmatprep.subr.bf16.mxu0 %v5836
    %6439 = vmatpush2.bf16.msra.mxu0 %v5835
    %6440 = vmatprep.subr.bf16.mxu0 %v5829
    %6441 = vmatpush2.bf16.msra.mxu0 %v5828
    %6442 = vmatprep.subr.bf16.mxu0 %v5822
    %6443 = vmatpush2.bf16.msra.mxu0 %v5821
    %6444 = vmatprep.subr.bf16.mxu0 %v5815
    %6445 = vmatpush2.bf16.msra.mxu0 %v5814
    %6446 = vmatprep.subr.bf16.mxu0 %v5808
    %6447 = vmatpush2.bf16.msra.mxu0 %v5807
    %6448 = vmatprep.subr.bf16.mxu0 %v5801
    %6449 = vmatpush2.bf16.msra.mxu0 %v5800
    %6450 = vmatprep.subr.bf16.mxu0 %v5794
    %6451 = vmatpush2.bf16.msra.mxu0 %v5793
    %6452 = vmatprep.mubr.bf16.mxu0 %v3440
    %6453 = vmatmul.mubr.bf16.gmra.mxu0 %v3439
    %v6454 = vpop.f32.mrf.mxu0
    %v6455 = vadd.f32 %v6414, %v6454
    %v6456 = vpop.f32.mrf.mxu0
    %v6457 = vadd.f32 %v6416, %v6456
    %v6458 = vpop.f32.mrf.mxu0
    %v6459 = vpop.f32.mrf.mxu0
    %6460 = vdwg.mxu0
    %6461 = vmatprep.subr.bf16.mxu0 %v5453
    %6462 = vmatpush1.bf16.msra.mxu0 %v5452
    %6463 = vmatprep.subr.bf16.mxu0 %v5446
    %6464 = vmatpush1.bf16.msra.mxu0 %v5445
    %6465 = vmatprep.subr.bf16.mxu0 %v5439
    %6466 = vmatpush1.bf16.msra.mxu0 %v5438
    %6467 = vmatprep.subr.bf16.mxu0 %v5432
    %6468 = vmatpush1.bf16.msra.mxu0 %v5431
    %6469 = vmatprep.subr.bf16.mxu0 %v5425
    %6470 = vmatpush1.bf16.msra.mxu0 %v5424
    %6471 = vmatprep.subr.bf16.mxu0 %v5418
    %6472 = vmatpush1.bf16.msra.mxu0 %v5417
    %6473 = vmatprep.subr.bf16.mxu0 %v5411
    %6474 = vmatpush1.bf16.msra.mxu0 %v5410
    %6475 = vmatprep.subr.bf16.mxu0 %v5404
    %6476 = vmatpush1.bf16.msra.mxu0 %v5403
    %6477 = vmatprep.subr.bf16.mxu0 %v5509
    %6478 = vmatpush2.bf16.msra.mxu0 %v5508
    %6479 = vmatprep.subr.bf16.mxu0 %v5502
    %6480 = vmatpush2.bf16.msra.mxu0 %v5501
    %6481 = vmatprep.subr.bf16.mxu0 %v5495
    %6482 = vmatpush2.bf16.msra.mxu0 %v5494
    %6483 = vmatprep.subr.bf16.mxu0 %v5488
    %6484 = vmatpush2.bf16.msra.mxu0 %v5487
    %6485 = vmatprep.subr.bf16.mxu0 %v5481
    %6486 = vmatpush2.bf16.msra.mxu0 %v5480
    %6487 = vmatprep.subr.bf16.mxu0 %v5474
    %6488 = vmatpush2.bf16.msra.mxu0 %v5473
    %6489 = vmatprep.subr.bf16.mxu0 %v5467
    %6490 = vmatpush2.bf16.msra.mxu0 %v5466
    %6491 = vmatprep.subr.bf16.mxu0 %v5460
    %6492 = vmatpush2.bf16.msra.mxu0 %v5459
    %6493 = vmatprep.mubr.bf16.mxu0 %v3434
    %6494 = vmatmul.mubr.bf16.gmra.mxu0 %v3433
    %v6495 = vpop.f32.mrf.mxu0
    %v6496 = vadd.f32 %v3969, %v6495
    %v6497 = vpop.f32.mrf.mxu0
    %v6498 = vadd.f32 %v3973, %v6497
    %v6499 = vpop.f32.mrf.mxu0
    %v6500 = vpop.f32.mrf.mxu0
    %6501 = vdwg.mxu0
    %6502 = vmatprep.subr.bf16.mxu0 %v5565
    %6503 = vmatpush1.bf16.msra.mxu0 %v5564
    %6504 = vmatprep.subr.bf16.mxu0 %v5558
    %6505 = vmatpush1.bf16.msra.mxu0 %v5557
    %6506 = vmatprep.subr.bf16.mxu0 %v5551
    %6507 = vmatpush1.bf16.msra.mxu0 %v5550
    %6508 = vmatprep.subr.bf16.mxu0 %v5544
    %6509 = vmatpush1.bf16.msra.mxu0 %v5543
    %6510 = vmatprep.subr.bf16.mxu0 %v5537
    %6511 = vmatpush1.bf16.msra.mxu0 %v5536
    %6512 = vmatprep.subr.bf16.mxu0 %v5530
    %6513 = vmatpush1.bf16.msra.mxu0 %v5529
    %6514 = vmatprep.subr.bf16.mxu0 %v5523
    %6515 = vmatpush1.bf16.msra.mxu0 %v5522
    %6516 = vmatprep.subr.bf16.mxu0 %v5516
    %6517 = vmatpush1.bf16.msra.mxu0 %v5515
    %6518 = vmatprep.subr.bf16.mxu0 %v5621
    %6519 = vmatpush2.bf16.msra.mxu0 %v5620
    %6520 = vmatprep.subr.bf16.mxu0 %v5614
    %6521 = vmatpush2.bf16.msra.mxu0 %v5613
    %6522 = vmatprep.subr.bf16.mxu0 %v5607
    %6523 = vmatpush2.bf16.msra.mxu0 %v5606
    %6524 = vmatprep.subr.bf16.mxu0 %v5600
    %6525 = vmatpush2.bf16.msra.mxu0 %v5599
    %6526 = vmatprep.subr.bf16.mxu0 %v5593
    %6527 = vmatpush2.bf16.msra.mxu0 %v5592
    %6528 = vmatprep.subr.bf16.mxu0 %v5586
    %6529 = vmatpush2.bf16.msra.mxu0 %v5585
    %6530 = vmatprep.subr.bf16.mxu0 %v5579
    %6531 = vmatpush2.bf16.msra.mxu0 %v5578
    %6532 = vmatprep.subr.bf16.mxu0 %v5572
    %6533 = vmatpush2.bf16.msra.mxu0 %v5571
    %6534 = vmatprep.mubr.bf16.mxu0 %v3436
    %6535 = vmatmul.mubr.bf16.gmra.mxu0 %v3435
    %v6536 = vpop.f32.mrf.mxu0
    %v6537 = vadd.f32 %v6496, %v6536
    %v6538 = vpop.f32.mrf.mxu0
    %v6539 = vadd.f32 %v6498, %v6538
    %v6540 = vpop.f32.mrf.mxu0
    %v6541 = vpop.f32.mrf.mxu0
    %6542 = vdwg.mxu0
    %6543 = vmatprep.subr.bf16.mxu0 %v5677
    %6544 = vmatpush1.bf16.msra.mxu0 %v5676
    %6545 = vmatprep.subr.bf16.mxu0 %v5670
    %6546 = vmatpush1.bf16.msra.mxu0 %v5669
    %6547 = vmatprep.subr.bf16.mxu0 %v5663
    %6548 = vmatpush1.bf16.msra.mxu0 %v5662
    %6549 = vmatprep.subr.bf16.mxu0 %v5656
    %6550 = vmatpush1.bf16.msra.mxu0 %v5655
    %6551 = vmatprep.subr.bf16.mxu0 %v5649
    %6552 = vmatpush1.bf16.msra.mxu0 %v5648
    %6553 = vmatprep.subr.bf16.mxu0 %v5642
    %6554 = vmatpush1.bf16.msra.mxu0 %v5641
    %6555 = vmatprep.subr.bf16.mxu0 %v5635
    %6556 = vmatpush1.bf16.msra.mxu0 %v5634
    %6557 = vmatprep.subr.bf16.mxu0 %v5628
    %6558 = vmatpush1.bf16.msra.mxu0 %v5627
    %6559 = vmatprep.subr.bf16.mxu0 %v5733
    %6560 = vmatpush2.bf16.msra.mxu0 %v5732
    %6561 = vmatprep.subr.bf16.mxu0 %v5726
    %6562 = vmatpush2.bf16.msra.mxu0 %v5725
    %6563 = vmatprep.subr.bf16.mxu0 %v5719
    %6564 = vmatpush2.bf16.msra.mxu0 %v5718
    %6565 = vmatprep.subr.bf16.mxu0 %v5712
    %6566 = vmatpush2.bf16.msra.mxu0 %v5711
    %6567 = vmatprep.subr.bf16.mxu0 %v5705
    %6568 = vmatpush2.bf16.msra.mxu0 %v5704
    %6569 = vmatprep.subr.bf16.mxu0 %v5698
    %6570 = vmatpush2.bf16.msra.mxu0 %v5697
    %6571 = vmatprep.subr.bf16.mxu0 %v5691
    %6572 = vmatpush2.bf16.msra.mxu0 %v5690
    %6573 = vmatprep.subr.bf16.mxu0 %v5684
    %6574 = vmatpush2.bf16.msra.mxu0 %v5683
    %6575 = vmatprep.mubr.bf16.mxu0 %v3438
    %6576 = vmatmul.mubr.bf16.gmra.mxu0 %v3437
    %v6577 = vpop.f32.mrf.mxu0
    %v6578 = vadd.f32 %v6537, %v6577
    %v6579 = vpop.f32.mrf.mxu0
    %v6580 = vadd.f32 %v6539, %v6579
    %v6581 = vpop.f32.mrf.mxu0
    %v6582 = vpop.f32.mrf.mxu0
    %6583 = vdwg.mxu0
    %6584 = vmatprep.subr.bf16.mxu0 %v5789
    %6585 = vmatpush1.bf16.msra.mxu0 %v5788
    %6586 = vmatprep.subr.bf16.mxu0 %v5782
    %6587 = vmatpush1.bf16.msra.mxu0 %v5781
    %6588 = vmatprep.subr.bf16.mxu0 %v5775
    %6589 = vmatpush1.bf16.msra.mxu0 %v5774
    %6590 = vmatprep.subr.bf16.mxu0 %v5768
    %6591 = vmatpush1.bf16.msra.mxu0 %v5767
    %6592 = vmatprep.subr.bf16.mxu0 %v5761
    %6593 = vmatpush1.bf16.msra.mxu0 %v5760
    %6594 = vmatprep.subr.bf16.mxu0 %v5754
    %6595 = vmatpush1.bf16.msra.mxu0 %v5753
    %6596 = vmatprep.subr.bf16.mxu0 %v5747
    %6597 = vmatpush1.bf16.msra.mxu0 %v5746
    %6598 = vmatprep.subr.bf16.mxu0 %v5740
    %6599 = vmatpush1.bf16.msra.mxu0 %v5739
    %6600 = vmatprep.subr.bf16.mxu0 %v5845
    %6601 = vmatpush2.bf16.msra.mxu0 %v5844
    %6602 = vmatprep.subr.bf16.mxu0 %v5838
    %6603 = vmatpush2.bf16.msra.mxu0 %v5837
    %6604 = vmatprep.subr.bf16.mxu0 %v5831
    %6605 = vmatpush2.bf16.msra.mxu0 %v5830
    %6606 = vmatprep.subr.bf16.mxu0 %v5824
    %6607 = vmatpush2.bf16.msra.mxu0 %v5823
    %6608 = vmatprep.subr.bf16.mxu0 %v5817
    %6609 = vmatpush2.bf16.msra.mxu0 %v5816
    %6610 = vmatprep.subr.bf16.mxu0 %v5810
    %6611 = vmatpush2.bf16.msra.mxu0 %v5809
    %6612 = vmatprep.subr.bf16.mxu0 %v5803
    %6613 = vmatpush2.bf16.msra.mxu0 %v5802
    %6614 = vmatprep.subr.bf16.mxu0 %v5796
    %6615 = vmatpush2.bf16.msra.mxu0 %v5795
    %6616 = vmatprep.mubr.bf16.mxu0 %v3440
    %6617 = vmatmul.mubr.bf16.gmra.mxu0 %v3439
    %v6618 = vpop.f32.mrf.mxu0
    %v6619 = vadd.f32 %v6578, %v6618
    %v6620 = vpop.f32.mrf.mxu0
    %v6621 = vadd.f32 %v6580, %v6620
    %v6622 = vpop.f32.mrf.mxu0
    %v6623 = vpop.f32.mrf.mxu0
    %6624 = vdwg.mxu0
    %6625 = vmatprep.subr.bf16.mxu0 %v5455
    %6626 = vmatpush1.bf16.msra.mxu0 %v5454
    %6627 = vmatprep.subr.bf16.mxu0 %v5448
    %6628 = vmatpush1.bf16.msra.mxu0 %v5447
    %6629 = vmatprep.subr.bf16.mxu0 %v5441
    %6630 = vmatpush1.bf16.msra.mxu0 %v5440
    %6631 = vmatprep.subr.bf16.mxu0 %v5434
    %6632 = vmatpush1.bf16.msra.mxu0 %v5433
    %6633 = vmatprep.subr.bf16.mxu0 %v5427
    %6634 = vmatpush1.bf16.msra.mxu0 %v5426
    %6635 = vmatprep.subr.bf16.mxu0 %v5420
    %6636 = vmatpush1.bf16.msra.mxu0 %v5419
    %6637 = vmatprep.subr.bf16.mxu0 %v5413
    %6638 = vmatpush1.bf16.msra.mxu0 %v5412
    %6639 = vmatprep.subr.bf16.mxu0 %v5406
    %6640 = vmatpush1.bf16.msra.mxu0 %v5405
    %6641 = vmatprep.subr.bf16.mxu0 %v5511
    %6642 = vmatpush2.bf16.msra.mxu0 %v5510
    %6643 = vmatprep.subr.bf16.mxu0 %v5504
    %6644 = vmatpush2.bf16.msra.mxu0 %v5503
    %6645 = vmatprep.subr.bf16.mxu0 %v5497
    %6646 = vmatpush2.bf16.msra.mxu0 %v5496
    %6647 = vmatprep.subr.bf16.mxu0 %v5490
    %6648 = vmatpush2.bf16.msra.mxu0 %v5489
    %6649 = vmatprep.subr.bf16.mxu0 %v5483
    %6650 = vmatpush2.bf16.msra.mxu0 %v5482
    %6651 = vmatprep.subr.bf16.mxu0 %v5476
    %6652 = vmatpush2.bf16.msra.mxu0 %v5475
    %6653 = vmatprep.subr.bf16.mxu0 %v5469
    %6654 = vmatpush2.bf16.msra.mxu0 %v5468
    %6655 = vmatprep.subr.bf16.mxu0 %v5462
    %6656 = vmatpush2.bf16.msra.mxu0 %v5461
    %6657 = vmatprep.mubr.bf16.mxu0 %v3434
    %6658 = vmatmul.mubr.bf16.gmra.mxu0 %v3433
    %v6659 = vpop.f32.mrf.mxu0
    %v6660 = vadd.f32 %v3977, %v6659
    %v6661 = vpop.f32.mrf.mxu0
    %v6662 = vadd.f32 %v3981, %v6661
    %v6663 = vpop.f32.mrf.mxu0
    %v6664 = vpop.f32.mrf.mxu0
    %6665 = vdwg.mxu0
    %6666 = vmatprep.subr.bf16.mxu0 %v5567
    %6667 = vmatpush1.bf16.msra.mxu0 %v5566
    %6668 = vmatprep.subr.bf16.mxu0 %v5560
    %6669 = vmatpush1.bf16.msra.mxu0 %v5559
    %6670 = vmatprep.subr.bf16.mxu0 %v5553
    %6671 = vmatpush1.bf16.msra.mxu0 %v5552
    %6672 = vmatprep.subr.bf16.mxu0 %v5546
    %6673 = vmatpush1.bf16.msra.mxu0 %v5545
    %6674 = vmatprep.subr.bf16.mxu0 %v5539
    %6675 = vmatpush1.bf16.msra.mxu0 %v5538
    %6676 = vmatprep.subr.bf16.mxu0 %v5532
    %6677 = vmatpush1.bf16.msra.mxu0 %v5531
    %6678 = vmatprep.subr.bf16.mxu0 %v5525
    %6679 = vmatpush1.bf16.msra.mxu0 %v5524
    %6680 = vmatprep.subr.bf16.mxu0 %v5518
    %6681 = vmatpush1.bf16.msra.mxu0 %v5517
    %6682 = vmatprep.subr.bf16.mxu0 %v5623
    %6683 = vmatpush2.bf16.msra.mxu0 %v5622
    %6684 = vmatprep.subr.bf16.mxu0 %v5616
    %6685 = vmatpush2.bf16.msra.mxu0 %v5615
    %6686 = vmatprep.subr.bf16.mxu0 %v5609
    %6687 = vmatpush2.bf16.msra.mxu0 %v5608
    %6688 = vmatprep.subr.bf16.mxu0 %v5602
    %6689 = vmatpush2.bf16.msra.mxu0 %v5601
    %6690 = vmatprep.subr.bf16.mxu0 %v5595
    %6691 = vmatpush2.bf16.msra.mxu0 %v5594
    %6692 = vmatprep.subr.bf16.mxu0 %v5588
    %6693 = vmatpush2.bf16.msra.mxu0 %v5587
    %6694 = vmatprep.subr.bf16.mxu0 %v5581
    %6695 = vmatpush2.bf16.msra.mxu0 %v5580
    %6696 = vmatprep.subr.bf16.mxu0 %v5574
    %6697 = vmatpush2.bf16.msra.mxu0 %v5573
    %6698 = vmatprep.mubr.bf16.mxu0 %v3436
    %6699 = vmatmul.mubr.bf16.gmra.mxu0 %v3435
    %v6700 = vpop.f32.mrf.mxu0
    %v6701 = vadd.f32 %v6660, %v6700
    %v6702 = vpop.f32.mrf.mxu0
    %v6703 = vadd.f32 %v6662, %v6702
    %v6704 = vpop.f32.mrf.mxu0
    %v6705 = vpop.f32.mrf.mxu0
    %6706 = vdwg.mxu0
    %6707 = vmatprep.subr.bf16.mxu0 %v5679
    %6708 = vmatpush1.bf16.msra.mxu0 %v5678
    %6709 = vmatprep.subr.bf16.mxu0 %v5672
    %6710 = vmatpush1.bf16.msra.mxu0 %v5671
    %6711 = vmatprep.subr.bf16.mxu0 %v5665
    %6712 = vmatpush1.bf16.msra.mxu0 %v5664
    %6713 = vmatprep.subr.bf16.mxu0 %v5658
    %6714 = vmatpush1.bf16.msra.mxu0 %v5657
    %6715 = vmatprep.subr.bf16.mxu0 %v5651
    %6716 = vmatpush1.bf16.msra.mxu0 %v5650
    %6717 = vmatprep.subr.bf16.mxu0 %v5644
    %6718 = vmatpush1.bf16.msra.mxu0 %v5643
    %6719 = vmatprep.subr.bf16.mxu0 %v5637
    %6720 = vmatpush1.bf16.msra.mxu0 %v5636
    %6721 = vmatprep.subr.bf16.mxu0 %v5630
    %6722 = vmatpush1.bf16.msra.mxu0 %v5629
    %6723 = vmatprep.subr.bf16.mxu0 %v5735
    %6724 = vmatpush2.bf16.msra.mxu0 %v5734
    %6725 = vmatprep.subr.bf16.mxu0 %v5728
    %6726 = vmatpush2.bf16.msra.mxu0 %v5727
    %6727 = vmatprep.subr.bf16.mxu0 %v5721
    %6728 = vmatpush2.bf16.msra.mxu0 %v5720
    %6729 = vmatprep.subr.bf16.mxu0 %v5714
    %6730 = vmatpush2.bf16.msra.mxu0 %v5713
    %6731 = vmatprep.subr.bf16.mxu0 %v5707
    %6732 = vmatpush2.bf16.msra.mxu0 %v5706
    %6733 = vmatprep.subr.bf16.mxu0 %v5700
    %6734 = vmatpush2.bf16.msra.mxu0 %v5699
    %6735 = vmatprep.subr.bf16.mxu0 %v5693
    %6736 = vmatpush2.bf16.msra.mxu0 %v5692
    %6737 = vmatprep.subr.bf16.mxu0 %v5686
    %6738 = vmatpush2.bf16.msra.mxu0 %v5685
    %6739 = vmatprep.mubr.bf16.mxu0 %v3438
    %6740 = vmatmul.mubr.bf16.gmra.mxu0 %v3437
    %v6741 = vpop.f32.mrf.mxu0
    %v6742 = vadd.f32 %v6701, %v6741
    %v6743 = vpop.f32.mrf.mxu0
    %v6744 = vadd.f32 %v6703, %v6743
    %v6745 = vpop.f32.mrf.mxu0
    %v6746 = vpop.f32.mrf.mxu0
    %6747 = vdwg.mxu0
    %6748 = vmatprep.subr.bf16.mxu0 %v5791
    %6749 = vmatpush1.bf16.msra.mxu0 %v5790
    %6750 = vmatprep.subr.bf16.mxu0 %v5784
    %6751 = vmatpush1.bf16.msra.mxu0 %v5783
    %6752 = vmatprep.subr.bf16.mxu0 %v5777
    %6753 = vmatpush1.bf16.msra.mxu0 %v5776
    %6754 = vmatprep.subr.bf16.mxu0 %v5770
    %6755 = vmatpush1.bf16.msra.mxu0 %v5769
    %6756 = vmatprep.subr.bf16.mxu0 %v5763
    %6757 = vmatpush1.bf16.msra.mxu0 %v5762
    %6758 = vmatprep.subr.bf16.mxu0 %v5756
    %6759 = vmatpush1.bf16.msra.mxu0 %v5755
    %6760 = vmatprep.subr.bf16.mxu0 %v5749
    %6761 = vmatpush1.bf16.msra.mxu0 %v5748
    %6762 = vmatprep.subr.bf16.mxu0 %v5742
    %6763 = vmatpush1.bf16.msra.mxu0 %v5741
    %6764 = vmatprep.subr.bf16.mxu0 %v5847
    %6765 = vmatpush2.bf16.msra.mxu0 %v5846
    %6766 = vmatprep.subr.bf16.mxu0 %v5840
    %6767 = vmatpush2.bf16.msra.mxu0 %v5839
    %6768 = vmatprep.subr.bf16.mxu0 %v5833
    %6769 = vmatpush2.bf16.msra.mxu0 %v5832
    %6770 = vmatprep.subr.bf16.mxu0 %v5826
    %6771 = vmatpush2.bf16.msra.mxu0 %v5825
    %6772 = vmatprep.subr.bf16.mxu0 %v5819
    %6773 = vmatpush2.bf16.msra.mxu0 %v5818
    %6774 = vmatprep.subr.bf16.mxu0 %v5812
    %6775 = vmatpush2.bf16.msra.mxu0 %v5811
    %6776 = vmatprep.subr.bf16.mxu0 %v5805
    %6777 = vmatpush2.bf16.msra.mxu0 %v5804
    %6778 = vmatprep.subr.bf16.mxu0 %v5798
    %6779 = vmatpush2.bf16.msra.mxu0 %v5797
    %6780 = vmatprep.mubr.bf16.mxu0 %v3440
    %6781 = vmatmul.mubr.bf16.gmra.mxu0 %v3439
    %v6782 = vpop.f32.mrf.mxu0
    %v6783 = vadd.f32 %v6742, %v6782
    %v6784 = vpop.f32.mrf.mxu0
    %v6785 = vadd.f32 %v6744, %v6784
    %v6786 = vpop.f32.mrf.mxu0
    %v6787 = vpop.f32.mrf.mxu0
    %6788 = vdwg.mxu0
    %6789 = vmatprep.subr.bf16.mxu0 0
    %6790 = vmatpush1.bf16.msra.mxu0 %v5456
    %6791 = vmatprep.subr.bf16.mxu0 0
    %6792 = vmatpush1.bf16.msra.mxu0 %v5449
    %6793 = vmatprep.subr.bf16.mxu0 0
    %6794 = vmatpush1.bf16.msra.mxu0 %v5442
    %6795 = vmatprep.subr.bf16.mxu0 0
    %6796 = vmatpush1.bf16.msra.mxu0 %v5435
    %6797 = vmatprep.subr.bf16.mxu0 0
    %6798 = vmatpush1.bf16.msra.mxu0 %v5428
    %6799 = vmatprep.subr.bf16.mxu0 0
    %6800 = vmatpush1.bf16.msra.mxu0 %v5421
    %6801 = vmatprep.subr.bf16.mxu0 0
    %6802 = vmatpush1.bf16.msra.mxu0 %v5414
    %6803 = vmatprep.subr.bf16.mxu0 0
    %6804 = vmatpush1.bf16.msra.mxu0 %v5407
    %6805 = vmatprep.subr.bf16.mxu0 0
    %6806 = vmatpush2.bf16.msra.mxu0 %v5512
    %6807 = vmatprep.subr.bf16.mxu0 0
    %6808 = vmatpush2.bf16.msra.mxu0 %v5505
    %6809 = vmatprep.subr.bf16.mxu0 0
    %6810 = vmatpush2.bf16.msra.mxu0 %v5498
    %6811 = vmatprep.subr.bf16.mxu0 0
    %6812 = vmatpush2.bf16.msra.mxu0 %v5491
    %6813 = vmatprep.subr.bf16.mxu0 0
    %6814 = vmatpush2.bf16.msra.mxu0 %v5484
    %6815 = vmatprep.subr.bf16.mxu0 0
    %6816 = vmatpush2.bf16.msra.mxu0 %v5477
    %6817 = vmatprep.subr.bf16.mxu0 0
    %6818 = vmatpush2.bf16.msra.mxu0 %v5470
    %6819 = vmatprep.subr.bf16.mxu0 0
    %6820 = vmatpush2.bf16.msra.mxu0 %v5463
    %6821 = vmatprep.mubr.bf16.mxu0 %v3434
    %6822 = vmatmul.mubr.bf16.gmra.mxu0 %v3433
    %v6823 = vpop.f32.mrf.mxu0
    %v6824 = vadd.f32 %v3985, %v6823
    %v6825 = vpop.f32.mrf.mxu0
    %v6826 = vpop.f32.mrf.mxu0
    %v6827 = vpop.f32.mrf.mxu0
    %6828 = vdwg.mxu0
    %6829 = vmatprep.subr.bf16.mxu0 0
    %6830 = vmatpush1.bf16.msra.mxu0 %v5568
    %6831 = vmatprep.subr.bf16.mxu0 0
    %6832 = vmatpush1.bf16.msra.mxu0 %v5561
    %6833 = vmatprep.subr.bf16.mxu0 0
    %6834 = vmatpush1.bf16.msra.mxu0 %v5554
    %6835 = vmatprep.subr.bf16.mxu0 0
    %6836 = vmatpush1.bf16.msra.mxu0 %v5547
    %6837 = vmatprep.subr.bf16.mxu0 0
    %6838 = vmatpush1.bf16.msra.mxu0 %v5540
    %6839 = vmatprep.subr.bf16.mxu0 0
    %6840 = vmatpush1.bf16.msra.mxu0 %v5533
    %6841 = vmatprep.subr.bf16.mxu0 0
    %6842 = vmatpush1.bf16.msra.mxu0 %v5526
    %6843 = vmatprep.subr.bf16.mxu0 0
    %6844 = vmatpush1.bf16.msra.mxu0 %v5519
    %6845 = vmatprep.subr.bf16.mxu0 0
    %6846 = vmatpush2.bf16.msra.mxu0 %v5624
    %6847 = vmatprep.subr.bf16.mxu0 0
    %6848 = vmatpush2.bf16.msra.mxu0 %v5617
    %6849 = vmatprep.subr.bf16.mxu0 0
    %6850 = vmatpush2.bf16.msra.mxu0 %v5610
    %6851 = vmatprep.subr.bf16.mxu0 0
    %6852 = vmatpush2.bf16.msra.mxu0 %v5603
    %6853 = vmatprep.subr.bf16.mxu0 0
    %6854 = vmatpush2.bf16.msra.mxu0 %v5596
    %6855 = vmatprep.subr.bf16.mxu0 0
    %6856 = vmatpush2.bf16.msra.mxu0 %v5589
    %6857 = vmatprep.subr.bf16.mxu0 0
    %6858 = vmatpush2.bf16.msra.mxu0 %v5582
    %6859 = vmatprep.subr.bf16.mxu0 0
    %6860 = vmatpush2.bf16.msra.mxu0 %v5575
    %6861 = vmatprep.mubr.bf16.mxu0 %v3436
    %6862 = vmatmul.mubr.bf16.gmra.mxu0 %v3435
    %v6863 = vpop.f32.mrf.mxu0
    %v6864 = vadd.f32 %v6824, %v6863
    %v6865 = vpop.f32.mrf.mxu0
    %v6866 = vpop.f32.mrf.mxu0
    %v6867 = vpop.f32.mrf.mxu0
    %6868 = vdwg.mxu0
    %6869 = vmatprep.subr.bf16.mxu0 0
    %6870 = vmatpush1.bf16.msra.mxu0 %v5680
    %6871 = vmatprep.subr.bf16.mxu0 0
    %6872 = vmatpush1.bf16.msra.mxu0 %v5673
    %6873 = vmatprep.subr.bf16.mxu0 0
    %6874 = vmatpush1.bf16.msra.mxu0 %v5666
    %6875 = vmatprep.subr.bf16.mxu0 0
    %6876 = vmatpush1.bf16.msra.mxu0 %v5659
    %6877 = vmatprep.subr.bf16.mxu0 0
    %6878 = vmatpush1.bf16.msra.mxu0 %v5652
    %6879 = vmatprep.subr.bf16.mxu0 0
    %6880 = vmatpush1.bf16.msra.mxu0 %v5645
    %6881 = vmatprep.subr.bf16.mxu0 0
    %6882 = vmatpush1.bf16.msra.mxu0 %v5638
    %6883 = vmatprep.subr.bf16.mxu0 0
    %6884 = vmatpush1.bf16.msra.mxu0 %v5631
    %6885 = vmatprep.subr.bf16.mxu0 0
    %6886 = vmatpush2.bf16.msra.mxu0 %v5736
    %6887 = vmatprep.subr.bf16.mxu0 0
    %6888 = vmatpush2.bf16.msra.mxu0 %v5729
    %6889 = vmatprep.subr.bf16.mxu0 0
    %6890 = vmatpush2.bf16.msra.mxu0 %v5722
    %6891 = vmatprep.subr.bf16.mxu0 0
    %6892 = vmatpush2.bf16.msra.mxu0 %v5715
    %6893 = vmatprep.subr.bf16.mxu0 0
    %6894 = vmatpush2.bf16.msra.mxu0 %v5708
    %6895 = vmatprep.subr.bf16.mxu0 0
    %6896 = vmatpush2.bf16.msra.mxu0 %v5701
    %6897 = vmatprep.subr.bf16.mxu0 0
    %6898 = vmatpush2.bf16.msra.mxu0 %v5694
    %6899 = vmatprep.subr.bf16.mxu0 0
    %6900 = vmatpush2.bf16.msra.mxu0 %v5687
    %6901 = vmatprep.mubr.bf16.mxu0 %v3438
    %6902 = vmatmul.mubr.bf16.gmra.mxu0 %v3437
    %v6903 = vpop.f32.mrf.mxu0
    %v6904 = vadd.f32 %v6864, %v6903
    %v6905 = vpop.f32.mrf.mxu0
    %v6906 = vpop.f32.mrf.mxu0
    %v6907 = vpop.f32.mrf.mxu0
    %6908 = vdwg.mxu0
    %6909 = vmatprep.subr.bf16.mxu0 0
    %6910 = vmatpush1.bf16.msra.mxu0 %v5792
    %6911 = vmatprep.subr.bf16.mxu0 0
    %6912 = vmatpush1.bf16.msra.mxu0 %v5785
    %6913 = vmatprep.subr.bf16.mxu0 0
    %6914 = vmatpush1.bf16.msra.mxu0 %v5778
    %6915 = vmatprep.subr.bf16.mxu0 0
    %6916 = vmatpush1.bf16.msra.mxu0 %v5771
    %6917 = vmatprep.subr.bf16.mxu0 0
    %6918 = vmatpush1.bf16.msra.mxu0 %v5764
    %6919 = vmatprep.subr.bf16.mxu0 0
    %6920 = vmatpush1.bf16.msra.mxu0 %v5757
    %6921 = vmatprep.subr.bf16.mxu0 0
    %6922 = vmatpush1.bf16.msra.mxu0 %v5750
    %6923 = vmatprep.subr.bf16.mxu0 0
    %6924 = vmatpush1.bf16.msra.mxu0 %v5743
    %6925 = vmatprep.subr.bf16.mxu0 0
    %6926 = vmatpush2.bf16.msra.mxu0 %v5848
    %6927 = vmatprep.subr.bf16.mxu0 0
    %6928 = vmatpush2.bf16.msra.mxu0 %v5841
    %6929 = vmatprep.subr.bf16.mxu0 0
    %6930 = vmatpush2.bf16.msra.mxu0 %v5834
    %6931 = vmatprep.subr.bf16.mxu0 0
    %6932 = vmatpush2.bf16.msra.mxu0 %v5827
    %6933 = vmatprep.subr.bf16.mxu0 0
    %6934 = vmatpush2.bf16.msra.mxu0 %v5820
    %6935 = vmatprep.subr.bf16.mxu0 0
    %6936 = vmatpush2.bf16.msra.mxu0 %v5813
    %6937 = vmatprep.subr.bf16.mxu0 0
    %6938 = vmatpush2.bf16.msra.mxu0 %v5806
    %6939 = vmatprep.subr.bf16.mxu0 0
    %6940 = vmatpush2.bf16.msra.mxu0 %v5799
    %6941 = vmatprep.mubr.bf16.mxu0 %v3440
    %6942 = vmatmul.mubr.bf16.gmra.mxu0 %v3439
    %v6943 = vpop.f32.mrf.mxu0
    %v6944 = vadd.f32 %v6904, %v6943
    %v6945 = vpop.f32.mrf.mxu0
    %v6946 = vpop.f32.mrf.mxu0
    %v6947 = vpop.f32.mrf.mxu0
    %6948 = vdwg.mxu0
    %v6949 = vtanh.pop %v6455
    %v6950 = vtanh.pop %v6457
    %v6951 = vtanh.pop %v6619
    %v6952 = vtanh.pop %v6621
    %v6953 = vtanh.pop %v6783
    %v6954 = vtanh.pop %v6785
    %v6955 = vtanh.pop %v6944
    %6956 = vst [vmem:[%s7] sm:$0xff] %v6949
    %6957 = vst [vmem:[%s7 + $0x8] sm:$0xff] %v6950
    %6958 = vst [vmem:[%s7 + $0x10] sm:$0xff] %v6951
    %6959 = vst [vmem:[%s7 + $0x18] sm:$0xff] %v6952
    %6960 = vst [vmem:[%s7 + $0x20] sm:$0xff] %v6953
    %6961 = vst [vmem:[%s7 + $0x28] sm:$0xff] %v6954
    %6962 = vst [vmem:[%s7 + $0x30] sm:$0xff] %v6955
    // Predicated region
    $region46: #{generator_forward.1} parent=1 // pred_check
      _
    $region47: #{generator_forward.1} parent=1 // pred_check_branch
      %6964 = sbr.rel (0) target = $region49
    $region48: #{generator_forward.1} parent=1 // pred_region
      _
    $region49: #{generator_forward.1} parent=1 // pred_fallthru
      _
    // Predicated region
    $region50: #{generator_forward.1} parent=1 // pred_check
      _
    $region51: #{generator_forward.1} parent=1 // pred_check_branch
      %6966 = sbr.rel (0) target = $region53
    $region52: #{generator_forward.1} parent=1 // pred_region
      _
    $region53: #{generator_forward.1} parent=1 // pred_fallthru
      _
    %6967 = vsyncpa [#allocation6], 1
    %6968 = vsyncpa [#allocation8], 1
    %6969 = vsyncpa [#allocation11], 1
  %6970 = vsyncmov [#allocation4]
  %s6971 = vpop.sfrf %6970
  %p6972 = scmp.eq.s32.totalorder %s6971, 0
  %p6973 = pneg %p6972
  %6975 = shalt.err (%p6973)
  %s6976 = scalar_lea.sflag [#allocation4], 1
  %6977 = vsyncmov %s6976
  %s6978 = vpop.sfrf %6977
  %p6979 = scmp.eq.s32.totalorder %s6978, 0
  %p6980 = pneg %p6979
  %6982 = shalt.err (%p6980)

</llo_original>
